<compile_context>
chip_gen: v6e
topology: v6e:2x2x1
jax: 0.10.0
libtpu: 0.0.40
codegen_flags: <defaults>
</compile_context>

<pallas_src>
import functools

import jax
import jax.numpy as jnp
from jax.experimental import pallas as pl
from jax.experimental.pallas import tpu as pltpu

_LANE = 128          # channel padding granularity (lane width)
_ROW_TILE = 512      # target rows per 1x1-matmul grid step (bf16 operands)
_CONV_M_TARGET = 256 # minimum effective matmul M (th * Wo8) per 3x3 grid step


def _round_up(x, m):
    return ((x + m - 1) // m) * m


def _vmem_limit_bytes():
    # ~7/8 of physical VMEM, capped at 100 MiB (v5e/v6e: 128 MiB phys -> 100 MiB,
    # v7x: 64 MiB phys -> 56 MiB). Safe fallback if the query is unavailable.
    try:
        cap = pltpu.get_tpu_info().vmem_capacity_bytes
        return int(min(cap * 7 // 8, 100 * 1024 * 1024))
    except Exception:
        return 56 * 1024 * 1024


_VMEM_LIMIT = _vmem_limit_bytes()


def _pick_row_tile(m, target=_ROW_TILE):
    """Largest multiple of 8 that divides m and is <= target; else m (full block)."""
    if m <= target:
        return m
    t = (target // 8) * 8
    while t >= 8:
        if m % t == 0:
            return t
        t -= 8
    return m


# ---------------------------------------------------------------------------
# Pallas kernels (all matmuls: bf16 operands, f32 accumulate)
# ---------------------------------------------------------------------------
def _mm_bias_act_kernel(x_ref, w_ref, b_ref, o_ref, *, relu):
    # out = act(x @ w + b)
    acc = jnp.dot(x_ref[...], w_ref[...], preferred_element_type=jnp.float32)
    out = acc + b_ref[...]
    if relu:
        out = jnp.maximum(out, 0.0)
    o_ref[...] = out.astype(o_ref.dtype)


def _mm_bias_add_relu_kernel(x_ref, w_ref, b_ref, sc_ref, o_ref):
    # out = relu(x @ w + b + sc)   (identity shortcut)
    acc = jnp.dot(x_ref[...], w_ref[...], preferred_element_type=jnp.float32)
    out = acc + b_ref[...] + sc_ref[...].astype(jnp.float32)
    o_ref[...] = jnp.maximum(out, 0.0).astype(o_ref.dtype)


def _mm2_bias_relu_kernel(x_ref, xs_ref, w_ref, ws_ref, b_ref, o_ref):
    # out = relu(x @ w + xs @ ws + b)   (fused conv3 + conv-shortcut + residual)
    acc = jnp.dot(x_ref[...], w_ref[...], preferred_element_type=jnp.float32)
    acc = acc + jnp.dot(xs_ref[...], ws_ref[...], preferred_element_type=jnp.float32)
    o_ref[...] = jnp.maximum(acc + b_ref[...], 0.0).astype(o_ref.dtype)


def _conv3x3_bias_relu_kernel(x_ref, w_ref, b_ref, o_ref, *, tap_bases, th, wo8):
    # 3x3 conv + bias + ReLU for one image, one tile of output rows.
    # x_ref: (1, 3*Rstack*Wo8, C) -- per-kw shifted copies flattened to (rows, C);
    #        every tap is an aligned unit-stride row slice of length th*Wo8.
    # w_ref: (9, C, Cout) taps flattened as kh*3 + kw (scale-folded, bf16)
    # o_ref: (1, th*Wo8, Cout)
    row0 = pl.program_id(1) * th
    m = th * wo8
    cout = o_ref.shape[-1]
    acc = jnp.zeros((m, cout), jnp.float32)
    for t, base in enumerate(tap_bases):
        start = pl.multiple_of((base + row0) * wo8, 8)
        patch = x_ref[0, pl.ds(start, m), :]                       # (m, C), aligned
        acc = acc + jnp.dot(patch, w_ref[t], preferred_element_type=jnp.float32)
    out = jnp.maximum(acc + b_ref[...], 0.0)
    o_ref[0] = out.astype(o_ref.dtype)


# ---------------------------------------------------------------------------
# Pallas wrappers
# ---------------------------------------------------------------------------
def _compiler_params(sem):
    return pltpu.CompilerParams(dimension_semantics=sem,
                                vmem_limit_bytes=_VMEM_LIMIT)


def _pointwise(x, w, b, *, relu, out_dtype):
    """out = act(x @ w + b); x:(M,K) bf16, w:(K,N) bf16, b:(1,N) f32."""
    M, K = x.shape
    Nc = w.shape[1]
    tm = _pick_row_tile(M)
    cost = pl.CostEstimate(
        flops=2 * M * K * Nc, transcendentals=0,
        bytes_accessed=x.size * 2 + w.size * 2 + b.size * 4
        + M * Nc * jnp.dtype(out_dtype).itemsize)
    kernel = functools.partial(_mm_bias_act_kernel, relu=relu)
    return pl.pallas_call(
        kernel,
        out_shape=jax.ShapeDtypeStruct((M, Nc), out_dtype),
        grid=(M // tm,),
        in_specs=[
            pl.BlockSpec((tm, K), lambda i: (i, 0)),
            pl.BlockSpec((K, Nc), lambda i: (0, 0)),      # resident weight
            pl.BlockSpec((1, Nc), lambda i: (0, 0)),
        ],
        out_specs=pl.BlockSpec((tm, Nc), lambda i: (i, 0)),
        compiler_params=_compiler_params(("parallel",)),
        cost_estimate=cost,
    )(x, w, b)


def _final_identity(x2, sc, w3, b, out_dtype):
    M, K = x2.shape
    Nc = w3.shape[1]
    tm = _pick_row_tile(M)
    cost = pl.CostEstimate(
        flops=2 * M * K * Nc, transcendentals=0,
        bytes_accessed=(x2.size + sc.size + w3.size) * 2 + b.size * 4 + M * Nc * 4)
    return pl.pallas_call(
        _mm_bias_add_relu_kernel,
        out_shape=jax.ShapeDtypeStruct((M, Nc), out_dtype),
        grid=(M // tm,),
        in_specs=[
            pl.BlockSpec((tm, K), lambda i: (i, 0)),
            pl.BlockSpec((K, Nc), lambda i: (0, 0)),
            pl.BlockSpec((1, Nc), lambda i: (0, 0)),
            pl.BlockSpec((tm, Nc), lambda i: (i, 0)),
        ],
        out_specs=pl.BlockSpec((tm, Nc), lambda i: (i, 0)),
        compiler_params=_compiler_params(("parallel",)),
        cost_estimate=cost,
    )(x2, w3, b, sc)


def _final_conv_shortcut(x2, xs, w3, wsc, b, out_dtype):
    M, K1 = x2.shape
    K2 = xs.shape[1]
    Nc = w3.shape[1]
    tm = _pick_row_tile(M)
    cost = pl.CostEstimate(
        flops=2 * M * (K1 + K2) * Nc, transcendentals=0,
        bytes_accessed=(x2.size + xs.size + w3.size + wsc.size) * 2
        + b.size * 4 + M * Nc * 4)
    return pl.pallas_call(
        _mm2_bias_relu_kernel,
        out_shape=jax.ShapeDtypeStruct((M, Nc), out_dtype),
        grid=(M // tm,),
        in_specs=[
            pl.BlockSpec((tm, K1), lambda i: (i, 0)),
            pl.BlockSpec((tm, K2), lambda i: (i, 0)),
            pl.BlockSpec((K1, Nc), lambda i: (0, 0)),
            pl.BlockSpec((K2, Nc), lambda i: (0, 0)),
            pl.BlockSpec((1, Nc), lambda i: (0, 0)),
        ],
        out_specs=pl.BlockSpec((tm, Nc), lambda i: (i, 0)),
        compiler_params=_compiler_params(("parallel",)),
        cost_estimate=cost,
    )(x2, xs, w3, wsc, b)


def _conv3x3(y, w9, b, stride):
    """3x3 conv (padding=1, stride in {1,2}) + bias + ReLU; NHWC bf16 in/out."""
    N, H, W, C = y.shape
    Cout = w9.shape[2]
    s = stride
    Ho = (H - 1) // s + 1
    Wo = (W - 1) // s + 1
    Wo8 = _round_up(Wo, 8)

    yp = jnp.pad(y, ((0, 0), (1, 1), (1, 1), (0, 0)))              # padding = 1
    Hp, Wp = H + 2, W + 2

    if s == 1:
        rowstack = yp                                              # (N, Hp, Wp, C)
        Rstack = Hp
        rowbase = (0, 1, 2)
    else:  # s == 2: split padded rows into even/odd planes stacked along H
        Hp_e = _round_up(Hp, 2)
        yp = jnp.pad(yp, ((0, 0), (0, Hp_e - Hp), (0, 0), (0, 0)))
        HpE = Hp_e // 2
        rowstack = yp.reshape(N, HpE, 2, Wp, C).transpose(0, 2, 1, 3, 4)
        rowstack = rowstack.reshape(N, 2 * HpE, Wp, C)
        Rstack = 2 * HpE
        rowbase = tuple((kh % 2) * HpE + kh // 2 for kh in range(3))

    # Pre-shift / column-subsample per kw so every in-kernel tap is an aligned,
    # unit-stride row slice (no sublane-misaligned slices or relayouts in-kernel).
    shifts = []
    for kw in range(3):
        a = rowstack[:, :, kw::s, :][:, :, :Wo, :]                 # (N, Rstack, Wo, C)
        a = jnp.pad(a, ((0, 0), (0, 0), (0, Wo8 - Wo), (0, 0)))
        shifts.append(a)
    x2 = jnp.stack(shifts, axis=1).reshape(N, 3 * Rstack * Wo8, C)

    tap_bases = tuple(kw * Rstack + rowbase[kh]
                      for kh in range(3) for kw in range(3))       # t = kh*3 + kw

    # Output-row tile: smallest divisor of Ho with th*Wo8 >= target effective M.
    th = Ho
    for cand in range(1, Ho + 1):
        if Ho % cand == 0 and cand * Wo8 >= _CONV_M_TARGET:
            th = cand
            break

    RT = 3 * Rstack
    kernel = functools.partial(_conv3x3_bias_relu_kernel,
                               tap_bases=tap_bases, th=th, wo8=Wo8)
    cost = pl.CostEstimate(
        flops=2 * N * Ho * Wo8 * 9 * C * Cout, transcendentals=0,
        bytes_accessed=x2.size * 2 + w9.size * 2 + b.size * 4 + N * Ho * Wo8 * Cout * 2)
    out = pl.pallas_call(
        kernel,
        out_shape=jax.ShapeDtypeStruct((N, Ho * Wo8, Cout), jnp.bfloat16),
        grid=(N, Ho // th),
        in_specs=[
            # full shifted image per batch element; constant in h -> stays resident.
            pl.BlockSpec((1, RT * Wo8, C), lambda n, h: (n, 0, 0)),
            pl.BlockSpec((9, C, Cout), lambda n, h: (0, 0, 0)),
            pl.BlockSpec((1, Cout), lambda n, h: (0, 0)),
        ],
        out_specs=pl.BlockSpec((1, th * Wo8, Cout), lambda n, h: (n, h, 0)),
        compiler_params=_compiler_params(("parallel", "arbitrary")),
        cost_estimate=cost,
    )(x2, w9, b)
    # drop the Wo -> Wo8 column padding
    return out.reshape(N, Ho, Wo8, Cout)[:, :, :Wo, :]


# ---------------------------------------------------------------------------
# Bottleneck forward (glue in plain JAX, hot paths in Pallas)
# ---------------------------------------------------------------------------
def bottleneck_forward(x_nchw, params, *, stride):
    assert stride in (1, 2), "ResNet Bottleneck uses stride 1 or 2"
    x = jnp.transpose(x_nchw, (0, 2, 3, 1)).astype(jnp.bfloat16)   # NCHW -> NHWC
    N, H, W, Cin = x.shape
    P = params["w1"].shape[1]
    E = params["w3"].shape[1]

    Cin_p = _round_up(Cin, _LANE)
    P_p = _round_up(P, _LANE)
    E_p = _round_up(E, _LANE)

    def pad2(w, ci, co):
        return jnp.pad(w, ((0, ci - w.shape[0]), (0, co - w.shape[1])))

    # Fold BN scales into conv weights (f32), zero-pad channels to lane multiples,
    # then cast to bf16 for the MXU (kernels accumulate in f32).
    w1 = pad2(params["w1"] * params["s1"][None, :], Cin_p, P_p).astype(jnp.bfloat16)
    b1 = jnp.pad(params["b1"], (0, P_p - P)).reshape(1, P_p).astype(jnp.float32)

    w2 = params["w2"] * params["s2"][None, None, None, :]
    w2 = jnp.pad(w2, ((0, 0), (0, 0), (0, P_p - P), (0, P_p - P)))
    w2 = w2.reshape(9, P_p, P_p).astype(jnp.bfloat16)
    b2 = jnp.pad(params["b2"], (0, P_p - P)).reshape(1, P_p).astype(jnp.float32)

    w3 = pad2(params["w3"] * params["s3"][None, :], P_p, E_p).astype(jnp.bfloat16)
    b3 = jnp.pad(params["b3"], (0, E_p - E)).reshape(1, E_p).astype(jnp.float32)

    x_p = jnp.pad(x, ((0, 0), (0, 0), (0, 0), (0, Cin_p - Cin)))

    # conv1 (1x1) + bn1 + relu
    out1 = _pointwise(x_p.reshape(N * H * W, Cin_p), w1, b1,
                      relu=True, out_dtype=jnp.bfloat16)
    out1 = out1.reshape(N, H, W, P_p)

    # conv2 (3x3, stride, padding=1) + bn2 + relu
    out2 = _conv3x3(out1, w2, b2, stride)
    _, Ho, Wo, _ = out2.shape
    out2 = out2.reshape(N * Ho * Wo, P_p)

    # conv3 (1x1) + bn3 + shortcut + relu, fully fused in one kernel
    if "wsc" in params:
        wsc = pad2(params["wsc"] * params["ssc"][None, :], Cin_p, E_p).astype(jnp.bfloat16)
        bsc = jnp.pad(params["bsc"], (0, E_p - E)).reshape(1, E_p).astype(jnp.float32)
        xs = x_p[:, ::stride, ::stride, :].reshape(N * Ho * Wo, Cin_p)
        out = _final_conv_shortcut(out2, xs, w3, wsc, b3 + bsc, jnp.float32)
    else:
        assert stride == 1 and Cin == E, (
            "identity shortcut requires stride == 1 and in_planes == expansion*planes")
        sc = x_p.reshape(N * H * W, E_p)
        out = _final_identity(out2, sc, w3, b3, jnp.float32)

    out = out.reshape(N, Ho, Wo, E_p)[:, :, :, :E]
    return jnp.transpose(out, (0, 3, 1, 2))                        # NHWC -> NCHW


# ---------------------------------------------------------------------------
# Deterministic parameter init (eval-mode BN folded into scale/bias)
# ---------------------------------------------------------------------------
def init_bottleneck_params(key, in_planes, planes, stride=1, expansion=4, eps=1e-5):
    E = expansion * planes
    ks = jax.random.split(key, 8)

    def conv_w(k, shape, fan_in):
        return jax.random.normal(k, shape, jnp.float32) / jnp.sqrt(float(fan_in))

    def bn_fold(k, c):
        k1, k2, k3, k4 = jax.random.split(k, 4)
        gamma = 1.0 + 0.1 * jax.random.normal(k1, (c,), jnp.float32)
        beta = 0.1 * jax.random.normal(k2, (c,), jnp.float32)
        mean = 0.1 * jax.random.normal(k3, (c,), jnp.float32)
        var = 0.5 + jax.random.uniform(k4, (c,), jnp.float32)
        scale = gamma / jnp.sqrt(var + eps)
        bias = beta - mean * scale
        return scale, bias

    p = {}
    p["w1"] = conv_w(ks[0], (in_planes, planes), in_planes)          # 1x1, (Cin, P)
    p["s1"], p["b1"] = bn_fold(ks[1], planes)
    p["w2"] = conv_w(ks[2], (3, 3, planes, planes), 9 * planes)      # 3x3, HWIO
    p["s2"], p["b2"] = bn_fold(ks[3], planes)
    p["w3"] = conv_w(ks[4], (planes, E), planes)                     # 1x1, (P, E)
    p["s3"], p["b3"] = bn_fold(ks[5], E)
    if stride != 1 or in_planes != E:
        p["wsc"] = conv_w(ks[6], (in_planes, E), in_planes)          # shortcut 1x1
        p["ssc"], p["bsc"] = bn_fold(ks[7], E)
    return p


# ---------------------------------------------------------------------------
# Pure-JAX f32 reference (for numerical check)
# ---------------------------------------------------------------------------
def _ref_forward(x_nchw, params, stride):
    x = jnp.transpose(x_nchw, (0, 2, 3, 1))

    def conv(inp, w, s, pad):
        return jax.lax.conv_general_dilated(
            inp, w, (s, s), pad, dimension_numbers=("NHWC", "HWIO", "NHWC"))

    out = conv(x, params["w1"][None, None], 1, "VALID") * params["s1"] + params["b1"]
    out = jnp.maximum(out, 0.0)
    out = conv(out, params["w2"], stride, ((1, 1), (1, 1))) * params["s2"] + params["b2"]
    out = jnp.maximum(out, 0.0)
    out = conv(out, params["w3"][None, None], 1, "VALID") * params["s3"] + params["b3"]
    if "wsc" in params:
        sc = conv(x, params["wsc"][None, None], stride, "VALID") * params["ssc"] + params["bsc"]
    else:
        sc = x
    out = jnp.maximum(out + sc, 0.0)
    return jnp.transpose(out, (0, 3, 1, 2))


# ---------------------------------------------------------------------------
if __name__ == "__main__":
    N = 2
    configs = [
        # (in_planes, planes, stride, H, W)
        (4, 4, 1, 16, 16),    # conv shortcut, stride 1
        (16, 4, 1, 16, 16),   # identity shortcut
        (4, 4, 2, 16, 16),    # conv shortcut, stride 2
        (8, 4, 2, 15, 15),    # odd spatial dims, stride 2 (padding-remainder path)
    ]

    key = jax.random.PRNGKey(0)
    for idx, (in_planes, planes, stride, H, W) in enumerate(configs):
        kx, kp, key = jax.random.split(key, 3)
        x = jax.random.normal(kx, (N, in_planes, H, W), jnp.float32)
        params = init_bottleneck_params(kp, in_planes, planes, stride)

        fwd = jax.jit(functools.partial(bottleneck_forward, stride=stride))
        out = jax.block_until_ready(fwd(x, params))

        ref = _ref_forward(x, params, stride)
        Ho = (H - 1) // stride + 1
        Wo = (W - 1) // stride + 1
        assert out.shape == ref.shape == (N, 4 * planes, Ho, Wo), (out.shape, ref.shape)
        # bf16-operand matmuls vs f32 reference -> bf16-level tolerance
        tol = 5e-2 * (1.0 + float(jnp.max(jnp.abs(ref))))
        max_err = float(jnp.max(jnp.abs(out - ref)))
        if max_err > tol:
            raise AssertionError(
                f"config {idx} (in={in_planes}, planes={planes}, stride={stride}, "
                f"H={H}, W={W}): Pallas Bottleneck mismatch vs reference: "
                f"max_err={max_err} tol={tol}")

    print("KERNEL_OK")
</pallas_src>

<mosaic_0001>
module attributes {stable_mosaic.version = 11 : i64} {
  func.func @_mm_bias_act_kernel(%arg0: i32, %arg1: memref<512x128xbf16, #tpu.memory_space<vmem>>, %arg2: memref<128x128xbf16, #tpu.memory_space<vmem>>, %arg3: memref<1x128xf32, #tpu.memory_space<vmem>>, %arg4: memref<512x128xbf16, #tpu.memory_space<vmem>>) attributes {dimension_semantics = [#tpu.dimension_semantics<parallel>], iteration_bounds = array<i64: 1>, scalar_prefetch = 0 : i64, scratch_operands = 0 : i64, tpu.core_type = #tpu.core_type<tc>, window_params = [{transform_indices = @transform_0, window_bounds = array<i64: 512, 128>}, {pipeline_mode = #tpu.pipeline_mode<synchronous>, transform_indices = @transform_1, window_bounds = array<i64: 128, 128>}, {pipeline_mode = #tpu.pipeline_mode<synchronous>, transform_indices = @transform_2, window_bounds = array<i64: 1, 128>}, {transform_indices = @transform_3, window_bounds = array<i64: 512, 128>}]} {
    %c0 = arith.constant 0 : index
    %c0_0 = arith.constant 0 : index
    %0 = vector.load %arg1[%c0, %c0_0] : memref<512x128xbf16, #tpu.memory_space<vmem>>, vector<512x128xbf16>
    %c0_1 = arith.constant 0 : index
    %c0_2 = arith.constant 0 : index
    %1 = vector.load %arg2[%c0_1, %c0_2] : memref<128x128xbf16, #tpu.memory_space<vmem>>, vector<128x128xbf16>
    %cst = arith.constant dense<0.000000e+00> : vector<512x128xf32>
    %2 = tpu.matmul %0, %1, %cst {dimension_numbers = #tpu.dot_dimension_numbers<[1], [0], [0], [1], [0, 0, 1, 1], [], []>} : vector<512x128xbf16>, vector<128x128xbf16>, vector<512x128xf32> -> vector<512x128xf32>
    %c0_3 = arith.constant 0 : index
    %c0_4 = arith.constant 0 : index
    %3 = vector.load %arg3[%c0_3, %c0_4] : memref<1x128xf32, #tpu.memory_space<vmem>>, vector<1x128xf32>
    %4 = vector.broadcast %3 : vector<1x128xf32> to vector<512x128xf32>
    %5 = arith.addf %2, %4 : vector<512x128xf32>
    %cst_5 = arith.constant 0.000000e+00 : f32
    %6 = vector.broadcast %cst_5 : f32 to vector<512x128xf32>
    %7 = arith.maximumf %5, %6 : vector<512x128xf32>
    %8 = arith.truncf %7 : vector<512x128xf32> to vector<512x128xbf16>
    %c0_6 = arith.constant 0 : index
    %c0_7 = arith.constant 0 : index
    %9 = vector.load %arg4[%c0_6, %c0_7] : memref<512x128xbf16, #tpu.memory_space<vmem>>, vector<512x128xbf16>
    tpu.vector_store %arg4[%c0_6, %c0_7], %8 {strides = array<i32>} : memref<512x128xbf16, #tpu.memory_space<vmem>>, vector<512x128xbf16>,
    return
  }
  func.func @transform_0(%arg0: i32) -> (i32, i32) {
    %c0_i32 = arith.constant 0 : i32
    %c0_i32_0 = arith.constant 0 : i32
    return %arg0, %c0_i32 : i32, i32
  }
  func.func @transform_1(%arg0: i32) -> (i32, i32) {
    %c0_i32 = arith.constant 0 : i32
    %c0_i32_0 = arith.constant 0 : i32
    %c0_i32_1 = arith.constant 0 : i32
    return %c0_i32, %c0_i32_0 : i32, i32
  }
  func.func @transform_2(%arg0: i32) -> (i32, i32) {
    %c0_i32 = arith.constant 0 : i32
    %c0_i32_0 = arith.constant 0 : i32
    %c0_i32_1 = arith.constant 0 : i32
    return %c0_i32, %c0_i32_0 : i32, i32
  }
  func.func @transform_3(%arg0: i32) -> (i32, i32) {
    %c0_i32 = arith.constant 0 : i32
    %c0_i32_0 = arith.constant 0 : i32
    return %arg0, %c0_i32 : i32, i32
  }
}

module attributes {stable_mosaic.version = 11 : i64} {
  func.func @_mm2_bias_relu_kernel(%arg0: i32, %arg1: memref<512x128xbf16, #tpu.memory_space<vmem>>, %arg2: memref<512x128xbf16, #tpu.memory_space<vmem>>, %arg3: memref<128x128xbf16, #tpu.memory_space<vmem>>, %arg4: memref<128x128xbf16, #tpu.memory_space<vmem>>, %arg5: memref<1x128xf32, #tpu.memory_space<vmem>>, %arg6: memref<512x128xf32, #tpu.memory_space<vmem>>) attributes {dimension_semantics = [#tpu.dimension_semantics<parallel>], iteration_bounds = array<i64: 1>, scalar_prefetch = 0 : i64, scratch_operands = 0 : i64, tpu.core_type = #tpu.core_type<tc>, window_params = [{transform_indices = @transform_0, window_bounds = array<i64: 512, 128>}, {transform_indices = @transform_1, window_bounds = array<i64: 512, 128>}, {pipeline_mode = #tpu.pipeline_mode<synchronous>, transform_indices = @transform_2, window_bounds = array<i64: 128, 128>}, {pipeline_mode = #tpu.pipeline_mode<synchronous>, transform_indices = @transform_3, window_bounds = array<i64: 128, 128>}, {pipeline_mode = #tpu.pipeline_mode<synchronous>, transform_indices = @transform_4, window_bounds = array<i64: 1, 128>}, {transform_indices = @transform_5, window_bounds = array<i64: 512, 128>}]} {
    %c0 = arith.constant 0 : index
    %c0_0 = arith.constant 0 : index
    %0 = vector.load %arg1[%c0, %c0_0] : memref<512x128xbf16, #tpu.memory_space<vmem>>, vector<512x128xbf16>
    %c0_1 = arith.constant 0 : index
    %c0_2 = arith.constant 0 : index
    %1 = vector.load %arg3[%c0_1, %c0_2] : memref<128x128xbf16, #tpu.memory_space<vmem>>, vector<128x128xbf16>
    %cst = arith.constant dense<0.000000e+00> : vector<512x128xf32>
    %2 = tpu.matmul %0, %1, %cst {dimension_numbers = #tpu.dot_dimension_numbers<[1], [0], [0], [1], [0, 0, 1, 1], [], []>} : vector<512x128xbf16>, vector<128x128xbf16>, vector<512x128xf32> -> vector<512x128xf32>
    %c0_3 = arith.constant 0 : index
    %c0_4 = arith.constant 0 : index
    %3 = vector.load %arg2[%c0_3, %c0_4] : memref<512x128xbf16, #tpu.memory_space<vmem>>, vector<512x128xbf16>
    %c0_5 = arith.constant 0 : index
    %c0_6 = arith.constant 0 : index
    %4 = vector.load %arg4[%c0_5, %c0_6] : memref<128x128xbf16, #tpu.memory_space<vmem>>, vector<128x128xbf16>
    %cst_7 = arith.constant dense<0.000000e+00> : vector<512x128xf32>
    %5 = tpu.matmul %3, %4, %cst_7 {dimension_numbers = #tpu.dot_dimension_numbers<[1], [0], [0], [1], [0, 0, 1, 1], [], []>} : vector<512x128xbf16>, vector<128x128xbf16>, vector<512x128xf32> -> vector<512x128xf32>
    %6 = arith.addf %2, %5 : vector<512x128xf32>
    %c0_8 = arith.constant 0 : index
    %c0_9 = arith.constant 0 : index
    %7 = vector.load %arg5[%c0_8, %c0_9] : memref<1x128xf32, #tpu.memory_space<vmem>>, vector<1x128xf32>
    %8 = vector.broadcast %7 : vector<1x128xf32> to vector<512x128xf32>
    %9 = arith.addf %6, %8 : vector<512x128xf32>
    %cst_10 = arith.constant 0.000000e+00 : f32
    %10 = vector.broadcast %cst_10 : f32 to vector<512x128xf32>
    %11 = arith.maximumf %9, %10 : vector<512x128xf32>
    %c0_11 = arith.constant 0 : index
    %c0_12 = arith.constant 0 : index
    %12 = vector.load %arg6[%c0_11, %c0_12] : memref<512x128xf32, #tpu.memory_space<vmem>>, vector<512x128xf32>
    tpu.vector_store %arg6[%c0_11, %c0_12], %11 {strides = array<i32>} : memref<512x128xf32, #tpu.memory_space<vmem>>, vector<512x128xf32>,
    return
  }
  func.func @transform_0(%arg0: i32) -> (i32, i32) {
    %c0_i32 = arith.constant 0 : i32
    %c0_i32_0 = arith.constant 0 : i32
    return %arg0, %c0_i32 : i32, i32
  }
  func.func @transform_1(%arg0: i32) -> (i32, i32) {
    %c0_i32 = arith.constant 0 : i32
    %c0_i32_0 = arith.constant 0 : i32
    return %arg0, %c0_i32 : i32, i32
  }
  func.func @transform_2(%arg0: i32) -> (i32, i32) {
    %c0_i32 = arith.constant 0 : i32
    %c0_i32_0 = arith.constant 0 : i32
    %c0_i32_1 = arith.constant 0 : i32
    return %c0_i32, %c0_i32_0 : i32, i32
  }
  func.func @transform_3(%arg0: i32) -> (i32, i32) {
    %c0_i32 = arith.constant 0 : i32
    %c0_i32_0 = arith.constant 0 : i32
    %c0_i32_1 = arith.constant 0 : i32
    return %c0_i32, %c0_i32_0 : i32, i32
  }
  func.func @transform_4(%arg0: i32) -> (i32, i32) {
    %c0_i32 = arith.constant 0 : i32
    %c0_i32_0 = arith.constant 0 : i32
    %c0_i32_1 = arith.constant 0 : i32
    return %c0_i32, %c0_i32_0 : i32, i32
  }
  func.func @transform_5(%arg0: i32) -> (i32, i32) {
    %c0_i32 = arith.constant 0 : i32
    %c0_i32_0 = arith.constant 0 : i32
    return %arg0, %c0_i32 : i32, i32
  }
}

module attributes {stable_mosaic.version = 11 : i64} {
  func.func @_conv3x3_bias_relu_kernel(%arg0: i32, %arg1: i32, %arg2: memref<1x864x128xbf16, #tpu.memory_space<vmem>>, %arg3: memref<9x128x128xbf16, #tpu.memory_space<vmem>>, %arg4: memref<1x128xf32, #tpu.memory_space<vmem>>, %arg5: memref<1x256x128xbf16, #tpu.memory_space<vmem>>) attributes {dimension_semantics = [#tpu.dimension_semantics<parallel>, #tpu.dimension_semantics<arbitrary>], iteration_bounds = array<i64: 2, 1>, scalar_prefetch = 0 : i64, scratch_operands = 0 : i64, tpu.core_type = #tpu.core_type<tc>, window_params = [{transform_indices = @transform_0, window_bounds = array<i64: 1, 864, 128>}, {pipeline_mode = #tpu.pipeline_mode<synchronous>, transform_indices = @transform_1, window_bounds = array<i64: 9, 128, 128>}, {pipeline_mode = #tpu.pipeline_mode<synchronous>, transform_indices = @transform_2, window_bounds = array<i64: 1, 128>}, {transform_indices = @transform_3, window_bounds = array<i64: 1, 256, 128>}]} {
    %c16_i32 = arith.constant 16 : i32
    %0 = arith.muli %arg1, %c16_i32 : i32
    %cst = arith.constant 0.000000e+00 : f32
    %1 = vector.broadcast %cst : f32 to vector<256x128xf32>
    %c0_i32 = arith.constant 0 : i32
    %2 = arith.addi %c0_i32, %0 : i32
    %c16_i32_0 = arith.constant 16 : i32
    %3 = arith.muli %2, %c16_i32_0 : i32
    %4 = tpu.assume_multiple %3, 8 : i32
    %c0 = arith.constant 0 : index
    %5 = arith.index_cast %4 : i32 to index
    %c0_1 = arith.constant 0 : index
    %6 = vector.load %arg2[%c0, %5, %c0_1] : memref<1x864x128xbf16, #tpu.memory_space<vmem>>, vector<1x256x128xbf16>
    %7 = vector.shape_cast %6 : vector<1x256x128xbf16> to vector<256x128xbf16>
    %c0_2 = arith.constant 0 : index
    %c0_3 = arith.constant 0 : index
    %c0_4 = arith.constant 0 : index
    %8 = vector.load %arg3[%c0_2, %c0_3, %c0_4] : memref<9x128x128xbf16, #tpu.memory_space<vmem>>, vector<1x128x128xbf16>
    %9 = vector.shape_cast %8 : vector<1x128x128xbf16> to vector<128x128xbf16>
    %cst_5 = arith.constant dense<0.000000e+00> : vector<256x128xf32>
    %10 = tpu.matmul %7, %9, %cst_5 {dimension_numbers = #tpu.dot_dimension_numbers<[1], [0], [0], [1], [0, 0, 1, 1], [], []>} : vector<256x128xbf16>, vector<128x128xbf16>, vector<256x128xf32> -> vector<256x128xf32>
    %11 = arith.addf %1, %10 : vector<256x128xf32>
    %c18_i32 = arith.constant 18 : i32
    %12 = arith.addi %c18_i32, %0 : i32
    %c16_i32_6 = arith.constant 16 : i32
    %13 = arith.muli %12, %c16_i32_6 : i32
    %14 = tpu.assume_multiple %13, 8 : i32
    %c0_7 = arith.constant 0 : index
    %15 = arith.index_cast %14 : i32 to index
    %c0_8 = arith.constant 0 : index
    %16 = vector.load %arg2[%c0_7, %15, %c0_8] : memref<1x864x128xbf16, #tpu.memory_space<vmem>>, vector<1x256x128xbf16>
    %17 = vector.shape_cast %16 : vector<1x256x128xbf16> to vector<256x128xbf16>
    %c1 = arith.constant 1 : index
    %c0_9 = arith.constant 0 : index
    %c0_10 = arith.constant 0 : index
    %18 = vector.load %arg3[%c1, %c0_9, %c0_10] : memref<9x128x128xbf16, #tpu.memory_space<vmem>>, vector<1x128x128xbf16>
    %19 = vector.shape_cast %18 : vector<1x128x128xbf16> to vector<128x128xbf16>
    %cst_11 = arith.constant dense<0.000000e+00> : vector<256x128xf32>
    %20 = tpu.matmul %17, %19, %cst_11 {dimension_numbers = #tpu.dot_dimension_numbers<[1], [0], [0], [1], [0, 0, 1, 1], [], []>} : vector<256x128xbf16>, vector<128x128xbf16>, vector<256x128xf32> -> vector<256x128xf32>
    %21 = arith.addf %11, %20 : vector<256x128xf32>
    %c36_i32 = arith.constant 36 : i32
    %22 = arith.addi %c36_i32, %0 : i32
    %c16_i32_12 = arith.constant 16 : i32
    %23 = arith.muli %22, %c16_i32_12 : i32
    %24 = tpu.assume_multiple %23, 8 : i32
    %c0_13 = arith.constant 0 : index
    %25 = arith.index_cast %24 : i32 to index
    %c0_14 = arith.constant 0 : index
    %26 = vector.load %arg2[%c0_13, %25, %c0_14] : memref<1x864x128xbf16, #tpu.memory_space<vmem>>, vector<1x256x128xbf16>
    %27 = vector.shape_cast %26 : vector<1x256x128xbf16> to vector<256x128xbf16>
    %c2 = arith.constant 2 : index
    %c0_15 = arith.constant 0 : index
    %c0_16 = arith.constant 0 : index
    %28 = vector.load %arg3[%c2, %c0_15, %c0_16] : memref<9x128x128xbf16, #tpu.memory_space<vmem>>, vector<1x128x128xbf16>
    %29 = vector.shape_cast %28 : vector<1x128x128xbf16> to vector<128x128xbf16>
    %cst_17 = arith.constant dense<0.000000e+00> : vector<256x128xf32>
    %30 = tpu.matmul %27, %29, %cst_17 {dimension_numbers = #tpu.dot_dimension_numbers<[1], [0], [0], [1], [0, 0, 1, 1], [], []>} : vector<256x128xbf16>, vector<128x128xbf16>, vector<256x128xf32> -> vector<256x128xf32>
    %31 = arith.addf %21, %30 : vector<256x128xf32>
    %c1_i32 = arith.constant 1 : i32
    %32 = arith.addi %c1_i32, %0 : i32
    %c16_i32_18 = arith.constant 16 : i32
    %33 = arith.muli %32, %c16_i32_18 : i32
    %34 = tpu.assume_multiple %33, 8 : i32
    %c0_19 = arith.constant 0 : index
    %35 = arith.index_cast %34 : i32 to index
    %c0_20 = arith.constant 0 : index
    %36 = vector.load %arg2[%c0_19, %35, %c0_20] : memref<1x864x128xbf16, #tpu.memory_space<vmem>>, vector<1x256x128xbf16>
    %37 = vector.shape_cast %36 : vector<1x256x128xbf16> to vector<256x128xbf16>
    %c3 = arith.constant 3 : index
    %c0_21 = arith.constant 0 : index
    %c0_22 = arith.constant 0 : index
    %38 = vector.load %arg3[%c3, %c0_21, %c0_22] : memref<9x128x128xbf16, #tpu.memory_space<vmem>>, vector<1x128x128xbf16>
    %39 = vector.shape_cast %38 : vector<1x128x128xbf16> to vector<128x128xbf16>
    %cst_23 = arith.constant dense<0.000000e+00> : vector<256x128xf32>
    %40 = tpu.matmul %37, %39, %cst_23 {dimension_numbers = #tpu.dot_dimension_numbers<[1], [0], [0], [1], [0, 0, 1, 1], [], []>} : vector<256x128xbf16>, vector<128x128xbf16>, vector<256x128xf32> -> vector<256x128xf32>
    %41 = arith.addf %31, %40 : vector<256x128xf32>
    %c19_i32 = arith.constant 19 : i32
    %42 = arith.addi %c19_i32, %0 : i32
    %c16_i32_24 = arith.constant 16 : i32
    %43 = arith.muli %42, %c16_i32_24 : i32
    %44 = tpu.assume_multiple %43, 8 : i32
    %c0_25 = arith.constant 0 : index
    %45 = arith.index_cast %44 : i32 to index
    %c0_26 = arith.constant 0 : index
    %46 = vector.load %arg2[%c0_25, %45, %c0_26] : memref<1x864x128xbf16, #tpu.memory_space<vmem>>, vector<1x256x128xbf16>
    %47 = vector.shape_cast %46 : vector<1x256x128xbf16> to vector<256x128xbf16>
    %c4 = arith.constant 4 : index
    %c0_27 = arith.constant 0 : index
    %c0_28 = arith.constant 0 : index
    %48 = vector.load %arg3[%c4, %c0_27, %c0_28] : memref<9x128x128xbf16, #tpu.memory_space<vmem>>, vector<1x128x128xbf16>
    %49 = vector.shape_cast %48 : vector<1x128x128xbf16> to vector<128x128xbf16>
    %cst_29 = arith.constant dense<0.000000e+00> : vector<256x128xf32>
    %50 = tpu.matmul %47, %49, %cst_29 {dimension_numbers = #tpu.dot_dimension_numbers<[1], [0], [0], [1], [0, 0, 1, 1], [], []>} : vector<256x128xbf16>, vector<128x128xbf16>, vector<256x128xf32> -> vector<256x128xf32>
    %51 = arith.addf %41, %50 : vector<256x128xf32>
    %c37_i32 = arith.constant 37 : i32
    %52 = arith.addi %c37_i32, %0 : i32
    %c16_i32_30 = arith.constant 16 : i32
    %53 = arith.muli %52, %c16_i32_30 : i32
    %54 = tpu.assume_multiple %53, 8 : i32
    %c0_31 = arith.constant 0 : index
    %55 = arith.index_cast %54 : i32 to index
    %c0_32 = arith.constant 0 : index
    %56 = vector.load %arg2[%c0_31, %55, %c0_32] : memref<1x864x128xbf16, #tpu.memory_space<vmem>>, vector<1x256x128xbf16>
    %57 = vector.shape_cast %56 : vector<1x256x128xbf16> to vector<256x128xbf16>
    %c5 = arith.constant 5 : index
    %c0_33 = arith.constant 0 : index
    %c0_34 = arith.constant 0 : index
    %58 = vector.load %arg3[%c5, %c0_33, %c0_34] : memref<9x128x128xbf16, #tpu.memory_space<vmem>>, vector<1x128x128xbf16>
    %59 = vector.shape_cast %58 : vector<1x128x128xbf16> to vector<128x128xbf16>
    %cst_35 = arith.constant dense<0.000000e+00> : vector<256x128xf32>
    %60 = tpu.matmul %57, %59, %cst_35 {dimension_numbers = #tpu.dot_dimension_numbers<[1], [0], [0], [1], [0, 0, 1, 1], [], []>} : vector<256x128xbf16>, vector<128x128xbf16>, vector<256x128xf32> -> vector<256x128xf32>
    %61 = arith.addf %51, %60 : vector<256x128xf32>
    %c2_i32 = arith.constant 2 : i32
    %62 = arith.addi %c2_i32, %0 : i32
    %c16_i32_36 = arith.constant 16 : i32
    %63 = arith.muli %62, %c16_i32_36 : i32
    %64 = tpu.assume_multiple %63, 8 : i32
    %c0_37 = arith.constant 0 : index
    %65 = arith.index_cast %64 : i32 to index
    %c0_38 = arith.constant 0 : index
    %66 = vector.load %arg2[%c0_37, %65, %c0_38] : memref<1x864x128xbf16, #tpu.memory_space<vmem>>, vector<1x256x128xbf16>
    %67 = vector.shape_cast %66 : vector<1x256x128xbf16> to vector<256x128xbf16>
    %c6 = arith.constant 6 : index
    %c0_39 = arith.constant 0 : index
    %c0_40 = arith.constant 0 : index
    %68 = vector.load %arg3[%c6, %c0_39, %c0_40] : memref<9x128x128xbf16, #tpu.memory_space<vmem>>, vector<1x128x128xbf16>
    %69 = vector.shape_cast %68 : vector<1x128x128xbf16> to vector<128x128xbf16>
    %cst_41 = arith.constant dense<0.000000e+00> : vector<256x128xf32>
    %70 = tpu.matmul %67, %69, %cst_41 {dimension_numbers = #tpu.dot_dimension_numbers<[1], [0], [0], [1], [0, 0, 1, 1], [], []>} : vector<256x128xbf16>, vector<128x128xbf16>, vector<256x128xf32> -> vector<256x128xf32>
    %71 = arith.addf %61, %70 : vector<256x128xf32>
    %c20_i32 = arith.constant 20 : i32
    %72 = arith.addi %c20_i32, %0 : i32
    %c16_i32_42 = arith.constant 16 : i32
    %73 = arith.muli %72, %c16_i32_42 : i32
    %74 = tpu.assume_multiple %73, 8 : i32
    %c0_43 = arith.constant 0 : index
    %75 = arith.index_cast %74 : i32 to index
    %c0_44 = arith.constant 0 : index
    %76 = vector.load %arg2[%c0_43, %75, %c0_44] : memref<1x864x128xbf16, #tpu.memory_space<vmem>>, vector<1x256x128xbf16>
    %77 = vector.shape_cast %76 : vector<1x256x128xbf16> to vector<256x128xbf16>
    %c7 = arith.constant 7 : index
    %c0_45 = arith.constant 0 : index
    %c0_46 = arith.constant 0 : index
    %78 = vector.load %arg3[%c7, %c0_45, %c0_46] : memref<9x128x128xbf16, #tpu.memory_space<vmem>>, vector<1x128x128xbf16>
    %79 = vector.shape_cast %78 : vector<1x128x128xbf16> to vector<128x128xbf16>
    %cst_47 = arith.constant dense<0.000000e+00> : vector<256x128xf32>
    %80 = tpu.matmul %77, %79, %cst_47 {dimension_numbers = #tpu.dot_dimension_numbers<[1], [0], [0], [1], [0, 0, 1, 1], [], []>} : vector<256x128xbf16>, vector<128x128xbf16>, vector<256x128xf32> -> vector<256x128xf32>
    %81 = arith.addf %71, %80 : vector<256x128xf32>
    %c38_i32 = arith.constant 38 : i32
    %82 = arith.addi %c38_i32, %0 : i32
    %c16_i32_48 = arith.constant 16 : i32
    %83 = arith.muli %82, %c16_i32_48 : i32
    %84 = tpu.assume_multiple %83, 8 : i32
    %c0_49 = arith.constant 0 : index
    %85 = arith.index_cast %84 : i32 to index
    %c0_50 = arith.constant 0 : index
    %86 = vector.load %arg2[%c0_49, %85, %c0_50] : memref<1x864x128xbf16, #tpu.memory_space<vmem>>, vector<1x256x128xbf16>
    %87 = vector.shape_cast %86 : vector<1x256x128xbf16> to vector<256x128xbf16>
    %c8 = arith.constant 8 : index
    %c0_51 = arith.constant 0 : index
    %c0_52 = arith.constant 0 : index
    %88 = vector.load %arg3[%c8, %c0_51, %c0_52] : memref<9x128x128xbf16, #tpu.memory_space<vmem>>, vector<1x128x128xbf16>
    %89 = vector.shape_cast %88 : vector<1x128x128xbf16> to vector<128x128xbf16>
    %cst_53 = arith.constant dense<0.000000e+00> : vector<256x128xf32>
    %90 = tpu.matmul %87, %89, %cst_53 {dimension_numbers = #tpu.dot_dimension_numbers<[1], [0], [0], [1], [0, 0, 1, 1], [], []>} : vector<256x128xbf16>, vector<128x128xbf16>, vector<256x128xf32> -> vector<256x128xf32>
    %91 = arith.addf %81, %90 : vector<256x128xf32>
    %c0_54 = arith.constant 0 : index
    %c0_55 = arith.constant 0 : index
    %92 = vector.load %arg4[%c0_54, %c0_55] : memref<1x128xf32, #tpu.memory_space<vmem>>, vector<1x128xf32>
    %93 = vector.broadcast %92 : vector<1x128xf32> to vector<256x128xf32>
    %94 = arith.addf %91, %93 : vector<256x128xf32>
    %cst_56 = arith.constant 0.000000e+00 : f32
    %95 = vector.broadcast %cst_56 : f32 to vector<256x128xf32>
    %96 = arith.maximumf %94, %95 : vector<256x128xf32>
    %97 = arith.truncf %96 : vector<256x128xf32> to vector<256x128xbf16>
    %c0_57 = arith.constant 0 : index
    %c0_58 = arith.constant 0 : index
    %c0_59 = arith.constant 0 : index
    %98 = vector.load %arg5[%c0_57, %c0_58, %c0_59] : memref<1x256x128xbf16, #tpu.memory_space<vmem>>, vector<1x256x128xbf16>
    %99 = vector.shape_cast %98 : vector<1x256x128xbf16> to vector<256x128xbf16>
    %100 = vector.shape_cast %97 : vector<256x128xbf16> to vector<1x256x128xbf16>
    tpu.vector_store %arg5[%c0_57, %c0_58, %c0_59], %100 {strides = array<i32>} : memref<1x256x128xbf16, #tpu.memory_space<vmem>>, vector<1x256x128xbf16>,
    return
  }
  func.func @transform_0(%arg0: i32, %arg1: i32) -> (i32, i32, i32) {
    %c0_i32 = arith.constant 0 : i32
    %c0_i32_0 = arith.constant 0 : i32
    %c0_i32_1 = arith.constant 0 : i32
    return %arg0, %c0_i32, %c0_i32_0 : i32, i32, i32
  }
  func.func @transform_1(%arg0: i32, %arg1: i32) -> (i32, i32, i32) {
    %c0_i32 = arith.constant 0 : i32
    %c0_i32_0 = arith.constant 0 : i32
    %c0_i32_1 = arith.constant 0 : i32
    %c0_i32_2 = arith.constant 0 : i32
    return %c0_i32, %c0_i32_0, %c0_i32_1 : i32, i32, i32
  }
  func.func @transform_2(%arg0: i32, %arg1: i32) -> (i32, i32) {
    %c0_i32 = arith.constant 0 : i32
    %c0_i32_0 = arith.constant 0 : i32
    %c0_i32_1 = arith.constant 0 : i32
    return %c0_i32, %c0_i32_0 : i32, i32
  }
  func.func @transform_3(%arg0: i32, %arg1: i32) -> (i32, i32, i32) {
    %c0_i32 = arith.constant 0 : i32
    %c0_i32_0 = arith.constant 0 : i32
    return %arg0, %arg1, %c0_i32 : i32, i32, i32
  }
}

</mosaic_0001>

<llo_original>
// kernel: bottleneck_forward.3
$region0: #{bottleneck_forward.3}
  #allocation0 [shape = 'u32[]', space=smem, size = 0x4, offset = 0x4, fixed_abs, tag = 'smem constant byte address 0x4 - core index']
  #allocation1 [shape = 'u32[144,128]{1,0:T(1,128)}', space=vmem, size = 0x12000, scoped, tag = 'internal scratch']
  %s0 = inlined_call_operand.vmem [shape: bf16[512,128], index: 0, kind: input, shape index: {}]
  %s1 = inlined_call_operand.vmem [shape: bf16[128,128], index: 1, kind: input, shape index: {}]
  %s2 = inlined_call_operand.vmem [shape: f32[1,128], index: 2, kind: input, shape index: {}]
  %s3 = inlined_call_operand.vmem [shape: bf16[512,128], index: 3, kind: output, shape index: {}]
  %s4 = sld [smem:[#allocation0]]
  $region22: #{bottleneck_forward.3} parent=0
    _
  %s6 = ssub.s32 1, %s4
  %s7 = scalar_select 0, %s6, %s4
  // Predicated region
  $region2: #{bottleneck_forward.3} parent=0 // pred_check
    _
  $region3: #{bottleneck_forward.3} parent=0 // pred_check_branch
    %9 = sbr.rel (0) target = $region5
  $region4: #{bottleneck_forward.3} parent=0 // pred_region
    _
  $region5: #{bottleneck_forward.3} parent=0 // pred_fallthru
    _
  // Predicated region
  $region6: #{bottleneck_forward.3} parent=0 // pred_check
    _
  $region7: #{bottleneck_forward.3} parent=0 // pred_check_branch
    %11 = sbr.rel (0) target = $region9
  $region8: #{bottleneck_forward.3} parent=0 // pred_region
    _
  $region9: #{bottleneck_forward.3} parent=0 // pred_fallthru
    _
  // Predicated region
  $region10: #{bottleneck_forward.3} parent=0 // pred_check
    _
  $region11: #{bottleneck_forward.3} parent=0 // pred_check_branch
    %13 = sbr.rel (0) target = $region13
  $region12: #{bottleneck_forward.3} parent=0 // pred_region
    _
  $region13: #{bottleneck_forward.3} parent=0 // pred_fallthru
    _
  %v15 = vld [vmem:[%s0] sm:$0xf]
  %v16 = vld [vmem:[%s0 + $0x4] sm:$0xf]
  %v17 = vld [vmem:[%s0 + $0x8] sm:$0xf]
  %v18 = vld [vmem:[%s0 + $0xc] sm:$0xf]
  %v19 = vld [vmem:[%s0 + $0x10] sm:$0xf]
  %v20 = vld [vmem:[%s0 + $0x14] sm:$0xf]
  %v21 = vld [vmem:[%s0 + $0x18] sm:$0xf]
  %v22 = vld [vmem:[%s0 + $0x1c] sm:$0xf]
  %v23 = vld [vmem:[%s0 + $0x20] sm:$0xf]
  %v24 = vld [vmem:[%s0 + $0x24] sm:$0xf]
  %v25 = vld [vmem:[%s0 + $0x28] sm:$0xf]
  %v26 = vld [vmem:[%s0 + $0x2c] sm:$0xf]
  %v27 = vld [vmem:[%s0 + $0x30] sm:$0xf]
  %v28 = vld [vmem:[%s0 + $0x34] sm:$0xf]
  %v29 = vld [vmem:[%s0 + $0x38] sm:$0xf]
  %v30 = vld [vmem:[%s0 + $0x3c] sm:$0xf]
  %v31 = vld [vmem:[%s0 + $0x40] sm:$0xf]
  %v32 = vld [vmem:[%s0 + $0x44] sm:$0xf]
  %v33 = vld [vmem:[%s0 + $0x48] sm:$0xf]
  %v34 = vld [vmem:[%s0 + $0x4c] sm:$0xf]
  %v35 = vld [vmem:[%s0 + $0x50] sm:$0xf]
  %v36 = vld [vmem:[%s0 + $0x54] sm:$0xf]
  %v37 = vld [vmem:[%s0 + $0x58] sm:$0xf]
  %v38 = vld [vmem:[%s0 + $0x5c] sm:$0xf]
  %v39 = vld [vmem:[%s0 + $0x60] sm:$0xf]
  %v40 = vld [vmem:[%s0 + $0x64] sm:$0xf]
  %v41 = vld [vmem:[%s0 + $0x68] sm:$0xf]
  %v42 = vld [vmem:[%s0 + $0x6c] sm:$0xf]
  %v43 = vld [vmem:[%s0 + $0x70] sm:$0xf]
  %v44 = vld [vmem:[%s0 + $0x74] sm:$0xf]
  %v45 = vld [vmem:[%s0 + $0x78] sm:$0xf]
  %v46 = vld [vmem:[%s0 + $0x7c] sm:$0xf]
  %v47 = vld [vmem:[%s0 + $0x80] sm:$0xf]
  %v48 = vld [vmem:[%s0 + $0x84] sm:$0xf]
  %v49 = vld [vmem:[%s0 + $0x88] sm:$0xf]
  %v50 = vld [vmem:[%s0 + $0x8c] sm:$0xf]
  %v51 = vld [vmem:[%s0 + $0x90] sm:$0xf]
  %v52 = vld [vmem:[%s0 + $0x94] sm:$0xf]
  %v53 = vld [vmem:[%s0 + $0x98] sm:$0xf]
  %v54 = vld [vmem:[%s0 + $0x9c] sm:$0xf]
  %v55 = vld [vmem:[%s0 + $0xa0] sm:$0xf]
  %v56 = vld [vmem:[%s0 + $0xa4] sm:$0xf]
  %v57 = vld [vmem:[%s0 + $0xa8] sm:$0xf]
  %v58 = vld [vmem:[%s0 + $0xac] sm:$0xf]
  %v59 = vld [vmem:[%s0 + $0xb0] sm:$0xf]
  %v60 = vld [vmem:[%s0 + $0xb4] sm:$0xf]
  %v61 = vld [vmem:[%s0 + $0xb8] sm:$0xf]
  %v62 = vld [vmem:[%s0 + $0xbc] sm:$0xf]
  %v63 = vld [vmem:[%s0 + $0xc0] sm:$0xf]
  %v64 = vld [vmem:[%s0 + $0xc4] sm:$0xf]
  %v65 = vld [vmem:[%s0 + $0xc8] sm:$0xf]
  %v66 = vld [vmem:[%s0 + $0xcc] sm:$0xf]
  %v67 = vld [vmem:[%s0 + $0xd0] sm:$0xf]
  %v68 = vld [vmem:[%s0 + $0xd4] sm:$0xf]
  %v69 = vld [vmem:[%s0 + $0xd8] sm:$0xf]
  %v70 = vld [vmem:[%s0 + $0xdc] sm:$0xf]
  %v71 = vld [vmem:[%s0 + $0xe0] sm:$0xf]
  %v72 = vld [vmem:[%s0 + $0xe4] sm:$0xf]
  %v73 = vld [vmem:[%s0 + $0xe8] sm:$0xf]
  %v74 = vld [vmem:[%s0 + $0xec] sm:$0xf]
  %v75 = vld [vmem:[%s0 + $0xf0] sm:$0xf]
  %v76 = vld [vmem:[%s0 + $0xf4] sm:$0xf]
  %v77 = vld [vmem:[%s0 + $0xf8] sm:$0xf]
  %v78 = vld [vmem:[%s0 + $0xfc] sm:$0xf]
  %v79 = vld [vmem:[%s1] sm:$0xf]
  %v80 = vld [vmem:[%s1 + $0x4] sm:$0xf]
  %v81 = vld [vmem:[%s1 + $0x8] sm:$0xf]
  %v82 = vld [vmem:[%s1 + $0xc] sm:$0xf]
  %v83 = vld [vmem:[%s1 + $0x10] sm:$0xf]
  %v84 = vld [vmem:[%s1 + $0x14] sm:$0xf]
  %v85 = vld [vmem:[%s1 + $0x18] sm:$0xf]
  %v86 = vld [vmem:[%s1 + $0x1c] sm:$0xf]
  %v87 = vld [vmem:[%s1 + $0x20] sm:$0xf]
  %v88 = vld [vmem:[%s1 + $0x24] sm:$0xf]
  %v89 = vld [vmem:[%s1 + $0x28] sm:$0xf]
  %v90 = vld [vmem:[%s1 + $0x2c] sm:$0xf]
  %v91 = vld [vmem:[%s1 + $0x30] sm:$0xf]
  %v92 = vld [vmem:[%s1 + $0x34] sm:$0xf]
  %v93 = vld [vmem:[%s1 + $0x38] sm:$0xf]
  %v94 = vld [vmem:[%s1 + $0x3c] sm:$0xf]
  %v95 = vld [vmem:[%s2] sm:$0x1]
  %v97 = vlaneseq
  %v98 = vshrl.u32 %v97, 7
  %v99 = vsub.s32 0, %v98
  %v100 = vrot.slane %v95, %v99
  %v166 = vunpack.c.l.b16 %v15
  %v167 = vunpack.c.l.b16 %v16
  %v168 = vunpack.c.l.b16 %v17
  %v169 = vunpack.c.l.b16 %v18
  %v170 = vunpack.c.l.b16 %v19
  %v171 = vunpack.c.l.b16 %v20
  %v172 = vunpack.c.l.b16 %v21
  %v173 = vunpack.c.l.b16 %v22
  %v174 = vunpack.c.l.b16 %v23
  %v175 = vunpack.c.l.b16 %v24
  %v176 = vunpack.c.l.b16 %v25
  %v177 = vunpack.c.l.b16 %v26
  %v178 = vunpack.c.l.b16 %v27
  %v179 = vunpack.c.l.b16 %v28
  %v180 = vunpack.c.l.b16 %v29
  %v181 = vunpack.c.l.b16 %v30
  %v182 = vunpack.c.l.b16 %v31
  %v183 = vunpack.c.l.b16 %v32
  %v184 = vunpack.c.l.b16 %v33
  %v185 = vunpack.c.l.b16 %v34
  %v186 = vunpack.c.l.b16 %v35
  %v187 = vunpack.c.l.b16 %v36
  %v188 = vunpack.c.l.b16 %v37
  %v189 = vunpack.c.l.b16 %v38
  %v190 = vunpack.c.l.b16 %v39
  %v191 = vunpack.c.l.b16 %v40
  %v192 = vunpack.c.l.b16 %v41
  %v193 = vunpack.c.l.b16 %v42
  %v194 = vunpack.c.l.b16 %v43
  %v195 = vunpack.c.l.b16 %v44
  %v196 = vunpack.c.l.b16 %v45
  %v197 = vunpack.c.l.b16 %v46
  %v198 = vunpack.c.l.b16 %v47
  %v199 = vunpack.c.l.b16 %v48
  %v200 = vunpack.c.l.b16 %v49
  %v201 = vunpack.c.l.b16 %v50
  %v202 = vunpack.c.l.b16 %v51
  %v203 = vunpack.c.l.b16 %v52
  %v204 = vunpack.c.l.b16 %v53
  %v205 = vunpack.c.l.b16 %v54
  %v206 = vunpack.c.l.b16 %v55
  %v207 = vunpack.c.l.b16 %v56
  %v208 = vunpack.c.l.b16 %v57
  %v209 = vunpack.c.l.b16 %v58
  %v210 = vunpack.c.l.b16 %v59
  %v211 = vunpack.c.l.b16 %v60
  %v212 = vunpack.c.l.b16 %v61
  %v213 = vunpack.c.l.b16 %v62
  %v214 = vunpack.c.l.b16 %v63
  %v215 = vunpack.c.l.b16 %v64
  %v216 = vunpack.c.l.b16 %v65
  %v217 = vunpack.c.l.b16 %v66
  %v218 = vunpack.c.l.b16 %v67
  %v219 = vunpack.c.l.b16 %v68
  %v220 = vunpack.c.l.b16 %v69
  %v221 = vunpack.c.l.b16 %v70
  %v222 = vunpack.c.l.b16 %v71
  %v223 = vunpack.c.l.b16 %v72
  %v224 = vunpack.c.l.b16 %v73
  %v225 = vunpack.c.l.b16 %v74
  %v226 = vunpack.c.l.b16 %v75
  %v227 = vunpack.c.l.b16 %v76
  %v228 = vunpack.c.l.b16 %v77
  %v229 = vunpack.c.l.b16 %v78
  %v230 = vpack.c.b16 %v167, %v166
  %v231 = vpack.c.b16 %v169, %v168
  %v232 = vpack.c.b16 %v171, %v170
  %v233 = vpack.c.b16 %v173, %v172
  %v234 = vpack.c.b16 %v175, %v174
  %v235 = vpack.c.b16 %v177, %v176
  %v236 = vpack.c.b16 %v179, %v178
  %v237 = vpack.c.b16 %v181, %v180
  %v238 = vpack.c.b16 %v183, %v182
  %v239 = vpack.c.b16 %v185, %v184
  %v240 = vpack.c.b16 %v187, %v186
  %v241 = vpack.c.b16 %v189, %v188
  %v242 = vpack.c.b16 %v191, %v190
  %v243 = vpack.c.b16 %v193, %v192
  %v244 = vpack.c.b16 %v195, %v194
  %v245 = vpack.c.b16 %v197, %v196
  %v246 = vpack.c.b16 %v199, %v198
  %v247 = vpack.c.b16 %v201, %v200
  %v248 = vpack.c.b16 %v203, %v202
  %v249 = vpack.c.b16 %v205, %v204
  %v250 = vpack.c.b16 %v207, %v206
  %v251 = vpack.c.b16 %v209, %v208
  %v252 = vpack.c.b16 %v211, %v210
  %v253 = vpack.c.b16 %v213, %v212
  %v254 = vpack.c.b16 %v215, %v214
  %v255 = vpack.c.b16 %v217, %v216
  %v256 = vpack.c.b16 %v219, %v218
  %v257 = vpack.c.b16 %v221, %v220
  %v258 = vpack.c.b16 %v223, %v222
  %v259 = vpack.c.b16 %v225, %v224
  %v260 = vpack.c.b16 %v227, %v226
  %v261 = vpack.c.b16 %v229, %v228
  %v310 = vunpack.c.l.b16 %v79
  %v311 = vunpack.c.l.b16 %v80
  %v312 = vunpack.c.l.b16 %v81
  %v313 = vunpack.c.l.b16 %v82
  %v314 = vunpack.c.l.b16 %v83
  %v315 = vunpack.c.l.b16 %v84
  %v316 = vunpack.c.l.b16 %v85
  %v317 = vunpack.c.l.b16 %v86
  %v318 = vunpack.c.l.b16 %v87
  %v319 = vunpack.c.l.b16 %v88
  %v320 = vunpack.c.l.b16 %v89
  %v321 = vunpack.c.l.b16 %v90
  %v322 = vunpack.c.l.b16 %v91
  %v323 = vunpack.c.l.b16 %v92
  %v324 = vunpack.c.l.b16 %v93
  %v325 = vunpack.c.l.b16 %v94
  %v326 = vpack.c.b16 %v311, %v310
  %v327 = vpack.c.b16 %v313, %v312
  %v328 = vpack.c.b16 %v315, %v314
  %v329 = vpack.c.b16 %v317, %v316
  %v330 = vpack.c.b16 %v319, %v318
  %v331 = vpack.c.b16 %v321, %v320
  %v332 = vpack.c.b16 %v323, %v322
  %v333 = vpack.c.b16 %v325, %v324
  %342 = vmatprep.subr.bf16.mxu0 0
  %343 = vmatpush1.bf16.msra.mxu0 %v333
  %344 = vmatprep.subr.bf16.mxu0 0
  %345 = vmatpush1.bf16.msra.mxu0 %v332
  %346 = vmatprep.subr.bf16.mxu0 0
  %347 = vmatpush1.bf16.msra.mxu0 %v331
  %348 = vmatprep.subr.bf16.mxu0 0
  %349 = vmatpush1.bf16.msra.mxu0 %v330
  %350 = vmatprep.subr.bf16.mxu0 0
  %351 = vmatpush1.bf16.msra.mxu0 %v329
  %352 = vmatprep.subr.bf16.mxu0 0
  %353 = vmatpush1.bf16.msra.mxu0 %v328
  %354 = vmatprep.subr.bf16.mxu0 0
  %355 = vmatpush1.bf16.msra.mxu0 %v327
  %356 = vmatprep.subr.bf16.mxu0 0
  %357 = vmatpush1.bf16.msra.mxu0 %v326
  %358 = vmatprep.subr.bf16.mxu0 0
  %359 = vmatpush2.bf16.msra.mxu0 0
  %360 = vmatprep.subr.bf16.mxu0 0
  %361 = vmatpush2.bf16.msra.mxu0 0
  %362 = vmatprep.subr.bf16.mxu0 0
  %363 = vmatpush2.bf16.msra.mxu0 0
  %364 = vmatprep.subr.bf16.mxu0 0
  %365 = vmatpush2.bf16.msra.mxu0 0
  %366 = vmatprep.subr.bf16.mxu0 0
  %367 = vmatpush2.bf16.msra.mxu0 0
  %368 = vmatprep.subr.bf16.mxu0 0
  %369 = vmatpush2.bf16.msra.mxu0 0
  %370 = vmatprep.subr.bf16.mxu0 0
  %371 = vmatpush2.bf16.msra.mxu0 0
  %372 = vmatprep.subr.bf16.mxu0 0
  %373 = vmatpush2.bf16.msra.mxu0 0
  %374 = vmatprep.mubr.bf16.mxu0 0
  %375 = vmatmul.mubr.bf16.gmra.mxu0 %v230
  %v376 = vpop.f32.mrf.mxu0
  %v377 = vadd.f32 %v100, %v376
  %v378 = vpop.f32.mrf.mxu0
  %v379 = vpop.f32.mrf.mxu0
  %v380 = vadd.f32 %v100, %v379
  %v381 = vpop.f32.mrf.mxu0
  %382 = vmatprep.mubr.bf16.mxu0 0
  %383 = vmatmul.mubr.bf16.gmra.mxu0 %v231
  %v384 = vpop.f32.mrf.mxu0
  %v385 = vadd.f32 %v100, %v384
  %v386 = vpop.f32.mrf.mxu0
  %v387 = vpop.f32.mrf.mxu0
  %v388 = vadd.f32 %v100, %v387
  %v389 = vpop.f32.mrf.mxu0
  %390 = vmatprep.mubr.bf16.mxu0 0
  %391 = vmatmul.mubr.bf16.gmra.mxu0 %v232
  %v392 = vpop.f32.mrf.mxu0
  %v393 = vadd.f32 %v100, %v392
  %v394 = vpop.f32.mrf.mxu0
  %v395 = vpop.f32.mrf.mxu0
  %v396 = vadd.f32 %v100, %v395
  %v397 = vpop.f32.mrf.mxu0
  %398 = vmatprep.mubr.bf16.mxu0 0
  %399 = vmatmul.mubr.bf16.gmra.mxu0 %v233
  %v400 = vpop.f32.mrf.mxu0
  %v401 = vadd.f32 %v100, %v400
  %v402 = vpop.f32.mrf.mxu0
  %v403 = vpop.f32.mrf.mxu0
  %v404 = vadd.f32 %v100, %v403
  %v405 = vpop.f32.mrf.mxu0
  %406 = vmatprep.mubr.bf16.mxu0 0
  %407 = vmatmul.mubr.bf16.gmra.mxu0 %v234
  %v408 = vpop.f32.mrf.mxu0
  %v409 = vadd.f32 %v100, %v408
  %v410 = vpop.f32.mrf.mxu0
  %v411 = vpop.f32.mrf.mxu0
  %v412 = vadd.f32 %v100, %v411
  %v413 = vpop.f32.mrf.mxu0
  %414 = vmatprep.mubr.bf16.mxu0 0
  %415 = vmatmul.mubr.bf16.gmra.mxu0 %v235
  %v416 = vpop.f32.mrf.mxu0
  %v417 = vadd.f32 %v100, %v416
  %v418 = vpop.f32.mrf.mxu0
  %v419 = vpop.f32.mrf.mxu0
  %v420 = vadd.f32 %v100, %v419
  %v421 = vpop.f32.mrf.mxu0
  %422 = vmatprep.mubr.bf16.mxu0 0
  %423 = vmatmul.mubr.bf16.gmra.mxu0 %v236
  %v424 = vpop.f32.mrf.mxu0
  %v425 = vadd.f32 %v100, %v424
  %v426 = vpop.f32.mrf.mxu0
  %v427 = vpop.f32.mrf.mxu0
  %v428 = vadd.f32 %v100, %v427
  %v429 = vpop.f32.mrf.mxu0
  %430 = vmatprep.mubr.bf16.mxu0 0
  %431 = vmatmul.mubr.bf16.gmra.mxu0 %v237
  %v432 = vpop.f32.mrf.mxu0
  %v433 = vadd.f32 %v100, %v432
  %v434 = vpop.f32.mrf.mxu0
  %v435 = vpop.f32.mrf.mxu0
  %v436 = vadd.f32 %v100, %v435
  %v437 = vpop.f32.mrf.mxu0
  %438 = vmatprep.mubr.bf16.mxu0 0
  %439 = vmatmul.mubr.bf16.gmra.mxu0 %v238
  %v440 = vpop.f32.mrf.mxu0
  %v441 = vadd.f32 %v100, %v440
  %v442 = vpop.f32.mrf.mxu0
  %v443 = vpop.f32.mrf.mxu0
  %v444 = vadd.f32 %v100, %v443
  %v445 = vpop.f32.mrf.mxu0
  %446 = vmatprep.mubr.bf16.mxu0 0
  %447 = vmatmul.mubr.bf16.gmra.mxu0 %v239
  %v448 = vpop.f32.mrf.mxu0
  %v449 = vadd.f32 %v100, %v448
  %v450 = vpop.f32.mrf.mxu0
  %v451 = vpop.f32.mrf.mxu0
  %v452 = vadd.f32 %v100, %v451
  %v453 = vpop.f32.mrf.mxu0
  %454 = vmatprep.mubr.bf16.mxu0 0
  %455 = vmatmul.mubr.bf16.gmra.mxu0 %v240
  %v456 = vpop.f32.mrf.mxu0
  %v457 = vadd.f32 %v100, %v456
  %v458 = vpop.f32.mrf.mxu0
  %v459 = vpop.f32.mrf.mxu0
  %v460 = vadd.f32 %v100, %v459
  %v461 = vpop.f32.mrf.mxu0
  %462 = vmatprep.mubr.bf16.mxu0 0
  %463 = vmatmul.mubr.bf16.gmra.mxu0 %v241
  %v464 = vpop.f32.mrf.mxu0
  %v465 = vadd.f32 %v100, %v464
  %v466 = vpop.f32.mrf.mxu0
  %v467 = vpop.f32.mrf.mxu0
  %v468 = vadd.f32 %v100, %v467
  %v469 = vpop.f32.mrf.mxu0
  %470 = vmatprep.mubr.bf16.mxu0 0
  %471 = vmatmul.mubr.bf16.gmra.mxu0 %v242
  %v472 = vpop.f32.mrf.mxu0
  %v473 = vadd.f32 %v100, %v472
  %v474 = vpop.f32.mrf.mxu0
  %v475 = vpop.f32.mrf.mxu0
  %v476 = vadd.f32 %v100, %v475
  %v477 = vpop.f32.mrf.mxu0
  %478 = vmatprep.mubr.bf16.mxu0 0
  %479 = vmatmul.mubr.bf16.gmra.mxu0 %v243
  %v480 = vpop.f32.mrf.mxu0
  %v481 = vadd.f32 %v100, %v480
  %v482 = vpop.f32.mrf.mxu0
  %v483 = vpop.f32.mrf.mxu0
  %v484 = vadd.f32 %v100, %v483
  %v485 = vpop.f32.mrf.mxu0
  %486 = vmatprep.mubr.bf16.mxu0 0
  %487 = vmatmul.mubr.bf16.gmra.mxu0 %v244
  %v488 = vpop.f32.mrf.mxu0
  %v489 = vadd.f32 %v100, %v488
  %v490 = vpop.f32.mrf.mxu0
  %v491 = vpop.f32.mrf.mxu0
  %v492 = vadd.f32 %v100, %v491
  %v493 = vpop.f32.mrf.mxu0
  %494 = vmatprep.mubr.bf16.mxu0 0
  %495 = vmatmul.mubr.bf16.gmra.mxu0 %v245
  %v496 = vpop.f32.mrf.mxu0
  %v497 = vadd.f32 %v100, %v496
  %v498 = vpop.f32.mrf.mxu0
  %v499 = vpop.f32.mrf.mxu0
  %v500 = vadd.f32 %v100, %v499
  %v501 = vpop.f32.mrf.mxu0
  %502 = vmatprep.mubr.bf16.mxu0 0
  %503 = vmatmul.mubr.bf16.gmra.mxu0 %v246
  %v504 = vpop.f32.mrf.mxu0
  %v505 = vadd.f32 %v100, %v504
  %v506 = vpop.f32.mrf.mxu0
  %v507 = vpop.f32.mrf.mxu0
  %v508 = vadd.f32 %v100, %v507
  %v509 = vpop.f32.mrf.mxu0
  %510 = vmatprep.mubr.bf16.mxu0 0
  %511 = vmatmul.mubr.bf16.gmra.mxu0 %v247
  %v512 = vpop.f32.mrf.mxu0
  %v513 = vadd.f32 %v100, %v512
  %v514 = vpop.f32.mrf.mxu0
  %v515 = vpop.f32.mrf.mxu0
  %v516 = vadd.f32 %v100, %v515
  %v517 = vpop.f32.mrf.mxu0
  %518 = vmatprep.mubr.bf16.mxu0 0
  %519 = vmatmul.mubr.bf16.gmra.mxu0 %v248
  %v520 = vpop.f32.mrf.mxu0
  %v521 = vadd.f32 %v100, %v520
  %v522 = vpop.f32.mrf.mxu0
  %v523 = vpop.f32.mrf.mxu0
  %v524 = vadd.f32 %v100, %v523
  %v525 = vpop.f32.mrf.mxu0
  %526 = vmatprep.mubr.bf16.mxu0 0
  %527 = vmatmul.mubr.bf16.gmra.mxu0 %v249
  %v528 = vpop.f32.mrf.mxu0
  %v529 = vadd.f32 %v100, %v528
  %v530 = vpop.f32.mrf.mxu0
  %v531 = vpop.f32.mrf.mxu0
  %v532 = vadd.f32 %v100, %v531
  %v533 = vpop.f32.mrf.mxu0
  %534 = vmatprep.mubr.bf16.mxu0 0
  %535 = vmatmul.mubr.bf16.gmra.mxu0 %v250
  %v536 = vpop.f32.mrf.mxu0
  %v537 = vadd.f32 %v100, %v536
  %v538 = vpop.f32.mrf.mxu0
  %v539 = vpop.f32.mrf.mxu0
  %v540 = vadd.f32 %v100, %v539
  %v541 = vpop.f32.mrf.mxu0
  %542 = vmatprep.mubr.bf16.mxu0 0
  %543 = vmatmul.mubr.bf16.gmra.mxu0 %v251
  %v544 = vpop.f32.mrf.mxu0
  %v545 = vadd.f32 %v100, %v544
  %v546 = vpop.f32.mrf.mxu0
  %v547 = vpop.f32.mrf.mxu0
  %v548 = vadd.f32 %v100, %v547
  %v549 = vpop.f32.mrf.mxu0
  %550 = vmatprep.mubr.bf16.mxu0 0
  %551 = vmatmul.mubr.bf16.gmra.mxu0 %v252
  %v552 = vpop.f32.mrf.mxu0
  %v553 = vadd.f32 %v100, %v552
  %v554 = vpop.f32.mrf.mxu0
  %v555 = vpop.f32.mrf.mxu0
  %v556 = vadd.f32 %v100, %v555
  %v557 = vpop.f32.mrf.mxu0
  %558 = vmatprep.mubr.bf16.mxu0 0
  %559 = vmatmul.mubr.bf16.gmra.mxu0 %v253
  %v560 = vpop.f32.mrf.mxu0
  %v561 = vadd.f32 %v100, %v560
  %v562 = vpop.f32.mrf.mxu0
  %v563 = vpop.f32.mrf.mxu0
  %v564 = vadd.f32 %v100, %v563
  %v565 = vpop.f32.mrf.mxu0
  %566 = vmatprep.mubr.bf16.mxu0 0
  %567 = vmatmul.mubr.bf16.gmra.mxu0 %v254
  %v568 = vpop.f32.mrf.mxu0
  %v569 = vadd.f32 %v100, %v568
  %v570 = vpop.f32.mrf.mxu0
  %v571 = vpop.f32.mrf.mxu0
  %v572 = vadd.f32 %v100, %v571
  %v573 = vpop.f32.mrf.mxu0
  %574 = vmatprep.mubr.bf16.mxu0 0
  %575 = vmatmul.mubr.bf16.gmra.mxu0 %v255
  %v576 = vpop.f32.mrf.mxu0
  %v577 = vadd.f32 %v100, %v576
  %v578 = vpop.f32.mrf.mxu0
  %v579 = vpop.f32.mrf.mxu0
  %v580 = vadd.f32 %v100, %v579
  %v581 = vpop.f32.mrf.mxu0
  %582 = vmatprep.mubr.bf16.mxu0 0
  %583 = vmatmul.mubr.bf16.gmra.mxu0 %v256
  %v584 = vpop.f32.mrf.mxu0
  %v585 = vadd.f32 %v100, %v584
  %v586 = vpop.f32.mrf.mxu0
  %v587 = vpop.f32.mrf.mxu0
  %v588 = vadd.f32 %v100, %v587
  %v589 = vpop.f32.mrf.mxu0
  %590 = vmatprep.mubr.bf16.mxu0 0
  %591 = vmatmul.mubr.bf16.gmra.mxu0 %v257
  %v592 = vpop.f32.mrf.mxu0
  %v593 = vadd.f32 %v100, %v592
  %v594 = vpop.f32.mrf.mxu0
  %v595 = vpop.f32.mrf.mxu0
  %v596 = vadd.f32 %v100, %v595
  %v597 = vpop.f32.mrf.mxu0
  %598 = vmatprep.mubr.bf16.mxu0 0
  %599 = vmatmul.mubr.bf16.gmra.mxu0 %v258
  %v600 = vpop.f32.mrf.mxu0
  %v601 = vadd.f32 %v100, %v600
  %v602 = vpop.f32.mrf.mxu0
  %v603 = vpop.f32.mrf.mxu0
  %v604 = vadd.f32 %v100, %v603
  %v605 = vpop.f32.mrf.mxu0
  %606 = vmatprep.mubr.bf16.mxu0 0
  %607 = vmatmul.mubr.bf16.gmra.mxu0 %v259
  %v608 = vpop.f32.mrf.mxu0
  %v609 = vadd.f32 %v100, %v608
  %v610 = vpop.f32.mrf.mxu0
  %v611 = vpop.f32.mrf.mxu0
  %v612 = vadd.f32 %v100, %v611
  %v613 = vpop.f32.mrf.mxu0
  %614 = vmatprep.mubr.bf16.mxu0 0
  %615 = vmatmul.mubr.bf16.gmra.mxu0 %v260
  %v616 = vpop.f32.mrf.mxu0
  %v617 = vadd.f32 %v100, %v616
  %v618 = vpop.f32.mrf.mxu0
  %v619 = vpop.f32.mrf.mxu0
  %v620 = vadd.f32 %v100, %v619
  %v621 = vpop.f32.mrf.mxu0
  %622 = vmatprep.mubr.bf16.mxu0 0
  %623 = vmatmul.mubr.bf16.gmra.mxu0 %v261
  %v624 = vpop.f32.mrf.mxu0
  %v625 = vadd.f32 %v100, %v624
  %v626 = vpop.f32.mrf.mxu0
  %v627 = vpop.f32.mrf.mxu0
  %v628 = vadd.f32 %v100, %v627
  %v629 = vpop.f32.mrf.mxu0
  %630 = vdwg.mxu0
  %v631 = vmax.f32 %v377, 0.0
  %v632 = vmax.f32 %v380, 0.0
  %v633 = vmax.f32 %v385, 0.0
  %v634 = vmax.f32 %v388, 0.0
  %v635 = vmax.f32 %v393, 0.0
  %v636 = vmax.f32 %v396, 0.0
  %v637 = vmax.f32 %v401, 0.0
  %v638 = vmax.f32 %v404, 0.0
  %v639 = vmax.f32 %v409, 0.0
  %v640 = vmax.f32 %v412, 0.0
  %v641 = vmax.f32 %v417, 0.0
  %v642 = vmax.f32 %v420, 0.0
  %v643 = vmax.f32 %v425, 0.0
  %v644 = vmax.f32 %v428, 0.0
  %v645 = vmax.f32 %v433, 0.0
  %v646 = vmax.f32 %v436, 0.0
  %v647 = vmax.f32 %v441, 0.0
  %v648 = vmax.f32 %v444, 0.0
  %v649 = vmax.f32 %v449, 0.0
  %v650 = vmax.f32 %v452, 0.0
  %v651 = vmax.f32 %v457, 0.0
  %v652 = vmax.f32 %v460, 0.0
  %v653 = vmax.f32 %v465, 0.0
  %v654 = vmax.f32 %v468, 0.0
  %v655 = vmax.f32 %v473, 0.0
  %v656 = vmax.f32 %v476, 0.0
  %v657 = vmax.f32 %v481, 0.0
  %v658 = vmax.f32 %v484, 0.0
  %v659 = vmax.f32 %v489, 0.0
  %v660 = vmax.f32 %v492, 0.0
  %v661 = vmax.f32 %v497, 0.0
  %v662 = vmax.f32 %v500, 0.0
  %v663 = vmax.f32 %v505, 0.0
  %v664 = vmax.f32 %v508, 0.0
  %v665 = vmax.f32 %v513, 0.0
  %v666 = vmax.f32 %v516, 0.0
  %v667 = vmax.f32 %v521, 0.0
  %v668 = vmax.f32 %v524, 0.0
  %v669 = vmax.f32 %v529, 0.0
  %v670 = vmax.f32 %v532, 0.0
  %v671 = vmax.f32 %v537, 0.0
  %v672 = vmax.f32 %v540, 0.0
  %v673 = vmax.f32 %v545, 0.0
  %v674 = vmax.f32 %v548, 0.0
  %v675 = vmax.f32 %v553, 0.0
  %v676 = vmax.f32 %v556, 0.0
  %v677 = vmax.f32 %v561, 0.0
  %v678 = vmax.f32 %v564, 0.0
  %v679 = vmax.f32 %v569, 0.0
  %v680 = vmax.f32 %v572, 0.0
  %v681 = vmax.f32 %v577, 0.0
  %v682 = vmax.f32 %v580, 0.0
  %v683 = vmax.f32 %v585, 0.0
  %v684 = vmax.f32 %v588, 0.0
  %v685 = vmax.f32 %v593, 0.0
  %v686 = vmax.f32 %v596, 0.0
  %v687 = vmax.f32 %v601, 0.0
  %v688 = vmax.f32 %v604, 0.0
  %v689 = vmax.f32 %v609, 0.0
  %v690 = vmax.f32 %v612, 0.0
  %v691 = vmax.f32 %v617, 0.0
  %v692 = vmax.f32 %v620, 0.0
  %v693 = vmax.f32 %v625, 0.0
  %v694 = vmax.f32 %v628, 0.0
  %v695 = vpack.c.bf16 %v632, %v631
  %v696 = vpack.c.bf16 %v634, %v633
  %v697 = vpack.c.bf16 %v636, %v635
  %v698 = vpack.c.bf16 %v638, %v637
  %v699 = vpack.c.bf16 %v640, %v639
  %v700 = vpack.c.bf16 %v642, %v641
  %v701 = vpack.c.bf16 %v644, %v643
  %v702 = vpack.c.bf16 %v646, %v645
  %v703 = vpack.c.bf16 %v648, %v647
  %v704 = vpack.c.bf16 %v650, %v649
  %v705 = vpack.c.bf16 %v652, %v651
  %v706 = vpack.c.bf16 %v654, %v653
  %v707 = vpack.c.bf16 %v656, %v655
  %v708 = vpack.c.bf16 %v658, %v657
  %v709 = vpack.c.bf16 %v660, %v659
  %v710 = vpack.c.bf16 %v662, %v661
  %v711 = vpack.c.bf16 %v664, %v663
  %v712 = vpack.c.bf16 %v666, %v665
  %v713 = vpack.c.bf16 %v668, %v667
  %v714 = vpack.c.bf16 %v670, %v669
  %v715 = vpack.c.bf16 %v672, %v671
  %v716 = vpack.c.bf16 %v674, %v673
  %v717 = vpack.c.bf16 %v676, %v675
  %v718 = vpack.c.bf16 %v678, %v677
  %v719 = vpack.c.bf16 %v680, %v679
  %v720 = vpack.c.bf16 %v682, %v681
  %v721 = vpack.c.bf16 %v684, %v683
  %v722 = vpack.c.bf16 %v686, %v685
  %v723 = vpack.c.bf16 %v688, %v687
  %v724 = vpack.c.bf16 %v690, %v689
  %v725 = vpack.c.bf16 %v692, %v691
  %v726 = vpack.c.bf16 %v694, %v693
  %v759 = vunpack.c.l.b16 %v695
  %v760 = vunpack.c.h.b16 %v695
  %v761 = vunpack.c.l.b16 %v696
  %v762 = vunpack.c.h.b16 %v696
  %v763 = vunpack.c.l.b16 %v697
  %v764 = vunpack.c.h.b16 %v697
  %v765 = vunpack.c.l.b16 %v698
  %v766 = vunpack.c.h.b16 %v698
  %v767 = vunpack.c.l.b16 %v699
  %v768 = vunpack.c.h.b16 %v699
  %v769 = vunpack.c.l.b16 %v700
  %v770 = vunpack.c.h.b16 %v700
  %v771 = vunpack.c.l.b16 %v701
  %v772 = vunpack.c.h.b16 %v701
  %v773 = vunpack.c.l.b16 %v702
  %v774 = vunpack.c.h.b16 %v702
  %v775 = vunpack.c.l.b16 %v703
  %v776 = vunpack.c.h.b16 %v703
  %v777 = vunpack.c.l.b16 %v704
  %v778 = vunpack.c.h.b16 %v704
  %v779 = vunpack.c.l.b16 %v705
  %v780 = vunpack.c.h.b16 %v705
  %v781 = vunpack.c.l.b16 %v706
  %v782 = vunpack.c.h.b16 %v706
  %v783 = vunpack.c.l.b16 %v707
  %v784 = vunpack.c.h.b16 %v707
  %v785 = vunpack.c.l.b16 %v708
  %v786 = vunpack.c.h.b16 %v708
  %v787 = vunpack.c.l.b16 %v709
  %v788 = vunpack.c.h.b16 %v709
  %v789 = vunpack.c.l.b16 %v710
  %v790 = vunpack.c.h.b16 %v710
  %v791 = vunpack.c.l.b16 %v711
  %v792 = vunpack.c.h.b16 %v711
  %v793 = vunpack.c.l.b16 %v712
  %v794 = vunpack.c.h.b16 %v712
  %v795 = vunpack.c.l.b16 %v713
  %v796 = vunpack.c.h.b16 %v713
  %v797 = vunpack.c.l.b16 %v714
  %v798 = vunpack.c.h.b16 %v714
  %v799 = vunpack.c.l.b16 %v715
  %v800 = vunpack.c.h.b16 %v715
  %v801 = vunpack.c.l.b16 %v716
  %v802 = vunpack.c.h.b16 %v716
  %v803 = vunpack.c.l.b16 %v717
  %v804 = vunpack.c.h.b16 %v717
  %v805 = vunpack.c.l.b16 %v718
  %v806 = vunpack.c.h.b16 %v718
  %v807 = vunpack.c.l.b16 %v719
  %v808 = vunpack.c.h.b16 %v719
  %v809 = vunpack.c.l.b16 %v720
  %v810 = vunpack.c.h.b16 %v720
  %v811 = vunpack.c.l.b16 %v721
  %v812 = vunpack.c.h.b16 %v721
  %v813 = vunpack.c.l.b16 %v722
  %v814 = vunpack.c.h.b16 %v722
  %v815 = vunpack.c.l.b16 %v723
  %v816 = vunpack.c.h.b16 %v723
  %v817 = vunpack.c.l.b16 %v724
  %v818 = vunpack.c.h.b16 %v724
  %v819 = vunpack.c.l.b16 %v725
  %v820 = vunpack.c.h.b16 %v725
  %v821 = vunpack.c.l.b16 %v726
  %v822 = vunpack.c.h.b16 %v726
  %v823 = vpack.c.b16 %v759, %v759
  %v824 = vpack.c.b16 %v760, %v760
  %v825 = vpack.c.b16 %v761, %v761
  %v826 = vpack.c.b16 %v762, %v762
  %v827 = vpack.c.b16 %v763, %v763
  %v828 = vpack.c.b16 %v764, %v764
  %v829 = vpack.c.b16 %v765, %v765
  %v830 = vpack.c.b16 %v766, %v766
  %v831 = vpack.c.b16 %v767, %v767
  %v832 = vpack.c.b16 %v768, %v768
  %v833 = vpack.c.b16 %v769, %v769
  %v834 = vpack.c.b16 %v770, %v770
  %v835 = vpack.c.b16 %v771, %v771
  %v836 = vpack.c.b16 %v772, %v772
  %v837 = vpack.c.b16 %v773, %v773
  %v838 = vpack.c.b16 %v774, %v774
  %v839 = vpack.c.b16 %v775, %v775
  %v840 = vpack.c.b16 %v776, %v776
  %v841 = vpack.c.b16 %v777, %v777
  %v842 = vpack.c.b16 %v778, %v778
  %v843 = vpack.c.b16 %v779, %v779
  %v844 = vpack.c.b16 %v780, %v780
  %v845 = vpack.c.b16 %v781, %v781
  %v846 = vpack.c.b16 %v782, %v782
  %v847 = vpack.c.b16 %v783, %v783
  %v848 = vpack.c.b16 %v784, %v784
  %v849 = vpack.c.b16 %v785, %v785
  %v850 = vpack.c.b16 %v786, %v786
  %v851 = vpack.c.b16 %v787, %v787
  %v852 = vpack.c.b16 %v788, %v788
  %v853 = vpack.c.b16 %v789, %v789
  %v854 = vpack.c.b16 %v790, %v790
  %v855 = vpack.c.b16 %v791, %v791
  %v856 = vpack.c.b16 %v792, %v792
  %v857 = vpack.c.b16 %v793, %v793
  %v858 = vpack.c.b16 %v794, %v794
  %v859 = vpack.c.b16 %v795, %v795
  %v860 = vpack.c.b16 %v796, %v796
  %v861 = vpack.c.b16 %v797, %v797
  %v862 = vpack.c.b16 %v798, %v798
  %v863 = vpack.c.b16 %v799, %v799
  %v864 = vpack.c.b16 %v800, %v800
  %v865 = vpack.c.b16 %v801, %v801
  %v866 = vpack.c.b16 %v802, %v802
  %v867 = vpack.c.b16 %v803, %v803
  %v868 = vpack.c.b16 %v804, %v804
  %v869 = vpack.c.b16 %v805, %v805
  %v870 = vpack.c.b16 %v806, %v806
  %v871 = vpack.c.b16 %v807, %v807
  %v872 = vpack.c.b16 %v808, %v808
  %v873 = vpack.c.b16 %v809, %v809
  %v874 = vpack.c.b16 %v810, %v810
  %v875 = vpack.c.b16 %v811, %v811
  %v876 = vpack.c.b16 %v812, %v812
  %v877 = vpack.c.b16 %v813, %v813
  %v878 = vpack.c.b16 %v814, %v814
  %v879 = vpack.c.b16 %v815, %v815
  %v880 = vpack.c.b16 %v816, %v816
  %v881 = vpack.c.b16 %v817, %v817
  %v882 = vpack.c.b16 %v818, %v818
  %v883 = vpack.c.b16 %v819, %v819
  %v884 = vpack.c.b16 %v820, %v820
  %v885 = vpack.c.b16 %v821, %v821
  %v886 = vpack.c.b16 %v822, %v822
  %951 = vst [vmem:[%s3] sm:$0xf] %v823
  %952 = vst [vmem:[%s3 + $0x4] sm:$0xf] %v824
  %953 = vst [vmem:[%s3 + $0x8] sm:$0xf] %v825
  %954 = vst [vmem:[%s3 + $0xc] sm:$0xf] %v826
  %955 = vst [vmem:[%s3 + $0x10] sm:$0xf] %v827
  %956 = vst [vmem:[%s3 + $0x14] sm:$0xf] %v828
  %957 = vst [vmem:[%s3 + $0x18] sm:$0xf] %v829
  %958 = vst [vmem:[%s3 + $0x1c] sm:$0xf] %v830
  %959 = vst [vmem:[%s3 + $0x20] sm:$0xf] %v831
  %960 = vst [vmem:[%s3 + $0x24] sm:$0xf] %v832
  %961 = vst [vmem:[%s3 + $0x28] sm:$0xf] %v833
  %962 = vst [vmem:[%s3 + $0x2c] sm:$0xf] %v834
  %963 = vst [vmem:[%s3 + $0x30] sm:$0xf] %v835
  %964 = vst [vmem:[%s3 + $0x34] sm:$0xf] %v836
  %965 = vst [vmem:[%s3 + $0x38] sm:$0xf] %v837
  %966 = vst [vmem:[%s3 + $0x3c] sm:$0xf] %v838
  %967 = vst [vmem:[%s3 + $0x40] sm:$0xf] %v839
  %968 = vst [vmem:[%s3 + $0x44] sm:$0xf] %v840
  %969 = vst [vmem:[%s3 + $0x48] sm:$0xf] %v841
  %970 = vst [vmem:[%s3 + $0x4c] sm:$0xf] %v842
  %971 = vst [vmem:[%s3 + $0x50] sm:$0xf] %v843
  %972 = vst [vmem:[%s3 + $0x54] sm:$0xf] %v844
  %973 = vst [vmem:[%s3 + $0x58] sm:$0xf] %v845
  %974 = vst [vmem:[%s3 + $0x5c] sm:$0xf] %v846
  %975 = vst [vmem:[%s3 + $0x60] sm:$0xf] %v847
  %976 = vst [vmem:[%s3 + $0x64] sm:$0xf] %v848
  %977 = vst [vmem:[%s3 + $0x68] sm:$0xf] %v849
  %978 = vst [vmem:[%s3 + $0x6c] sm:$0xf] %v850
  %979 = vst [vmem:[%s3 + $0x70] sm:$0xf] %v851
  %980 = vst [vmem:[%s3 + $0x74] sm:$0xf] %v852
  %981 = vst [vmem:[%s3 + $0x78] sm:$0xf] %v853
  %982 = vst [vmem:[%s3 + $0x7c] sm:$0xf] %v854
  %983 = vst [vmem:[%s3 + $0x80] sm:$0xf] %v855
  %984 = vst [vmem:[%s3 + $0x84] sm:$0xf] %v856
  %985 = vst [vmem:[%s3 + $0x88] sm:$0xf] %v857
  %986 = vst [vmem:[%s3 + $0x8c] sm:$0xf] %v858
  %987 = vst [vmem:[%s3 + $0x90] sm:$0xf] %v859
  %988 = vst [vmem:[%s3 + $0x94] sm:$0xf] %v860
  %989 = vst [vmem:[%s3 + $0x98] sm:$0xf] %v861
  %990 = vst [vmem:[%s3 + $0x9c] sm:$0xf] %v862
  %991 = vst [vmem:[%s3 + $0xa0] sm:$0xf] %v863
  %992 = vst [vmem:[%s3 + $0xa4] sm:$0xf] %v864
  %993 = vst [vmem:[%s3 + $0xa8] sm:$0xf] %v865
  %994 = vst [vmem:[%s3 + $0xac] sm:$0xf] %v866
  %995 = vst [vmem:[%s3 + $0xb0] sm:$0xf] %v867
  %996 = vst [vmem:[%s3 + $0xb4] sm:$0xf] %v868
  %997 = vst [vmem:[%s3 + $0xb8] sm:$0xf] %v869
  %998 = vst [vmem:[%s3 + $0xbc] sm:$0xf] %v870
  %999 = vst [vmem:[%s3 + $0xc0] sm:$0xf] %v871
  %1000 = vst [vmem:[%s3 + $0xc4] sm:$0xf] %v872
  %1001 = vst [vmem:[%s3 + $0xc8] sm:$0xf] %v873
  %1002 = vst [vmem:[%s3 + $0xcc] sm:$0xf] %v874
  %1003 = vst [vmem:[%s3 + $0xd0] sm:$0xf] %v875
  %1004 = vst [vmem:[%s3 + $0xd4] sm:$0xf] %v876
  %1005 = vst [vmem:[%s3 + $0xd8] sm:$0xf] %v877
  %1006 = vst [vmem:[%s3 + $0xdc] sm:$0xf] %v878
  %1007 = vst [vmem:[%s3 + $0xe0] sm:$0xf] %v879
  %1008 = vst [vmem:[%s3 + $0xe4] sm:$0xf] %v880
  %1009 = vst [vmem:[%s3 + $0xe8] sm:$0xf] %v881
  %1010 = vst [vmem:[%s3 + $0xec] sm:$0xf] %v882
  %1011 = vst [vmem:[%s3 + $0xf0] sm:$0xf] %v883
  %1012 = vst [vmem:[%s3 + $0xf4] sm:$0xf] %v884
  %1013 = vst [vmem:[%s3 + $0xf8] sm:$0xf] %v885
  %1014 = vst [vmem:[%s3 + $0xfc] sm:$0xf] %v886
  // Predicated region
  $region14: #{bottleneck_forward.3} parent=0 // pred_check
    _
  $region15: #{bottleneck_forward.3} parent=0 // pred_check_branch
    %1016 = sbr.rel (0) target = $region17
  $region16: #{bottleneck_forward.3} parent=0 // pred_region
    _
  $region17: #{bottleneck_forward.3} parent=0 // pred_fallthru
    _
  // Predicated region
  $region18: #{bottleneck_forward.3} parent=0 // pred_check
    _
  $region19: #{bottleneck_forward.3} parent=0 // pred_check_branch
    %1018 = sbr.rel (0) target = $region21
  $region20: #{bottleneck_forward.3} parent=0 // pred_region
    _
  $region21: #{bottleneck_forward.3} parent=0 // pred_fallthru
    _

// kernel: bottleneck_forward.5
$region0: #{bottleneck_forward.5}
  #allocation0 [shape = 'u32[]', space=smem, size = 0x4, offset = 0x4, fixed_abs, tag = 'smem constant byte address 0x4 - core index']
  #allocation1 [shape = 'u32[144,128]{1,0:T(1,128)}', space=vmem, size = 0x12000, scoped, tag = 'internal scratch']
  %s0 = inlined_call_operand.vmem [shape: bf16[512,128], index: 0, kind: input, shape index: {}]
  %s1 = inlined_call_operand.vmem [shape: bf16[512,128], index: 1, kind: input, shape index: {}]
  %s2 = inlined_call_operand.vmem [shape: bf16[128,128], index: 2, kind: input, shape index: {}]
  %s3 = inlined_call_operand.vmem [shape: bf16[128,128], index: 3, kind: input, shape index: {}]
  %s4 = inlined_call_operand.vmem [shape: f32[1,128], index: 4, kind: input, shape index: {}]
  %s5 = inlined_call_operand.vmem [shape: f32[512,128], index: 5, kind: output, shape index: {}]
  %s6 = sld [smem:[#allocation0]]
  $region30: #{bottleneck_forward.5} parent=0
    _
  %s8 = ssub.s32 1, %s6
  %s9 = scalar_select 0, %s8, %s6
  // Predicated region
  $region2: #{bottleneck_forward.5} parent=0 // pred_check
    _
  $region3: #{bottleneck_forward.5} parent=0 // pred_check_branch
    %11 = sbr.rel (0) target = $region5
  $region4: #{bottleneck_forward.5} parent=0 // pred_region
    _
  $region5: #{bottleneck_forward.5} parent=0 // pred_fallthru
    _
  // Predicated region
  $region6: #{bottleneck_forward.5} parent=0 // pred_check
    _
  $region7: #{bottleneck_forward.5} parent=0 // pred_check_branch
    %13 = sbr.rel (0) target = $region9
  $region8: #{bottleneck_forward.5} parent=0 // pred_region
    _
  $region9: #{bottleneck_forward.5} parent=0 // pred_fallthru
    _
  // Predicated region
  $region10: #{bottleneck_forward.5} parent=0 // pred_check
    _
  $region11: #{bottleneck_forward.5} parent=0 // pred_check_branch
    %15 = sbr.rel (0) target = $region13
  $region12: #{bottleneck_forward.5} parent=0 // pred_region
    _
  $region13: #{bottleneck_forward.5} parent=0 // pred_fallthru
    _
  // Predicated region
  $region14: #{bottleneck_forward.5} parent=0 // pred_check
    _
  $region15: #{bottleneck_forward.5} parent=0 // pred_check_branch
    %17 = sbr.rel (0) target = $region17
  $region16: #{bottleneck_forward.5} parent=0 // pred_region
    _
  $region17: #{bottleneck_forward.5} parent=0 // pred_fallthru
    _
  // Predicated region
  $region18: #{bottleneck_forward.5} parent=0 // pred_check
    _
  $region19: #{bottleneck_forward.5} parent=0 // pred_check_branch
    %19 = sbr.rel (0) target = $region21
  $region20: #{bottleneck_forward.5} parent=0 // pred_region
    _
  $region21: #{bottleneck_forward.5} parent=0 // pred_fallthru
    _
  %v21 = vld [vmem:[%s0] sm:$0xf]
  %v22 = vld [vmem:[%s0 + $0x4] sm:$0xf]
  %v23 = vld [vmem:[%s0 + $0x8] sm:$0xf]
  %v24 = vld [vmem:[%s0 + $0xc] sm:$0xf]
  %v25 = vld [vmem:[%s0 + $0x10] sm:$0xf]
  %v26 = vld [vmem:[%s0 + $0x14] sm:$0xf]
  %v27 = vld [vmem:[%s0 + $0x18] sm:$0xf]
  %v28 = vld [vmem:[%s0 + $0x1c] sm:$0xf]
  %v29 = vld [vmem:[%s0 + $0x20] sm:$0xf]
  %v30 = vld [vmem:[%s0 + $0x24] sm:$0xf]
  %v31 = vld [vmem:[%s0 + $0x28] sm:$0xf]
  %v32 = vld [vmem:[%s0 + $0x2c] sm:$0xf]
  %v33 = vld [vmem:[%s0 + $0x30] sm:$0xf]
  %v34 = vld [vmem:[%s0 + $0x34] sm:$0xf]
  %v35 = vld [vmem:[%s0 + $0x38] sm:$0xf]
  %v36 = vld [vmem:[%s0 + $0x3c] sm:$0xf]
  %v37 = vld [vmem:[%s0 + $0x40] sm:$0xf]
  %v38 = vld [vmem:[%s0 + $0x44] sm:$0xf]
  %v39 = vld [vmem:[%s0 + $0x48] sm:$0xf]
  %v40 = vld [vmem:[%s0 + $0x4c] sm:$0xf]
  %v41 = vld [vmem:[%s0 + $0x50] sm:$0xf]
  %v42 = vld [vmem:[%s0 + $0x54] sm:$0xf]
  %v43 = vld [vmem:[%s0 + $0x58] sm:$0xf]
  %v44 = vld [vmem:[%s0 + $0x5c] sm:$0xf]
  %v45 = vld [vmem:[%s0 + $0x60] sm:$0xf]
  %v46 = vld [vmem:[%s0 + $0x64] sm:$0xf]
  %v47 = vld [vmem:[%s0 + $0x68] sm:$0xf]
  %v48 = vld [vmem:[%s0 + $0x6c] sm:$0xf]
  %v49 = vld [vmem:[%s0 + $0x70] sm:$0xf]
  %v50 = vld [vmem:[%s0 + $0x74] sm:$0xf]
  %v51 = vld [vmem:[%s0 + $0x78] sm:$0xf]
  %v52 = vld [vmem:[%s0 + $0x7c] sm:$0xf]
  %v53 = vld [vmem:[%s0 + $0x80] sm:$0xf]
  %v54 = vld [vmem:[%s0 + $0x84] sm:$0xf]
  %v55 = vld [vmem:[%s0 + $0x88] sm:$0xf]
  %v56 = vld [vmem:[%s0 + $0x8c] sm:$0xf]
  %v57 = vld [vmem:[%s0 + $0x90] sm:$0xf]
  %v58 = vld [vmem:[%s0 + $0x94] sm:$0xf]
  %v59 = vld [vmem:[%s0 + $0x98] sm:$0xf]
  %v60 = vld [vmem:[%s0 + $0x9c] sm:$0xf]
  %v61 = vld [vmem:[%s0 + $0xa0] sm:$0xf]
  %v62 = vld [vmem:[%s0 + $0xa4] sm:$0xf]
  %v63 = vld [vmem:[%s0 + $0xa8] sm:$0xf]
  %v64 = vld [vmem:[%s0 + $0xac] sm:$0xf]
  %v65 = vld [vmem:[%s0 + $0xb0] sm:$0xf]
  %v66 = vld [vmem:[%s0 + $0xb4] sm:$0xf]
  %v67 = vld [vmem:[%s0 + $0xb8] sm:$0xf]
  %v68 = vld [vmem:[%s0 + $0xbc] sm:$0xf]
  %v69 = vld [vmem:[%s0 + $0xc0] sm:$0xf]
  %v70 = vld [vmem:[%s0 + $0xc4] sm:$0xf]
  %v71 = vld [vmem:[%s0 + $0xc8] sm:$0xf]
  %v72 = vld [vmem:[%s0 + $0xcc] sm:$0xf]
  %v73 = vld [vmem:[%s0 + $0xd0] sm:$0xf]
  %v74 = vld [vmem:[%s0 + $0xd4] sm:$0xf]
  %v75 = vld [vmem:[%s0 + $0xd8] sm:$0xf]
  %v76 = vld [vmem:[%s0 + $0xdc] sm:$0xf]
  %v77 = vld [vmem:[%s0 + $0xe0] sm:$0xf]
  %v78 = vld [vmem:[%s0 + $0xe4] sm:$0xf]
  %v79 = vld [vmem:[%s0 + $0xe8] sm:$0xf]
  %v80 = vld [vmem:[%s0 + $0xec] sm:$0xf]
  %v81 = vld [vmem:[%s0 + $0xf0] sm:$0xf]
  %v82 = vld [vmem:[%s0 + $0xf4] sm:$0xf]
  %v83 = vld [vmem:[%s0 + $0xf8] sm:$0xf]
  %v84 = vld [vmem:[%s0 + $0xfc] sm:$0xf]
  %v85 = vld [vmem:[%s2] sm:$0xf]
  %v86 = vld [vmem:[%s2 + $0x4] sm:$0xf]
  %v87 = vld [vmem:[%s2 + $0x8] sm:$0xf]
  %v88 = vld [vmem:[%s2 + $0xc] sm:$0xf]
  %v89 = vld [vmem:[%s2 + $0x10] sm:$0xf]
  %v90 = vld [vmem:[%s2 + $0x14] sm:$0xf]
  %v91 = vld [vmem:[%s2 + $0x18] sm:$0xf]
  %v92 = vld [vmem:[%s2 + $0x1c] sm:$0xf]
  %v93 = vld [vmem:[%s2 + $0x20] sm:$0xf]
  %v94 = vld [vmem:[%s2 + $0x24] sm:$0xf]
  %v95 = vld [vmem:[%s2 + $0x28] sm:$0xf]
  %v96 = vld [vmem:[%s2 + $0x2c] sm:$0xf]
  %v97 = vld [vmem:[%s2 + $0x30] sm:$0xf]
  %v98 = vld [vmem:[%s2 + $0x34] sm:$0xf]
  %v99 = vld [vmem:[%s2 + $0x38] sm:$0xf]
  %v100 = vld [vmem:[%s2 + $0x3c] sm:$0xf]
  %v101 = vld [vmem:[%s1] sm:$0xf]
  %v102 = vld [vmem:[%s1 + $0x4] sm:$0xf]
  %v103 = vld [vmem:[%s1 + $0x8] sm:$0xf]
  %v104 = vld [vmem:[%s1 + $0xc] sm:$0xf]
  %v105 = vld [vmem:[%s1 + $0x10] sm:$0xf]
  %v106 = vld [vmem:[%s1 + $0x14] sm:$0xf]
  %v107 = vld [vmem:[%s1 + $0x18] sm:$0xf]
  %v108 = vld [vmem:[%s1 + $0x1c] sm:$0xf]
  %v109 = vld [vmem:[%s1 + $0x20] sm:$0xf]
  %v110 = vld [vmem:[%s1 + $0x24] sm:$0xf]
  %v111 = vld [vmem:[%s1 + $0x28] sm:$0xf]
  %v112 = vld [vmem:[%s1 + $0x2c] sm:$0xf]
  %v113 = vld [vmem:[%s1 + $0x30] sm:$0xf]
  %v114 = vld [vmem:[%s1 + $0x34] sm:$0xf]
  %v115 = vld [vmem:[%s1 + $0x38] sm:$0xf]
  %v116 = vld [vmem:[%s1 + $0x3c] sm:$0xf]
  %v117 = vld [vmem:[%s1 + $0x40] sm:$0xf]
  %v118 = vld [vmem:[%s1 + $0x44] sm:$0xf]
  %v119 = vld [vmem:[%s1 + $0x48] sm:$0xf]
  %v120 = vld [vmem:[%s1 + $0x4c] sm:$0xf]
  %v121 = vld [vmem:[%s1 + $0x50] sm:$0xf]
  %v122 = vld [vmem:[%s1 + $0x54] sm:$0xf]
  %v123 = vld [vmem:[%s1 + $0x58] sm:$0xf]
  %v124 = vld [vmem:[%s1 + $0x5c] sm:$0xf]
  %v125 = vld [vmem:[%s1 + $0x60] sm:$0xf]
  %v126 = vld [vmem:[%s1 + $0x64] sm:$0xf]
  %v127 = vld [vmem:[%s1 + $0x68] sm:$0xf]
  %v128 = vld [vmem:[%s1 + $0x6c] sm:$0xf]
  %v129 = vld [vmem:[%s1 + $0x70] sm:$0xf]
  %v130 = vld [vmem:[%s1 + $0x74] sm:$0xf]
  %v131 = vld [vmem:[%s1 + $0x78] sm:$0xf]
  %v132 = vld [vmem:[%s1 + $0x7c] sm:$0xf]
  %v133 = vld [vmem:[%s1 + $0x80] sm:$0xf]
  %v134 = vld [vmem:[%s1 + $0x84] sm:$0xf]
  %v135 = vld [vmem:[%s1 + $0x88] sm:$0xf]
  %v136 = vld [vmem:[%s1 + $0x8c] sm:$0xf]
  %v137 = vld [vmem:[%s1 + $0x90] sm:$0xf]
  %v138 = vld [vmem:[%s1 + $0x94] sm:$0xf]
  %v139 = vld [vmem:[%s1 + $0x98] sm:$0xf]
  %v140 = vld [vmem:[%s1 + $0x9c] sm:$0xf]
  %v141 = vld [vmem:[%s1 + $0xa0] sm:$0xf]
  %v142 = vld [vmem:[%s1 + $0xa4] sm:$0xf]
  %v143 = vld [vmem:[%s1 + $0xa8] sm:$0xf]
  %v144 = vld [vmem:[%s1 + $0xac] sm:$0xf]
  %v145 = vld [vmem:[%s1 + $0xb0] sm:$0xf]
  %v146 = vld [vmem:[%s1 + $0xb4] sm:$0xf]
  %v147 = vld [vmem:[%s1 + $0xb8] sm:$0xf]
  %v148 = vld [vmem:[%s1 + $0xbc] sm:$0xf]
  %v149 = vld [vmem:[%s1 + $0xc0] sm:$0xf]
  %v150 = vld [vmem:[%s1 + $0xc4] sm:$0xf]
  %v151 = vld [vmem:[%s1 + $0xc8] sm:$0xf]
  %v152 = vld [vmem:[%s1 + $0xcc] sm:$0xf]
  %v153 = vld [vmem:[%s1 + $0xd0] sm:$0xf]
  %v154 = vld [vmem:[%s1 + $0xd4] sm:$0xf]
  %v155 = vld [vmem:[%s1 + $0xd8] sm:$0xf]
  %v156 = vld [vmem:[%s1 + $0xdc] sm:$0xf]
  %v157 = vld [vmem:[%s1 + $0xe0] sm:$0xf]
  %v158 = vld [vmem:[%s1 + $0xe4] sm:$0xf]
  %v159 = vld [vmem:[%s1 + $0xe8] sm:$0xf]
  %v160 = vld [vmem:[%s1 + $0xec] sm:$0xf]
  %v161 = vld [vmem:[%s1 + $0xf0] sm:$0xf]
  %v162 = vld [vmem:[%s1 + $0xf4] sm:$0xf]
  %v163 = vld [vmem:[%s1 + $0xf8] sm:$0xf]
  %v164 = vld [vmem:[%s1 + $0xfc] sm:$0xf]
  %v165 = vld [vmem:[%s3] sm:$0xf]
  %v166 = vld [vmem:[%s3 + $0x4] sm:$0xf]
  %v167 = vld [vmem:[%s3 + $0x8] sm:$0xf]
  %v168 = vld [vmem:[%s3 + $0xc] sm:$0xf]
  %v169 = vld [vmem:[%s3 + $0x10] sm:$0xf]
  %v170 = vld [vmem:[%s3 + $0x14] sm:$0xf]
  %v171 = vld [vmem:[%s3 + $0x18] sm:$0xf]
  %v172 = vld [vmem:[%s3 + $0x1c] sm:$0xf]
  %v173 = vld [vmem:[%s3 + $0x20] sm:$0xf]
  %v174 = vld [vmem:[%s3 + $0x24] sm:$0xf]
  %v175 = vld [vmem:[%s3 + $0x28] sm:$0xf]
  %v176 = vld [vmem:[%s3 + $0x2c] sm:$0xf]
  %v177 = vld [vmem:[%s3 + $0x30] sm:$0xf]
  %v178 = vld [vmem:[%s3 + $0x34] sm:$0xf]
  %v179 = vld [vmem:[%s3 + $0x38] sm:$0xf]
  %v180 = vld [vmem:[%s3 + $0x3c] sm:$0xf]
  %v245 = vunpack.c.l.b16 %v101
  %v246 = vunpack.c.l.b16 %v102
  %v247 = vunpack.c.l.b16 %v103
  %v248 = vunpack.c.l.b16 %v104
  %v249 = vunpack.c.l.b16 %v105
  %v250 = vunpack.c.l.b16 %v106
  %v251 = vunpack.c.l.b16 %v107
  %v252 = vunpack.c.l.b16 %v108
  %v253 = vunpack.c.l.b16 %v109
  %v254 = vunpack.c.l.b16 %v110
  %v255 = vunpack.c.l.b16 %v111
  %v256 = vunpack.c.l.b16 %v112
  %v257 = vunpack.c.l.b16 %v113
  %v258 = vunpack.c.l.b16 %v114
  %v259 = vunpack.c.l.b16 %v115
  %v260 = vunpack.c.l.b16 %v116
  %v261 = vunpack.c.l.b16 %v117
  %v262 = vunpack.c.l.b16 %v118
  %v263 = vunpack.c.l.b16 %v119
  %v264 = vunpack.c.l.b16 %v120
  %v265 = vunpack.c.l.b16 %v121
  %v266 = vunpack.c.l.b16 %v122
  %v267 = vunpack.c.l.b16 %v123
  %v268 = vunpack.c.l.b16 %v124
  %v269 = vunpack.c.l.b16 %v125
  %v270 = vunpack.c.l.b16 %v126
  %v271 = vunpack.c.l.b16 %v127
  %v272 = vunpack.c.l.b16 %v128
  %v273 = vunpack.c.l.b16 %v129
  %v274 = vunpack.c.l.b16 %v130
  %v275 = vunpack.c.l.b16 %v131
  %v276 = vunpack.c.l.b16 %v132
  %v277 = vunpack.c.l.b16 %v133
  %v278 = vunpack.c.l.b16 %v134
  %v279 = vunpack.c.l.b16 %v135
  %v280 = vunpack.c.l.b16 %v136
  %v281 = vunpack.c.l.b16 %v137
  %v282 = vunpack.c.l.b16 %v138
  %v283 = vunpack.c.l.b16 %v139
  %v284 = vunpack.c.l.b16 %v140
  %v285 = vunpack.c.l.b16 %v141
  %v286 = vunpack.c.l.b16 %v142
  %v287 = vunpack.c.l.b16 %v143
  %v288 = vunpack.c.l.b16 %v144
  %v289 = vunpack.c.l.b16 %v145
  %v290 = vunpack.c.l.b16 %v146
  %v291 = vunpack.c.l.b16 %v147
  %v292 = vunpack.c.l.b16 %v148
  %v293 = vunpack.c.l.b16 %v149
  %v294 = vunpack.c.l.b16 %v150
  %v295 = vunpack.c.l.b16 %v151
  %v296 = vunpack.c.l.b16 %v152
  %v297 = vunpack.c.l.b16 %v153
  %v298 = vunpack.c.l.b16 %v154
  %v299 = vunpack.c.l.b16 %v155
  %v300 = vunpack.c.l.b16 %v156
  %v301 = vunpack.c.l.b16 %v157
  %v302 = vunpack.c.l.b16 %v158
  %v303 = vunpack.c.l.b16 %v159
  %v304 = vunpack.c.l.b16 %v160
  %v305 = vunpack.c.l.b16 %v161
  %v306 = vunpack.c.l.b16 %v162
  %v307 = vunpack.c.l.b16 %v163
  %v308 = vunpack.c.l.b16 %v164
  %v309 = vpack.c.b16 %v246, %v245
  %v310 = vpack.c.b16 %v248, %v247
  %v311 = vpack.c.b16 %v250, %v249
  %v312 = vpack.c.b16 %v252, %v251
  %v313 = vpack.c.b16 %v254, %v253
  %v314 = vpack.c.b16 %v256, %v255
  %v315 = vpack.c.b16 %v258, %v257
  %v316 = vpack.c.b16 %v260, %v259
  %v317 = vpack.c.b16 %v262, %v261
  %v318 = vpack.c.b16 %v264, %v263
  %v319 = vpack.c.b16 %v266, %v265
  %v320 = vpack.c.b16 %v268, %v267
  %v321 = vpack.c.b16 %v270, %v269
  %v322 = vpack.c.b16 %v272, %v271
  %v323 = vpack.c.b16 %v274, %v273
  %v324 = vpack.c.b16 %v276, %v275
  %v325 = vpack.c.b16 %v278, %v277
  %v326 = vpack.c.b16 %v280, %v279
  %v327 = vpack.c.b16 %v282, %v281
  %v328 = vpack.c.b16 %v284, %v283
  %v329 = vpack.c.b16 %v286, %v285
  %v330 = vpack.c.b16 %v288, %v287
  %v331 = vpack.c.b16 %v290, %v289
  %v332 = vpack.c.b16 %v292, %v291
  %v333 = vpack.c.b16 %v294, %v293
  %v334 = vpack.c.b16 %v296, %v295
  %v335 = vpack.c.b16 %v298, %v297
  %v336 = vpack.c.b16 %v300, %v299
  %v337 = vpack.c.b16 %v302, %v301
  %v338 = vpack.c.b16 %v304, %v303
  %v339 = vpack.c.b16 %v306, %v305
  %v340 = vpack.c.b16 %v308, %v307
  %v389 = vunpack.c.l.b16 %v165
  %v390 = vunpack.c.l.b16 %v166
  %v391 = vunpack.c.l.b16 %v167
  %v392 = vunpack.c.l.b16 %v168
  %v393 = vunpack.c.l.b16 %v169
  %v394 = vunpack.c.l.b16 %v170
  %v395 = vunpack.c.l.b16 %v171
  %v396 = vunpack.c.l.b16 %v172
  %v397 = vunpack.c.l.b16 %v173
  %v398 = vunpack.c.l.b16 %v174
  %v399 = vunpack.c.l.b16 %v175
  %v400 = vunpack.c.l.b16 %v176
  %v401 = vunpack.c.l.b16 %v177
  %v402 = vunpack.c.l.b16 %v178
  %v403 = vunpack.c.l.b16 %v179
  %v404 = vunpack.c.l.b16 %v180
  %v405 = vpack.c.b16 %v390, %v389
  %v406 = vpack.c.b16 %v392, %v391
  %v407 = vpack.c.b16 %v394, %v393
  %v408 = vpack.c.b16 %v396, %v395
  %v409 = vpack.c.b16 %v398, %v397
  %v410 = vpack.c.b16 %v400, %v399
  %v411 = vpack.c.b16 %v402, %v401
  %v412 = vpack.c.b16 %v404, %v403
  %421 = vmatprep.subr.bf16.mxu0 0
  %422 = vmatpush1.bf16.msra.mxu0 %v412
  %423 = vmatprep.subr.bf16.mxu0 0
  %424 = vmatpush1.bf16.msra.mxu0 %v411
  %425 = vmatprep.subr.bf16.mxu0 0
  %426 = vmatpush1.bf16.msra.mxu0 %v410
  %427 = vmatprep.subr.bf16.mxu0 0
  %428 = vmatpush1.bf16.msra.mxu0 %v409
  %429 = vmatprep.subr.bf16.mxu0 0
  %430 = vmatpush1.bf16.msra.mxu0 %v408
  %431 = vmatprep.subr.bf16.mxu0 0
  %432 = vmatpush1.bf16.msra.mxu0 %v407
  %433 = vmatprep.subr.bf16.mxu0 0
  %434 = vmatpush1.bf16.msra.mxu0 %v406
  %435 = vmatprep.subr.bf16.mxu0 0
  %436 = vmatpush1.bf16.msra.mxu0 %v405
  %437 = vmatprep.subr.bf16.mxu0 0
  %438 = vmatpush2.bf16.msra.mxu0 0
  %439 = vmatprep.subr.bf16.mxu0 0
  %440 = vmatpush2.bf16.msra.mxu0 0
  %441 = vmatprep.subr.bf16.mxu0 0
  %442 = vmatpush2.bf16.msra.mxu0 0
  %443 = vmatprep.subr.bf16.mxu0 0
  %444 = vmatpush2.bf16.msra.mxu0 0
  %445 = vmatprep.subr.bf16.mxu0 0
  %446 = vmatpush2.bf16.msra.mxu0 0
  %447 = vmatprep.subr.bf16.mxu0 0
  %448 = vmatpush2.bf16.msra.mxu0 0
  %449 = vmatprep.subr.bf16.mxu0 0
  %450 = vmatpush2.bf16.msra.mxu0 0
  %451 = vmatprep.subr.bf16.mxu0 0
  %452 = vmatpush2.bf16.msra.mxu0 0
  %453 = vmatprep.mubr.bf16.mxu0 0
  %454 = vmatmul.mubr.bf16.gmra.mxu0 %v309
  %v455 = vpop.f32.mrf.mxu0
  %v456 = vadd.f32 0.0, %v455
  %v457 = vpop.f32.mrf.mxu0
  %v458 = vpop.f32.mrf.mxu0
  %v459 = vadd.f32 0.0, %v458
  %v460 = vpop.f32.mrf.mxu0
  %461 = vmatprep.mubr.bf16.mxu0 0
  %462 = vmatmul.mubr.bf16.gmra.mxu0 %v310
  %v463 = vpop.f32.mrf.mxu0
  %v464 = vadd.f32 0.0, %v463
  %v465 = vpop.f32.mrf.mxu0
  %v466 = vpop.f32.mrf.mxu0
  %v467 = vadd.f32 0.0, %v466
  %v468 = vpop.f32.mrf.mxu0
  %469 = vmatprep.mubr.bf16.mxu0 0
  %470 = vmatmul.mubr.bf16.gmra.mxu0 %v311
  %v471 = vpop.f32.mrf.mxu0
  %v472 = vadd.f32 0.0, %v471
  %v473 = vpop.f32.mrf.mxu0
  %v474 = vpop.f32.mrf.mxu0
  %v475 = vadd.f32 0.0, %v474
  %v476 = vpop.f32.mrf.mxu0
  %477 = vmatprep.mubr.bf16.mxu0 0
  %478 = vmatmul.mubr.bf16.gmra.mxu0 %v312
  %v479 = vpop.f32.mrf.mxu0
  %v480 = vadd.f32 0.0, %v479
  %v481 = vpop.f32.mrf.mxu0
  %v482 = vpop.f32.mrf.mxu0
  %v483 = vadd.f32 0.0, %v482
  %v484 = vpop.f32.mrf.mxu0
  %485 = vmatprep.mubr.bf16.mxu0 0
  %486 = vmatmul.mubr.bf16.gmra.mxu0 %v313
  %v487 = vpop.f32.mrf.mxu0
  %v488 = vadd.f32 0.0, %v487
  %v489 = vpop.f32.mrf.mxu0
  %v490 = vpop.f32.mrf.mxu0
  %v491 = vadd.f32 0.0, %v490
  %v492 = vpop.f32.mrf.mxu0
  %493 = vmatprep.mubr.bf16.mxu0 0
  %494 = vmatmul.mubr.bf16.gmra.mxu0 %v314
  %v495 = vpop.f32.mrf.mxu0
  %v496 = vadd.f32 0.0, %v495
  %v497 = vpop.f32.mrf.mxu0
  %v498 = vpop.f32.mrf.mxu0
  %v499 = vadd.f32 0.0, %v498
  %v500 = vpop.f32.mrf.mxu0
  %501 = vmatprep.mubr.bf16.mxu0 0
  %502 = vmatmul.mubr.bf16.gmra.mxu0 %v315
  %v503 = vpop.f32.mrf.mxu0
  %v504 = vadd.f32 0.0, %v503
  %v505 = vpop.f32.mrf.mxu0
  %v506 = vpop.f32.mrf.mxu0
  %v507 = vadd.f32 0.0, %v506
  %v508 = vpop.f32.mrf.mxu0
  %509 = vmatprep.mubr.bf16.mxu0 0
  %510 = vmatmul.mubr.bf16.gmra.mxu0 %v316
  %v511 = vpop.f32.mrf.mxu0
  %v512 = vadd.f32 0.0, %v511
  %v513 = vpop.f32.mrf.mxu0
  %v514 = vpop.f32.mrf.mxu0
  %v515 = vadd.f32 0.0, %v514
  %v516 = vpop.f32.mrf.mxu0
  %517 = vmatprep.mubr.bf16.mxu0 0
  %518 = vmatmul.mubr.bf16.gmra.mxu0 %v317
  %v519 = vpop.f32.mrf.mxu0
  %v520 = vadd.f32 0.0, %v519
  %v521 = vpop.f32.mrf.mxu0
  %v522 = vpop.f32.mrf.mxu0
  %v523 = vadd.f32 0.0, %v522
  %v524 = vpop.f32.mrf.mxu0
  %525 = vmatprep.mubr.bf16.mxu0 0
  %526 = vmatmul.mubr.bf16.gmra.mxu0 %v318
  %v527 = vpop.f32.mrf.mxu0
  %v528 = vadd.f32 0.0, %v527
  %v529 = vpop.f32.mrf.mxu0
  %v530 = vpop.f32.mrf.mxu0
  %v531 = vadd.f32 0.0, %v530
  %v532 = vpop.f32.mrf.mxu0
  %533 = vmatprep.mubr.bf16.mxu0 0
  %534 = vmatmul.mubr.bf16.gmra.mxu0 %v319
  %v535 = vpop.f32.mrf.mxu0
  %v536 = vadd.f32 0.0, %v535
  %v537 = vpop.f32.mrf.mxu0
  %v538 = vpop.f32.mrf.mxu0
  %v539 = vadd.f32 0.0, %v538
  %v540 = vpop.f32.mrf.mxu0
  %541 = vmatprep.mubr.bf16.mxu0 0
  %542 = vmatmul.mubr.bf16.gmra.mxu0 %v320
  %v543 = vpop.f32.mrf.mxu0
  %v544 = vadd.f32 0.0, %v543
  %v545 = vpop.f32.mrf.mxu0
  %v546 = vpop.f32.mrf.mxu0
  %v547 = vadd.f32 0.0, %v546
  %v548 = vpop.f32.mrf.mxu0
  %549 = vmatprep.mubr.bf16.mxu0 0
  %550 = vmatmul.mubr.bf16.gmra.mxu0 %v321
  %v551 = vpop.f32.mrf.mxu0
  %v552 = vadd.f32 0.0, %v551
  %v553 = vpop.f32.mrf.mxu0
  %v554 = vpop.f32.mrf.mxu0
  %v555 = vadd.f32 0.0, %v554
  %v556 = vpop.f32.mrf.mxu0
  %557 = vmatprep.mubr.bf16.mxu0 0
  %558 = vmatmul.mubr.bf16.gmra.mxu0 %v322
  %v559 = vpop.f32.mrf.mxu0
  %v560 = vadd.f32 0.0, %v559
  %v561 = vpop.f32.mrf.mxu0
  %v562 = vpop.f32.mrf.mxu0
  %v563 = vadd.f32 0.0, %v562
  %v564 = vpop.f32.mrf.mxu0
  %565 = vmatprep.mubr.bf16.mxu0 0
  %566 = vmatmul.mubr.bf16.gmra.mxu0 %v323
  %v567 = vpop.f32.mrf.mxu0
  %v568 = vadd.f32 0.0, %v567
  %v569 = vpop.f32.mrf.mxu0
  %v570 = vpop.f32.mrf.mxu0
  %v571 = vadd.f32 0.0, %v570
  %v572 = vpop.f32.mrf.mxu0
  %573 = vmatprep.mubr.bf16.mxu0 0
  %574 = vmatmul.mubr.bf16.gmra.mxu0 %v324
  %v575 = vpop.f32.mrf.mxu0
  %v576 = vadd.f32 0.0, %v575
  %v577 = vpop.f32.mrf.mxu0
  %v578 = vpop.f32.mrf.mxu0
  %v579 = vadd.f32 0.0, %v578
  %v580 = vpop.f32.mrf.mxu0
  %581 = vmatprep.mubr.bf16.mxu0 0
  %582 = vmatmul.mubr.bf16.gmra.mxu0 %v325
  %v583 = vpop.f32.mrf.mxu0
  %v584 = vadd.f32 0.0, %v583
  %v585 = vpop.f32.mrf.mxu0
  %v586 = vpop.f32.mrf.mxu0
  %v587 = vadd.f32 0.0, %v586
  %v588 = vpop.f32.mrf.mxu0
  %589 = vmatprep.mubr.bf16.mxu0 0
  %590 = vmatmul.mubr.bf16.gmra.mxu0 %v326
  %v591 = vpop.f32.mrf.mxu0
  %v592 = vadd.f32 0.0, %v591
  %v593 = vpop.f32.mrf.mxu0
  %v594 = vpop.f32.mrf.mxu0
  %v595 = vadd.f32 0.0, %v594
  %v596 = vpop.f32.mrf.mxu0
  %597 = vmatprep.mubr.bf16.mxu0 0
  %598 = vmatmul.mubr.bf16.gmra.mxu0 %v327
  %v599 = vpop.f32.mrf.mxu0
  %v600 = vadd.f32 0.0, %v599
  %v601 = vpop.f32.mrf.mxu0
  %v602 = vpop.f32.mrf.mxu0
  %v603 = vadd.f32 0.0, %v602
  %v604 = vpop.f32.mrf.mxu0
  %605 = vmatprep.mubr.bf16.mxu0 0
  %606 = vmatmul.mubr.bf16.gmra.mxu0 %v328
  %v607 = vpop.f32.mrf.mxu0
  %v608 = vadd.f32 0.0, %v607
  %v609 = vpop.f32.mrf.mxu0
  %v610 = vpop.f32.mrf.mxu0
  %v611 = vadd.f32 0.0, %v610
  %v612 = vpop.f32.mrf.mxu0
  %613 = vmatprep.mubr.bf16.mxu0 0
  %614 = vmatmul.mubr.bf16.gmra.mxu0 %v329
  %v615 = vpop.f32.mrf.mxu0
  %v616 = vadd.f32 0.0, %v615
  %v617 = vpop.f32.mrf.mxu0
  %v618 = vpop.f32.mrf.mxu0
  %v619 = vadd.f32 0.0, %v618
  %v620 = vpop.f32.mrf.mxu0
  %621 = vmatprep.mubr.bf16.mxu0 0
  %622 = vmatmul.mubr.bf16.gmra.mxu0 %v330
  %v623 = vpop.f32.mrf.mxu0
  %v624 = vadd.f32 0.0, %v623
  %v625 = vpop.f32.mrf.mxu0
  %v626 = vpop.f32.mrf.mxu0
  %v627 = vadd.f32 0.0, %v626
  %v628 = vpop.f32.mrf.mxu0
  %629 = vmatprep.mubr.bf16.mxu0 0
  %630 = vmatmul.mubr.bf16.gmra.mxu0 %v331
  %v631 = vpop.f32.mrf.mxu0
  %v632 = vadd.f32 0.0, %v631
  %v633 = vpop.f32.mrf.mxu0
  %v634 = vpop.f32.mrf.mxu0
  %v635 = vadd.f32 0.0, %v634
  %v636 = vpop.f32.mrf.mxu0
  %637 = vmatprep.mubr.bf16.mxu0 0
  %638 = vmatmul.mubr.bf16.gmra.mxu0 %v332
  %v639 = vpop.f32.mrf.mxu0
  %v640 = vadd.f32 0.0, %v639
  %v641 = vpop.f32.mrf.mxu0
  %v642 = vpop.f32.mrf.mxu0
  %v643 = vadd.f32 0.0, %v642
  %v644 = vpop.f32.mrf.mxu0
  %645 = vmatprep.mubr.bf16.mxu0 0
  %646 = vmatmul.mubr.bf16.gmra.mxu0 %v333
  %v647 = vpop.f32.mrf.mxu0
  %v648 = vadd.f32 0.0, %v647
  %v649 = vpop.f32.mrf.mxu0
  %v650 = vpop.f32.mrf.mxu0
  %v651 = vadd.f32 0.0, %v650
  %v652 = vpop.f32.mrf.mxu0
  %653 = vmatprep.mubr.bf16.mxu0 0
  %654 = vmatmul.mubr.bf16.gmra.mxu0 %v334
  %v655 = vpop.f32.mrf.mxu0
  %v656 = vadd.f32 0.0, %v655
  %v657 = vpop.f32.mrf.mxu0
  %v658 = vpop.f32.mrf.mxu0
  %v659 = vadd.f32 0.0, %v658
  %v660 = vpop.f32.mrf.mxu0
  %661 = vmatprep.mubr.bf16.mxu0 0
  %662 = vmatmul.mubr.bf16.gmra.mxu0 %v335
  %v663 = vpop.f32.mrf.mxu0
  %v664 = vadd.f32 0.0, %v663
  %v665 = vpop.f32.mrf.mxu0
  %v666 = vpop.f32.mrf.mxu0
  %v667 = vadd.f32 0.0, %v666
  %v668 = vpop.f32.mrf.mxu0
  %669 = vmatprep.mubr.bf16.mxu0 0
  %670 = vmatmul.mubr.bf16.gmra.mxu0 %v336
  %v671 = vpop.f32.mrf.mxu0
  %v672 = vadd.f32 0.0, %v671
  %v673 = vpop.f32.mrf.mxu0
  %v674 = vpop.f32.mrf.mxu0
  %v675 = vadd.f32 0.0, %v674
  %v676 = vpop.f32.mrf.mxu0
  %677 = vmatprep.mubr.bf16.mxu0 0
  %678 = vmatmul.mubr.bf16.gmra.mxu0 %v337
  %v679 = vpop.f32.mrf.mxu0
  %v680 = vadd.f32 0.0, %v679
  %v681 = vpop.f32.mrf.mxu0
  %v682 = vpop.f32.mrf.mxu0
  %v683 = vadd.f32 0.0, %v682
  %v684 = vpop.f32.mrf.mxu0
  %685 = vmatprep.mubr.bf16.mxu0 0
  %686 = vmatmul.mubr.bf16.gmra.mxu0 %v338
  %v687 = vpop.f32.mrf.mxu0
  %v688 = vadd.f32 0.0, %v687
  %v689 = vpop.f32.mrf.mxu0
  %v690 = vpop.f32.mrf.mxu0
  %v691 = vadd.f32 0.0, %v690
  %v692 = vpop.f32.mrf.mxu0
  %693 = vmatprep.mubr.bf16.mxu0 0
  %694 = vmatmul.mubr.bf16.gmra.mxu0 %v339
  %v695 = vpop.f32.mrf.mxu0
  %v696 = vadd.f32 0.0, %v695
  %v697 = vpop.f32.mrf.mxu0
  %v698 = vpop.f32.mrf.mxu0
  %v699 = vadd.f32 0.0, %v698
  %v700 = vpop.f32.mrf.mxu0
  %701 = vmatprep.mubr.bf16.mxu0 0
  %702 = vmatmul.mubr.bf16.gmra.mxu0 %v340
  %v703 = vpop.f32.mrf.mxu0
  %v704 = vadd.f32 0.0, %v703
  %v705 = vpop.f32.mrf.mxu0
  %v706 = vpop.f32.mrf.mxu0
  %v707 = vadd.f32 0.0, %v706
  %v708 = vpop.f32.mrf.mxu0
  %709 = vdwg.mxu0
  %v774 = vunpack.c.l.b16 %v21
  %v775 = vunpack.c.l.b16 %v22
  %v776 = vunpack.c.l.b16 %v23
  %v777 = vunpack.c.l.b16 %v24
  %v778 = vunpack.c.l.b16 %v25
  %v779 = vunpack.c.l.b16 %v26
  %v780 = vunpack.c.l.b16 %v27
  %v781 = vunpack.c.l.b16 %v28
  %v782 = vunpack.c.l.b16 %v29
  %v783 = vunpack.c.l.b16 %v30
  %v784 = vunpack.c.l.b16 %v31
  %v785 = vunpack.c.l.b16 %v32
  %v786 = vunpack.c.l.b16 %v33
  %v787 = vunpack.c.l.b16 %v34
  %v788 = vunpack.c.l.b16 %v35
  %v789 = vunpack.c.l.b16 %v36
  %v790 = vunpack.c.l.b16 %v37
  %v791 = vunpack.c.l.b16 %v38
  %v792 = vunpack.c.l.b16 %v39
  %v793 = vunpack.c.l.b16 %v40
  %v794 = vunpack.c.l.b16 %v41
  %v795 = vunpack.c.l.b16 %v42
  %v796 = vunpack.c.l.b16 %v43
  %v797 = vunpack.c.l.b16 %v44
  %v798 = vunpack.c.l.b16 %v45
  %v799 = vunpack.c.l.b16 %v46
  %v800 = vunpack.c.l.b16 %v47
  %v801 = vunpack.c.l.b16 %v48
  %v802 = vunpack.c.l.b16 %v49
  %v803 = vunpack.c.l.b16 %v50
  %v804 = vunpack.c.l.b16 %v51
  %v805 = vunpack.c.l.b16 %v52
  %v806 = vunpack.c.l.b16 %v53
  %v807 = vunpack.c.l.b16 %v54
  %v808 = vunpack.c.l.b16 %v55
  %v809 = vunpack.c.l.b16 %v56
  %v810 = vunpack.c.l.b16 %v57
  %v811 = vunpack.c.l.b16 %v58
  %v812 = vunpack.c.l.b16 %v59
  %v813 = vunpack.c.l.b16 %v60
  %v814 = vunpack.c.l.b16 %v61
  %v815 = vunpack.c.l.b16 %v62
  %v816 = vunpack.c.l.b16 %v63
  %v817 = vunpack.c.l.b16 %v64
  %v818 = vunpack.c.l.b16 %v65
  %v819 = vunpack.c.l.b16 %v66
  %v820 = vunpack.c.l.b16 %v67
  %v821 = vunpack.c.l.b16 %v68
  %v822 = vunpack.c.l.b16 %v69
  %v823 = vunpack.c.l.b16 %v70
  %v824 = vunpack.c.l.b16 %v71
  %v825 = vunpack.c.l.b16 %v72
  %v826 = vunpack.c.l.b16 %v73
  %v827 = vunpack.c.l.b16 %v74
  %v828 = vunpack.c.l.b16 %v75
  %v829 = vunpack.c.l.b16 %v76
  %v830 = vunpack.c.l.b16 %v77
  %v831 = vunpack.c.l.b16 %v78
  %v832 = vunpack.c.l.b16 %v79
  %v833 = vunpack.c.l.b16 %v80
  %v834 = vunpack.c.l.b16 %v81
  %v835 = vunpack.c.l.b16 %v82
  %v836 = vunpack.c.l.b16 %v83
  %v837 = vunpack.c.l.b16 %v84
  %v838 = vpack.c.b16 %v775, %v774
  %v839 = vpack.c.b16 %v777, %v776
  %v840 = vpack.c.b16 %v779, %v778
  %v841 = vpack.c.b16 %v781, %v780
  %v842 = vpack.c.b16 %v783, %v782
  %v843 = vpack.c.b16 %v785, %v784
  %v844 = vpack.c.b16 %v787, %v786
  %v845 = vpack.c.b16 %v789, %v788
  %v846 = vpack.c.b16 %v791, %v790
  %v847 = vpack.c.b16 %v793, %v792
  %v848 = vpack.c.b16 %v795, %v794
  %v849 = vpack.c.b16 %v797, %v796
  %v850 = vpack.c.b16 %v799, %v798
  %v851 = vpack.c.b16 %v801, %v800
  %v852 = vpack.c.b16 %v803, %v802
  %v853 = vpack.c.b16 %v805, %v804
  %v854 = vpack.c.b16 %v807, %v806
  %v855 = vpack.c.b16 %v809, %v808
  %v856 = vpack.c.b16 %v811, %v810
  %v857 = vpack.c.b16 %v813, %v812
  %v858 = vpack.c.b16 %v815, %v814
  %v859 = vpack.c.b16 %v817, %v816
  %v860 = vpack.c.b16 %v819, %v818
  %v861 = vpack.c.b16 %v821, %v820
  %v862 = vpack.c.b16 %v823, %v822
  %v863 = vpack.c.b16 %v825, %v824
  %v864 = vpack.c.b16 %v827, %v826
  %v865 = vpack.c.b16 %v829, %v828
  %v866 = vpack.c.b16 %v831, %v830
  %v867 = vpack.c.b16 %v833, %v832
  %v868 = vpack.c.b16 %v835, %v834
  %v869 = vpack.c.b16 %v837, %v836
  %v918 = vunpack.c.l.b16 %v85
  %v919 = vunpack.c.l.b16 %v86
  %v920 = vunpack.c.l.b16 %v87
  %v921 = vunpack.c.l.b16 %v88
  %v922 = vunpack.c.l.b16 %v89
  %v923 = vunpack.c.l.b16 %v90
  %v924 = vunpack.c.l.b16 %v91
  %v925 = vunpack.c.l.b16 %v92
  %v926 = vunpack.c.l.b16 %v93
  %v927 = vunpack.c.l.b16 %v94
  %v928 = vunpack.c.l.b16 %v95
  %v929 = vunpack.c.l.b16 %v96
  %v930 = vunpack.c.l.b16 %v97
  %v931 = vunpack.c.l.b16 %v98
  %v932 = vunpack.c.l.b16 %v99
  %v933 = vunpack.c.l.b16 %v100
  %v934 = vpack.c.b16 %v919, %v918
  %v935 = vpack.c.b16 %v921, %v920
  %v936 = vpack.c.b16 %v923, %v922
  %v937 = vpack.c.b16 %v925, %v924
  %v938 = vpack.c.b16 %v927, %v926
  %v939 = vpack.c.b16 %v929, %v928
  %v940 = vpack.c.b16 %v931, %v930
  %v941 = vpack.c.b16 %v933, %v932
  %950 = vmatprep.subr.bf16.mxu0 0
  %951 = vmatpush1.bf16.msra.mxu0 %v941
  %952 = vmatprep.subr.bf16.mxu0 0
  %953 = vmatpush1.bf16.msra.mxu0 %v940
  %954 = vmatprep.subr.bf16.mxu0 0
  %955 = vmatpush1.bf16.msra.mxu0 %v939
  %956 = vmatprep.subr.bf16.mxu0 0
  %957 = vmatpush1.bf16.msra.mxu0 %v938
  %958 = vmatprep.subr.bf16.mxu0 0
  %959 = vmatpush1.bf16.msra.mxu0 %v937
  %960 = vmatprep.subr.bf16.mxu0 0
  %961 = vmatpush1.bf16.msra.mxu0 %v936
  %962 = vmatprep.subr.bf16.mxu0 0
  %963 = vmatpush1.bf16.msra.mxu0 %v935
  %964 = vmatprep.subr.bf16.mxu0 0
  %965 = vmatpush1.bf16.msra.mxu0 %v934
  %966 = vmatprep.subr.bf16.mxu0 0
  %967 = vmatpush2.bf16.msra.mxu0 0
  %968 = vmatprep.subr.bf16.mxu0 0
  %969 = vmatpush2.bf16.msra.mxu0 0
  %970 = vmatprep.subr.bf16.mxu0 0
  %971 = vmatpush2.bf16.msra.mxu0 0
  %972 = vmatprep.subr.bf16.mxu0 0
  %973 = vmatpush2.bf16.msra.mxu0 0
  %974 = vmatprep.subr.bf16.mxu0 0
  %975 = vmatpush2.bf16.msra.mxu0 0
  %976 = vmatprep.subr.bf16.mxu0 0
  %977 = vmatpush2.bf16.msra.mxu0 0
  %978 = vmatprep.subr.bf16.mxu0 0
  %979 = vmatpush2.bf16.msra.mxu0 0
  %980 = vmatprep.subr.bf16.mxu0 0
  %981 = vmatpush2.bf16.msra.mxu0 0
  %982 = vmatprep.mubr.bf16.mxu0 0
  %983 = vmatmul.mubr.bf16.gmra.mxu0 %v838
  %v984 = vpop.f32.mrf.mxu0
  %v985 = vadd.f32 %v456, %v984
  %v986 = vpop.f32.mrf.mxu0
  %v987 = vpop.f32.mrf.mxu0
  %v988 = vadd.f32 %v459, %v987
  %v989 = vpop.f32.mrf.mxu0
  %990 = vmatprep.mubr.bf16.mxu0 0
  %991 = vmatmul.mubr.bf16.gmra.mxu0 %v839
  %v992 = vpop.f32.mrf.mxu0
  %v993 = vadd.f32 %v464, %v992
  %v994 = vpop.f32.mrf.mxu0
  %v995 = vpop.f32.mrf.mxu0
  %v996 = vadd.f32 %v467, %v995
  %v997 = vpop.f32.mrf.mxu0
  %998 = vmatprep.mubr.bf16.mxu0 0
  %999 = vmatmul.mubr.bf16.gmra.mxu0 %v840
  %v1000 = vpop.f32.mrf.mxu0
  %v1001 = vadd.f32 %v472, %v1000
  %v1002 = vpop.f32.mrf.mxu0
  %v1003 = vpop.f32.mrf.mxu0
  %v1004 = vadd.f32 %v475, %v1003
  %v1005 = vpop.f32.mrf.mxu0
  %1006 = vmatprep.mubr.bf16.mxu0 0
  %1007 = vmatmul.mubr.bf16.gmra.mxu0 %v841
  %v1008 = vpop.f32.mrf.mxu0
  %v1009 = vadd.f32 %v480, %v1008
  %v1010 = vpop.f32.mrf.mxu0
  %v1011 = vpop.f32.mrf.mxu0
  %v1012 = vadd.f32 %v483, %v1011
  %v1013 = vpop.f32.mrf.mxu0
  %1014 = vmatprep.mubr.bf16.mxu0 0
  %1015 = vmatmul.mubr.bf16.gmra.mxu0 %v842
  %v1016 = vpop.f32.mrf.mxu0
  %v1017 = vadd.f32 %v488, %v1016
  %v1018 = vpop.f32.mrf.mxu0
  %v1019 = vpop.f32.mrf.mxu0
  %v1020 = vadd.f32 %v491, %v1019
  %v1021 = vpop.f32.mrf.mxu0
  %1022 = vmatprep.mubr.bf16.mxu0 0
  %1023 = vmatmul.mubr.bf16.gmra.mxu0 %v843
  %v1024 = vpop.f32.mrf.mxu0
  %v1025 = vadd.f32 %v496, %v1024
  %v1026 = vpop.f32.mrf.mxu0
  %v1027 = vpop.f32.mrf.mxu0
  %v1028 = vadd.f32 %v499, %v1027
  %v1029 = vpop.f32.mrf.mxu0
  %1030 = vmatprep.mubr.bf16.mxu0 0
  %1031 = vmatmul.mubr.bf16.gmra.mxu0 %v844
  %v1032 = vpop.f32.mrf.mxu0
  %v1033 = vadd.f32 %v504, %v1032
  %v1034 = vpop.f32.mrf.mxu0
  %v1035 = vpop.f32.mrf.mxu0
  %v1036 = vadd.f32 %v507, %v1035
  %v1037 = vpop.f32.mrf.mxu0
  %1038 = vmatprep.mubr.bf16.mxu0 0
  %1039 = vmatmul.mubr.bf16.gmra.mxu0 %v845
  %v1040 = vpop.f32.mrf.mxu0
  %v1041 = vadd.f32 %v512, %v1040
  %v1042 = vpop.f32.mrf.mxu0
  %v1043 = vpop.f32.mrf.mxu0
  %v1044 = vadd.f32 %v515, %v1043
  %v1045 = vpop.f32.mrf.mxu0
  %1046 = vmatprep.mubr.bf16.mxu0 0
  %1047 = vmatmul.mubr.bf16.gmra.mxu0 %v846
  %v1048 = vpop.f32.mrf.mxu0
  %v1049 = vadd.f32 %v520, %v1048
  %v1050 = vpop.f32.mrf.mxu0
  %v1051 = vpop.f32.mrf.mxu0
  %v1052 = vadd.f32 %v523, %v1051
  %v1053 = vpop.f32.mrf.mxu0
  %1054 = vmatprep.mubr.bf16.mxu0 0
  %1055 = vmatmul.mubr.bf16.gmra.mxu0 %v847
  %v1056 = vpop.f32.mrf.mxu0
  %v1057 = vadd.f32 %v528, %v1056
  %v1058 = vpop.f32.mrf.mxu0
  %v1059 = vpop.f32.mrf.mxu0
  %v1060 = vadd.f32 %v531, %v1059
  %v1061 = vpop.f32.mrf.mxu0
  %1062 = vmatprep.mubr.bf16.mxu0 0
  %1063 = vmatmul.mubr.bf16.gmra.mxu0 %v848
  %v1064 = vpop.f32.mrf.mxu0
  %v1065 = vadd.f32 %v536, %v1064
  %v1066 = vpop.f32.mrf.mxu0
  %v1067 = vpop.f32.mrf.mxu0
  %v1068 = vadd.f32 %v539, %v1067
  %v1069 = vpop.f32.mrf.mxu0
  %1070 = vmatprep.mubr.bf16.mxu0 0
  %1071 = vmatmul.mubr.bf16.gmra.mxu0 %v849
  %v1072 = vpop.f32.mrf.mxu0
  %v1073 = vadd.f32 %v544, %v1072
  %v1074 = vpop.f32.mrf.mxu0
  %v1075 = vpop.f32.mrf.mxu0
  %v1076 = vadd.f32 %v547, %v1075
  %v1077 = vpop.f32.mrf.mxu0
  %1078 = vmatprep.mubr.bf16.mxu0 0
  %1079 = vmatmul.mubr.bf16.gmra.mxu0 %v850
  %v1080 = vpop.f32.mrf.mxu0
  %v1081 = vadd.f32 %v552, %v1080
  %v1082 = vpop.f32.mrf.mxu0
  %v1083 = vpop.f32.mrf.mxu0
  %v1084 = vadd.f32 %v555, %v1083
  %v1085 = vpop.f32.mrf.mxu0
  %1086 = vmatprep.mubr.bf16.mxu0 0
  %1087 = vmatmul.mubr.bf16.gmra.mxu0 %v851
  %v1088 = vpop.f32.mrf.mxu0
  %v1089 = vadd.f32 %v560, %v1088
  %v1090 = vpop.f32.mrf.mxu0
  %v1091 = vpop.f32.mrf.mxu0
  %v1092 = vadd.f32 %v563, %v1091
  %v1093 = vpop.f32.mrf.mxu0
  %1094 = vmatprep.mubr.bf16.mxu0 0
  %1095 = vmatmul.mubr.bf16.gmra.mxu0 %v852
  %v1096 = vpop.f32.mrf.mxu0
  %v1097 = vadd.f32 %v568, %v1096
  %v1098 = vpop.f32.mrf.mxu0
  %v1099 = vpop.f32.mrf.mxu0
  %v1100 = vadd.f32 %v571, %v1099
  %v1101 = vpop.f32.mrf.mxu0
  %1102 = vmatprep.mubr.bf16.mxu0 0
  %1103 = vmatmul.mubr.bf16.gmra.mxu0 %v853
  %v1104 = vpop.f32.mrf.mxu0
  %v1105 = vadd.f32 %v576, %v1104
  %v1106 = vpop.f32.mrf.mxu0
  %v1107 = vpop.f32.mrf.mxu0
  %v1108 = vadd.f32 %v579, %v1107
  %v1109 = vpop.f32.mrf.mxu0
  %1110 = vmatprep.mubr.bf16.mxu0 0
  %1111 = vmatmul.mubr.bf16.gmra.mxu0 %v854
  %v1112 = vpop.f32.mrf.mxu0
  %v1113 = vadd.f32 %v584, %v1112
  %v1114 = vpop.f32.mrf.mxu0
  %v1115 = vpop.f32.mrf.mxu0
  %v1116 = vadd.f32 %v587, %v1115
  %v1117 = vpop.f32.mrf.mxu0
  %1118 = vmatprep.mubr.bf16.mxu0 0
  %1119 = vmatmul.mubr.bf16.gmra.mxu0 %v855
  %v1120 = vpop.f32.mrf.mxu0
  %v1121 = vadd.f32 %v592, %v1120
  %v1122 = vpop.f32.mrf.mxu0
  %v1123 = vpop.f32.mrf.mxu0
  %v1124 = vadd.f32 %v595, %v1123
  %v1125 = vpop.f32.mrf.mxu0
  %1126 = vmatprep.mubr.bf16.mxu0 0
  %1127 = vmatmul.mubr.bf16.gmra.mxu0 %v856
  %v1128 = vpop.f32.mrf.mxu0
  %v1129 = vadd.f32 %v600, %v1128
  %v1130 = vpop.f32.mrf.mxu0
  %v1131 = vpop.f32.mrf.mxu0
  %v1132 = vadd.f32 %v603, %v1131
  %v1133 = vpop.f32.mrf.mxu0
  %1134 = vmatprep.mubr.bf16.mxu0 0
  %1135 = vmatmul.mubr.bf16.gmra.mxu0 %v857
  %v1136 = vpop.f32.mrf.mxu0
  %v1137 = vadd.f32 %v608, %v1136
  %v1138 = vpop.f32.mrf.mxu0
  %v1139 = vpop.f32.mrf.mxu0
  %v1140 = vadd.f32 %v611, %v1139
  %v1141 = vpop.f32.mrf.mxu0
  %1142 = vmatprep.mubr.bf16.mxu0 0
  %1143 = vmatmul.mubr.bf16.gmra.mxu0 %v858
  %v1144 = vpop.f32.mrf.mxu0
  %v1145 = vadd.f32 %v616, %v1144
  %v1146 = vpop.f32.mrf.mxu0
  %v1147 = vpop.f32.mrf.mxu0
  %v1148 = vadd.f32 %v619, %v1147
  %v1149 = vpop.f32.mrf.mxu0
  %1150 = vmatprep.mubr.bf16.mxu0 0
  %1151 = vmatmul.mubr.bf16.gmra.mxu0 %v859
  %v1152 = vpop.f32.mrf.mxu0
  %v1153 = vadd.f32 %v624, %v1152
  %v1154 = vpop.f32.mrf.mxu0
  %v1155 = vpop.f32.mrf.mxu0
  %v1156 = vadd.f32 %v627, %v1155
  %v1157 = vpop.f32.mrf.mxu0
  %1158 = vmatprep.mubr.bf16.mxu0 0
  %1159 = vmatmul.mubr.bf16.gmra.mxu0 %v860
  %v1160 = vpop.f32.mrf.mxu0
  %v1161 = vadd.f32 %v632, %v1160
  %v1162 = vpop.f32.mrf.mxu0
  %v1163 = vpop.f32.mrf.mxu0
  %v1164 = vadd.f32 %v635, %v1163
  %v1165 = vpop.f32.mrf.mxu0
  %1166 = vmatprep.mubr.bf16.mxu0 0
  %1167 = vmatmul.mubr.bf16.gmra.mxu0 %v861
  %v1168 = vpop.f32.mrf.mxu0
  %v1169 = vadd.f32 %v640, %v1168
  %v1170 = vpop.f32.mrf.mxu0
  %v1171 = vpop.f32.mrf.mxu0
  %v1172 = vadd.f32 %v643, %v1171
  %v1173 = vpop.f32.mrf.mxu0
  %1174 = vmatprep.mubr.bf16.mxu0 0
  %1175 = vmatmul.mubr.bf16.gmra.mxu0 %v862
  %v1176 = vpop.f32.mrf.mxu0
  %v1177 = vadd.f32 %v648, %v1176
  %v1178 = vpop.f32.mrf.mxu0
  %v1179 = vpop.f32.mrf.mxu0
  %v1180 = vadd.f32 %v651, %v1179
  %v1181 = vpop.f32.mrf.mxu0
  %1182 = vmatprep.mubr.bf16.mxu0 0
  %1183 = vmatmul.mubr.bf16.gmra.mxu0 %v863
  %v1184 = vpop.f32.mrf.mxu0
  %v1185 = vadd.f32 %v656, %v1184
  %v1186 = vpop.f32.mrf.mxu0
  %v1187 = vpop.f32.mrf.mxu0
  %v1188 = vadd.f32 %v659, %v1187
  %v1189 = vpop.f32.mrf.mxu0
  %1190 = vmatprep.mubr.bf16.mxu0 0
  %1191 = vmatmul.mubr.bf16.gmra.mxu0 %v864
  %v1192 = vpop.f32.mrf.mxu0
  %v1193 = vadd.f32 %v664, %v1192
  %v1194 = vpop.f32.mrf.mxu0
  %v1195 = vpop.f32.mrf.mxu0
  %v1196 = vadd.f32 %v667, %v1195
  %v1197 = vpop.f32.mrf.mxu0
  %1198 = vmatprep.mubr.bf16.mxu0 0
  %1199 = vmatmul.mubr.bf16.gmra.mxu0 %v865
  %v1200 = vpop.f32.mrf.mxu0
  %v1201 = vadd.f32 %v672, %v1200
  %v1202 = vpop.f32.mrf.mxu0
  %v1203 = vpop.f32.mrf.mxu0
  %v1204 = vadd.f32 %v675, %v1203
  %v1205 = vpop.f32.mrf.mxu0
  %1206 = vmatprep.mubr.bf16.mxu0 0
  %1207 = vmatmul.mubr.bf16.gmra.mxu0 %v866
  %v1208 = vpop.f32.mrf.mxu0
  %v1209 = vadd.f32 %v680, %v1208
  %v1210 = vpop.f32.mrf.mxu0
  %v1211 = vpop.f32.mrf.mxu0
  %v1212 = vadd.f32 %v683, %v1211
  %v1213 = vpop.f32.mrf.mxu0
  %1214 = vmatprep.mubr.bf16.mxu0 0
  %1215 = vmatmul.mubr.bf16.gmra.mxu0 %v867
  %v1216 = vpop.f32.mrf.mxu0
  %v1217 = vadd.f32 %v688, %v1216
  %v1218 = vpop.f32.mrf.mxu0
  %v1219 = vpop.f32.mrf.mxu0
  %v1220 = vadd.f32 %v691, %v1219
  %v1221 = vpop.f32.mrf.mxu0
  %1222 = vmatprep.mubr.bf16.mxu0 0
  %1223 = vmatmul.mubr.bf16.gmra.mxu0 %v868
  %v1224 = vpop.f32.mrf.mxu0
  %v1225 = vadd.f32 %v696, %v1224
  %v1226 = vpop.f32.mrf.mxu0
  %v1227 = vpop.f32.mrf.mxu0
  %v1228 = vadd.f32 %v699, %v1227
  %v1229 = vpop.f32.mrf.mxu0
  %1230 = vmatprep.mubr.bf16.mxu0 0
  %1231 = vmatmul.mubr.bf16.gmra.mxu0 %v869
  %v1232 = vpop.f32.mrf.mxu0
  %v1233 = vadd.f32 %v704, %v1232
  %v1234 = vpop.f32.mrf.mxu0
  %v1235 = vpop.f32.mrf.mxu0
  %v1236 = vadd.f32 %v707, %v1235
  %v1237 = vpop.f32.mrf.mxu0
  %1238 = vdwg.mxu0
  %v1239 = vld [vmem:[%s4] sm:$0x1]
  %v1241 = vlaneseq
  %v1242 = vshrl.u32 %v1241, 7
  %v1243 = vsub.s32 0, %v1242
  %v1244 = vrot.slane %v1239, %v1243
  %v1246 = vadd.f32 %v985, %v1244
  %v1247 = vadd.f32 %v988, %v1244
  %v1248 = vadd.f32 %v993, %v1244
  %v1249 = vadd.f32 %v996, %v1244
  %v1250 = vadd.f32 %v1001, %v1244
  %v1251 = vadd.f32 %v1004, %v1244
  %v1252 = vadd.f32 %v1009, %v1244
  %v1253 = vadd.f32 %v1012, %v1244
  %v1254 = vadd.f32 %v1017, %v1244
  %v1255 = vadd.f32 %v1020, %v1244
  %v1256 = vadd.f32 %v1025, %v1244
  %v1257 = vadd.f32 %v1028, %v1244
  %v1258 = vadd.f32 %v1033, %v1244
  %v1259 = vadd.f32 %v1036, %v1244
  %v1260 = vadd.f32 %v1041, %v1244
  %v1261 = vadd.f32 %v1044, %v1244
  %v1262 = vadd.f32 %v1049, %v1244
  %v1263 = vadd.f32 %v1052, %v1244
  %v1264 = vadd.f32 %v1057, %v1244
  %v1265 = vadd.f32 %v1060, %v1244
  %v1266 = vadd.f32 %v1065, %v1244
  %v1267 = vadd.f32 %v1068, %v1244
  %v1268 = vadd.f32 %v1073, %v1244
  %v1269 = vadd.f32 %v1076, %v1244
  %v1270 = vadd.f32 %v1081, %v1244
  %v1271 = vadd.f32 %v1084, %v1244
  %v1272 = vadd.f32 %v1089, %v1244
  %v1273 = vadd.f32 %v1092, %v1244
  %v1274 = vadd.f32 %v1097, %v1244
  %v1275 = vadd.f32 %v1100, %v1244
  %v1276 = vadd.f32 %v1105, %v1244
  %v1277 = vadd.f32 %v1108, %v1244
  %v1278 = vadd.f32 %v1113, %v1244
  %v1279 = vadd.f32 %v1116, %v1244
  %v1280 = vadd.f32 %v1121, %v1244
  %v1281 = vadd.f32 %v1124, %v1244
  %v1282 = vadd.f32 %v1129, %v1244
  %v1283 = vadd.f32 %v1132, %v1244
  %v1284 = vadd.f32 %v1137, %v1244
  %v1285 = vadd.f32 %v1140, %v1244
  %v1286 = vadd.f32 %v1145, %v1244
  %v1287 = vadd.f32 %v1148, %v1244
  %v1288 = vadd.f32 %v1153, %v1244
  %v1289 = vadd.f32 %v1156, %v1244
  %v1290 = vadd.f32 %v1161, %v1244
  %v1291 = vadd.f32 %v1164, %v1244
  %v1292 = vadd.f32 %v1169, %v1244
  %v1293 = vadd.f32 %v1172, %v1244
  %v1294 = vadd.f32 %v1177, %v1244
  %v1295 = vadd.f32 %v1180, %v1244
  %v1296 = vadd.f32 %v1185, %v1244
  %v1297 = vadd.f32 %v1188, %v1244
  %v1298 = vadd.f32 %v1193, %v1244
  %v1299 = vadd.f32 %v1196, %v1244
  %v1300 = vadd.f32 %v1201, %v1244
  %v1301 = vadd.f32 %v1204, %v1244
  %v1302 = vadd.f32 %v1209, %v1244
  %v1303 = vadd.f32 %v1212, %v1244
  %v1304 = vadd.f32 %v1217, %v1244
  %v1305 = vadd.f32 %v1220, %v1244
  %v1306 = vadd.f32 %v1225, %v1244
  %v1307 = vadd.f32 %v1228, %v1244
  %v1308 = vadd.f32 %v1233, %v1244
  %v1309 = vadd.f32 %v1236, %v1244
  %v1310 = vmax.f32 %v1246, 0.0
  %v1311 = vmax.f32 %v1247, 0.0
  %v1312 = vmax.f32 %v1248, 0.0
  %v1313 = vmax.f32 %v1249, 0.0
  %v1314 = vmax.f32 %v1250, 0.0
  %v1315 = vmax.f32 %v1251, 0.0
  %v1316 = vmax.f32 %v1252, 0.0
  %v1317 = vmax.f32 %v1253, 0.0
  %v1318 = vmax.f32 %v1254, 0.0
  %v1319 = vmax.f32 %v1255, 0.0
  %v1320 = vmax.f32 %v1256, 0.0
  %v1321 = vmax.f32 %v1257, 0.0
  %v1322 = vmax.f32 %v1258, 0.0
  %v1323 = vmax.f32 %v1259, 0.0
  %v1324 = vmax.f32 %v1260, 0.0
  %v1325 = vmax.f32 %v1261, 0.0
  %v1326 = vmax.f32 %v1262, 0.0
  %v1327 = vmax.f32 %v1263, 0.0
  %v1328 = vmax.f32 %v1264, 0.0
  %v1329 = vmax.f32 %v1265, 0.0
  %v1330 = vmax.f32 %v1266, 0.0
  %v1331 = vmax.f32 %v1267, 0.0
  %v1332 = vmax.f32 %v1268, 0.0
  %v1333 = vmax.f32 %v1269, 0.0
  %v1334 = vmax.f32 %v1270, 0.0
  %v1335 = vmax.f32 %v1271, 0.0
  %v1336 = vmax.f32 %v1272, 0.0
  %v1337 = vmax.f32 %v1273, 0.0
  %v1338 = vmax.f32 %v1274, 0.0
  %v1339 = vmax.f32 %v1275, 0.0
  %v1340 = vmax.f32 %v1276, 0.0
  %v1341 = vmax.f32 %v1277, 0.0
  %v1342 = vmax.f32 %v1278, 0.0
  %v1343 = vmax.f32 %v1279, 0.0
  %v1344 = vmax.f32 %v1280, 0.0
  %v1345 = vmax.f32 %v1281, 0.0
  %v1346 = vmax.f32 %v1282, 0.0
  %v1347 = vmax.f32 %v1283, 0.0
  %v1348 = vmax.f32 %v1284, 0.0
  %v1349 = vmax.f32 %v1285, 0.0
  %v1350 = vmax.f32 %v1286, 0.0
  %v1351 = vmax.f32 %v1287, 0.0
  %v1352 = vmax.f32 %v1288, 0.0
  %v1353 = vmax.f32 %v1289, 0.0
  %v1354 = vmax.f32 %v1290, 0.0
  %v1355 = vmax.f32 %v1291, 0.0
  %v1356 = vmax.f32 %v1292, 0.0
  %v1357 = vmax.f32 %v1293, 0.0
  %v1358 = vmax.f32 %v1294, 0.0
  %v1359 = vmax.f32 %v1295, 0.0
  %v1360 = vmax.f32 %v1296, 0.0
  %v1361 = vmax.f32 %v1297, 0.0
  %v1362 = vmax.f32 %v1298, 0.0
  %v1363 = vmax.f32 %v1299, 0.0
  %v1364 = vmax.f32 %v1300, 0.0
  %v1365 = vmax.f32 %v1301, 0.0
  %v1366 = vmax.f32 %v1302, 0.0
  %v1367 = vmax.f32 %v1303, 0.0
  %v1368 = vmax.f32 %v1304, 0.0
  %v1369 = vmax.f32 %v1305, 0.0
  %v1370 = vmax.f32 %v1306, 0.0
  %v1371 = vmax.f32 %v1307, 0.0
  %v1372 = vmax.f32 %v1308, 0.0
  %v1373 = vmax.f32 %v1309, 0.0
  %1374 = vst [vmem:[%s5] sm:$0xff] %v1310
  %1375 = vst [vmem:[%s5 + $0x8] sm:$0xff] %v1311
  %1376 = vst [vmem:[%s5 + $0x10] sm:$0xff] %v1312
  %1377 = vst [vmem:[%s5 + $0x18] sm:$0xff] %v1313
  %1378 = vst [vmem:[%s5 + $0x20] sm:$0xff] %v1314
  %1379 = vst [vmem:[%s5 + $0x28] sm:$0xff] %v1315
  %1380 = vst [vmem:[%s5 + $0x30] sm:$0xff] %v1316
  %1381 = vst [vmem:[%s5 + $0x38] sm:$0xff] %v1317
  %1382 = vst [vmem:[%s5 + $0x40] sm:$0xff] %v1318
  %1383 = vst [vmem:[%s5 + $0x48] sm:$0xff] %v1319
  %1384 = vst [vmem:[%s5 + $0x50] sm:$0xff] %v1320
  %1385 = vst [vmem:[%s5 + $0x58] sm:$0xff] %v1321
  %1386 = vst [vmem:[%s5 + $0x60] sm:$0xff] %v1322
  %1387 = vst [vmem:[%s5 + $0x68] sm:$0xff] %v1323
  %1388 = vst [vmem:[%s5 + $0x70] sm:$0xff] %v1324
  %1389 = vst [vmem:[%s5 + $0x78] sm:$0xff] %v1325
  %1390 = vst [vmem:[%s5 + $0x80] sm:$0xff] %v1326
  %1391 = vst [vmem:[%s5 + $0x88] sm:$0xff] %v1327
  %1392 = vst [vmem:[%s5 + $0x90] sm:$0xff] %v1328
  %1393 = vst [vmem:[%s5 + $0x98] sm:$0xff] %v1329
  %1394 = vst [vmem:[%s5 + $0xa0] sm:$0xff] %v1330
  %1395 = vst [vmem:[%s5 + $0xa8] sm:$0xff] %v1331
  %1396 = vst [vmem:[%s5 + $0xb0] sm:$0xff] %v1332
  %1397 = vst [vmem:[%s5 + $0xb8] sm:$0xff] %v1333
  %1398 = vst [vmem:[%s5 + $0xc0] sm:$0xff] %v1334
  %1399 = vst [vmem:[%s5 + $0xc8] sm:$0xff] %v1335
  %1400 = vst [vmem:[%s5 + $0xd0] sm:$0xff] %v1336
  %1401 = vst [vmem:[%s5 + $0xd8] sm:$0xff] %v1337
  %1402 = vst [vmem:[%s5 + $0xe0] sm:$0xff] %v1338
  %1403 = vst [vmem:[%s5 + $0xe8] sm:$0xff] %v1339
  %1404 = vst [vmem:[%s5 + $0xf0] sm:$0xff] %v1340
  %1405 = vst [vmem:[%s5 + $0xf8] sm:$0xff] %v1341
  %1406 = vst [vmem:[%s5 + $0x100] sm:$0xff] %v1342
  %1407 = vst [vmem:[%s5 + $0x108] sm:$0xff] %v1343
  %1408 = vst [vmem:[%s5 + $0x110] sm:$0xff] %v1344
  %1409 = vst [vmem:[%s5 + $0x118] sm:$0xff] %v1345
  %1410 = vst [vmem:[%s5 + $0x120] sm:$0xff] %v1346
  %1411 = vst [vmem:[%s5 + $0x128] sm:$0xff] %v1347
  %1412 = vst [vmem:[%s5 + $0x130] sm:$0xff] %v1348
  %1413 = vst [vmem:[%s5 + $0x138] sm:$0xff] %v1349
  %1414 = vst [vmem:[%s5 + $0x140] sm:$0xff] %v1350
  %1415 = vst [vmem:[%s5 + $0x148] sm:$0xff] %v1351
  %1416 = vst [vmem:[%s5 + $0x150] sm:$0xff] %v1352
  %1417 = vst [vmem:[%s5 + $0x158] sm:$0xff] %v1353
  %1418 = vst [vmem:[%s5 + $0x160] sm:$0xff] %v1354
  %1419 = vst [vmem:[%s5 + $0x168] sm:$0xff] %v1355
  %1420 = vst [vmem:[%s5 + $0x170] sm:$0xff] %v1356
  %1421 = vst [vmem:[%s5 + $0x178] sm:$0xff] %v1357
  %1422 = vst [vmem:[%s5 + $0x180] sm:$0xff] %v1358
  %1423 = vst [vmem:[%s5 + $0x188] sm:$0xff] %v1359
  %1424 = vst [vmem:[%s5 + $0x190] sm:$0xff] %v1360
  %1425 = vst [vmem:[%s5 + $0x198] sm:$0xff] %v1361
  %1426 = vst [vmem:[%s5 + $0x1a0] sm:$0xff] %v1362
  %1427 = vst [vmem:[%s5 + $0x1a8] sm:$0xff] %v1363
  %1428 = vst [vmem:[%s5 + $0x1b0] sm:$0xff] %v1364
  %1429 = vst [vmem:[%s5 + $0x1b8] sm:$0xff] %v1365
  %1430 = vst [vmem:[%s5 + $0x1c0] sm:$0xff] %v1366
  %1431 = vst [vmem:[%s5 + $0x1c8] sm:$0xff] %v1367
  %1432 = vst [vmem:[%s5 + $0x1d0] sm:$0xff] %v1368
  %1433 = vst [vmem:[%s5 + $0x1d8] sm:$0xff] %v1369
  %1434 = vst [vmem:[%s5 + $0x1e0] sm:$0xff] %v1370
  %1435 = vst [vmem:[%s5 + $0x1e8] sm:$0xff] %v1371
  %1436 = vst [vmem:[%s5 + $0x1f0] sm:$0xff] %v1372
  %1437 = vst [vmem:[%s5 + $0x1f8] sm:$0xff] %v1373
  // Predicated region
  $region22: #{bottleneck_forward.5} parent=0 // pred_check
    _
  $region23: #{bottleneck_forward.5} parent=0 // pred_check_branch
    %1439 = sbr.rel (0) target = $region25
  $region24: #{bottleneck_forward.5} parent=0 // pred_region
    _
  $region25: #{bottleneck_forward.5} parent=0 // pred_fallthru
    _
  // Predicated region
  $region26: #{bottleneck_forward.5} parent=0 // pred_check
    _
  $region27: #{bottleneck_forward.5} parent=0 // pred_check_branch
    %1441 = sbr.rel (0) target = $region29
  $region28: #{bottleneck_forward.5} parent=0 // pred_region
    _
  $region29: #{bottleneck_forward.5} parent=0 // pred_fallthru
    _

// kernel: bottleneck_forward.4
$region0: #{bottleneck_forward.4}
  #allocation0 [shape = 'u32[]', space=smem, size = 0x4, offset = 0x4, fixed_abs, tag = 'smem constant byte address 0x4 - core index']
  #allocation1 [shape = 'u32[144,128]{1,0:T(1,128)}', space=vmem, size = 0x12000, scoped, tag = 'internal scratch']
  %s0 = inlined_call_operand.vmem [shape: bf16[2,864,128], index: 0, kind: input, shape index: {}]
  %s1 = inlined_call_operand.vmem [shape: bf16[9,128,128], index: 1, kind: input, shape index: {}]
  %s2 = inlined_call_operand.vmem [shape: f32[1,128], index: 2, kind: input, shape index: {}]
  %s3 = inlined_call_operand.vmem [shape: bf16[2,256,128], index: 3, kind: output, shape index: {}]
  %s4 = sld [smem:[#allocation0]]
  $region45: #{bottleneck_forward.4} parent=0
    _
  %s6 = ssub.s32 1, %s4
  %s7 = scalar_select 0, %s6, %s4
  loop: start=0, step=1, limit=4
  $region2: #{bottleneck_forward.4} parent=0 // loop_pre_header
    _
  $region3: #{bottleneck_forward.4} parent=0 // loop_header
    %s9 = sphi 0, %s13
    %p10 = scmp.ge.s32.totalorder %s9, 4
    %s16 = sphi 0, %s28
    %s17 = sphi 0, %s24
    %s18 = sphi 0, %s16
    %s19 = sphi 0, %s17
    %s20 = sphi 0, %s18
    %s21 = sphi 0, %s19
    %s31 = sphi 0, %s33
    %s34 = sphi 0, %s31
    %s35 = sphi 0, %s34
    %s51 = sphi 0, %s35
    %s55 = sphi 0, %s55
    %s57 = sphi 0, %s55
    %s58 = sphi 0, %s57
    %s72 = sphi 0, %s58
    %s76 = sphi 0, %s76
    %s78 = sphi 0, %s76
    %s79 = sphi 0, %s78
    %s93 = sphi 0, %s79
    %s101 = sphi 0, %s103
    %s104 = sphi 0, %s101
    %s105 = sphi 0, %s104
    %s121 = sphi 0, %s105
  $region4: #{bottleneck_forward.4} parent=0 // loop_header_branch
    %12 = sbr.rel (%p10) target = $region8
  $region5: #{bottleneck_forward.4} parent=0 // loop_body
    %s14 = ssub.s32 %s9, 1
    %s15 = ssub.s32 %s9, 2
    %s22 = sadd.s32 1, %s17
    %p23 = scmp.ge.s32.totalorder %s22, 1
    %s24 = scalar_select %p23, 0, %s22
    %s25 = sadd.s32 1, %s16
    %s26 = scalar_select %p23, %s25, %s16
    %p27 = scmp.ge.s32.totalorder %s26, 2
    %s28 = scalar_select %p27, 0, %s26
    %s29 = ssub.s32 %s16, %s28
    %p30 = scmp.eq.s32.totalorder %s29, 0
    %s32 = sadd.s32 %s31, 1
    %s33 = scalar_select %p30, %s31, %s32
    %p36 = pneg %p30
    %p37 = scmp.eq.s32.totalorder %s9, 1
    %p38 = por %p36, %p37
    %p39 = scmp.ne.s32.totalorder %s31, %s34
    %p40 = scmp.eq.s32.totalorder %s9, 0
    %p41 = por %p39, %p40
    %p42 = scmp.ne.s32.totalorder %s31, %s34
    %p43 = scmp.eq.s32.totalorder %s14, 1
    %p44 = por %p42, %p43
    %p45 = scmp.ne.s32.totalorder %s34, %s35
    %p46 = scmp.eq.s32.totalorder %s14, 0
    %p47 = por %p45, %p46
    %p48 = scmp.ne.s32.totalorder %s34, %s35
    %p49 = scmp.eq.s32.totalorder %s15, 1
    %p50 = por %p48, %p49
    %p52 = scmp.ne.s32.totalorder %s35, %s51
    %p53 = scmp.eq.s32.totalorder %s15, 0
    %p54 = por %p52, %p53
    %s56 = sadd.s32 %s55, 1
    %p59 = scmp.eq.s32.totalorder %s9, 1
    %p60 = scmp.ne.s32.totalorder %s55, %s57
    %p61 = scmp.eq.s32.totalorder %s9, 0
    %p62 = por %p60, %p61
    %p63 = scmp.ne.s32.totalorder %s55, %s57
    %p64 = scmp.eq.s32.totalorder %s14, 1
    %p65 = por %p63, %p64
    %p66 = scmp.ne.s32.totalorder %s57, %s58
    %p67 = scmp.eq.s32.totalorder %s14, 0
    %p68 = por %p66, %p67
    %p69 = scmp.ne.s32.totalorder %s57, %s58
    %p70 = scmp.eq.s32.totalorder %s15, 1
    %p71 = por %p69, %p70
    %p73 = scmp.ne.s32.totalorder %s58, %s72
    %p74 = scmp.eq.s32.totalorder %s15, 0
    %p75 = por %p73, %p74
    %s77 = sadd.s32 %s76, 1
    %p80 = scmp.eq.s32.totalorder %s9, 1
    %p81 = scmp.ne.s32.totalorder %s76, %s78
    %p82 = scmp.eq.s32.totalorder %s9, 0
    %p83 = por %p81, %p82
    %p84 = scmp.ne.s32.totalorder %s76, %s78
    %p85 = scmp.eq.s32.totalorder %s14, 1
    %p86 = por %p84, %p85
    %p87 = scmp.ne.s32.totalorder %s78, %s79
    %p88 = scmp.eq.s32.totalorder %s14, 0
    %p89 = por %p87, %p88
    %p90 = scmp.ne.s32.totalorder %s78, %s79
    %p91 = scmp.eq.s32.totalorder %s15, 1
    %p92 = por %p90, %p91
    %p94 = scmp.ne.s32.totalorder %s79, %s93
    %p95 = scmp.eq.s32.totalorder %s15, 0
    %p96 = por %p94, %p95
    %s97 = ssub.s32 %s16, %s28
    %s98 = ssub.s32 %s17, %s24
    %s99 = sor.u32 %s97, %s98
    %p100 = scmp.eq.s32.totalorder %s99, 0
    %s102 = sadd.s32 %s101, 1
    %s103 = scalar_select %p100, %s101, %s102
    %p106 = pneg %p100
    %p107 = scmp.eq.s32.totalorder %s9, 1
    %p108 = por %p106, %p107
    %p109 = scmp.ne.s32.totalorder %s101, %s104
    %p110 = scmp.eq.s32.totalorder %s9, 0
    %p111 = por %p109, %p110
    %p112 = scmp.ne.s32.totalorder %s101, %s104
    %p113 = scmp.eq.s32.totalorder %s14, 1
    %p114 = por %p112, %p113
    %p115 = scmp.ne.s32.totalorder %s104, %s105
    %p116 = scmp.eq.s32.totalorder %s14, 0
    %p117 = por %p115, %p116
    %p118 = scmp.ne.s32.totalorder %s104, %s105
    %p119 = scmp.eq.s32.totalorder %s15, 1
    %p120 = por %p118, %p119
    %p122 = scmp.ne.s32.totalorder %s105, %s121
    %p123 = scmp.eq.s32.totalorder %s15, 0
    %p124 = por %p122, %p123
    %p125 = scmp.le.s32.totalorder 1, %s9
    %p126 = scmp.lt.s32.totalorder %s9, 3
    %p127 = pnand %p125, %p126
    %p128 = pneg %p127
    // Predicated region
    $region9: #{bottleneck_forward.4} parent=5 // pred_check
      _
    $region10: #{bottleneck_forward.4} parent=5 // pred_check_branch
      %130 = sbr.rel (%p127) target = $region12
    $region11: #{bottleneck_forward.4} parent=5 // pred_region
      %s131 = ssub.s32 %s9, 1
      // Predicated region
      $region13: #{bottleneck_forward.4} parent=11 // pred_check
        %p132 = pneg %p68
      $region14: #{bottleneck_forward.4} parent=11 // pred_check_branch
        %134 = sbr.rel (%p132) target = $region16
      $region15: #{bottleneck_forward.4} parent=11 // pred_region
        _
      $region16: #{bottleneck_forward.4} parent=11 // pred_fallthru
        _
      // Predicated region
      $region17: #{bottleneck_forward.4} parent=11 // pred_check
        %p135 = pneg %p89
      $region18: #{bottleneck_forward.4} parent=11 // pred_check_branch
        %137 = sbr.rel (%p135) target = $region20
      $region19: #{bottleneck_forward.4} parent=11 // pred_region
        _
      $region20: #{bottleneck_forward.4} parent=11 // pred_fallthru
        _
    $region12: #{bottleneck_forward.4} parent=5 // pred_fallthru
      _
    %p138 = scmp.lt.s32.totalorder %s9, 2
    // Predicated region
    $region21: #{bottleneck_forward.4} parent=5 // pred_check
      %p139 = pneg %p138
    $region22: #{bottleneck_forward.4} parent=5 // pred_check_branch
      %141 = sbr.rel (%p139) target = $region24
    $region23: #{bottleneck_forward.4} parent=5 // pred_region
      // Predicated region
      $region25: #{bottleneck_forward.4} parent=23 // pred_check
        %p142 = pneg %p41
      $region26: #{bottleneck_forward.4} parent=23 // pred_check_branch
        %144 = sbr.rel (%p142) target = $region28
      $region27: #{bottleneck_forward.4} parent=23 // pred_region
        %p145 = scmp.lt.s32.totalorder %s16, 1
        %s146 = scalar_select %p145, %s16, 1
        %s147 = smul.addr %s146, 108
        %s148 = smul.addr %s147, 4
        %s149 = scalar_lea.vmem %s0, %s148
      $region28: #{bottleneck_forward.4} parent=23 // pred_fallthru
        _
    $region24: #{bottleneck_forward.4} parent=5 // pred_fallthru
      _
    %p150 = scmp.le.s32.totalorder 1, %s9
    %p151 = scmp.lt.s32.totalorder %s9, 3
    %p152 = pnand %p150, %p151
    %p153 = pneg %p152
    // Predicated region
    $region29: #{bottleneck_forward.4} parent=5 // pred_check
      _
    $region30: #{bottleneck_forward.4} parent=5 // pred_check_branch
      %155 = sbr.rel (%p152) target = $region32
    $region31: #{bottleneck_forward.4} parent=5 // pred_region
      %s156 = ssub.s32 %s9, 1
      %p157 = scmp.lt.s32.totalorder %s18, 1
      %s158 = scalar_select %p157, %s18, 1
      %s159 = smul.addr %s158, 108
      %s160 = smul.addr %s159, 4
      %s161 = scalar_lea.vmem %s0, %s160
      %p162 = pneg %p47
      %p163 = pneg %p44
      %p164 = pneg %p68
      %p165 = pneg %p65
      %p166 = pneg %p89
      %p167 = pneg %p86
      %p168 = pneg %p117
      %p169 = pneg %p114
      %s170 = smul.u32 32, %s19
      %p171 = scmp.lt.s32.totalorder %s18, 1
      %s172 = scalar_select %p171, %s18, 1
      %p173 = scmp.lt.s32.totalorder %s170, 31
      %s174 = scalar_select %p173, %s170, 31
      %s175 = smul.addr %s172, 32
      %s176 = sadd.s32 %s174, %s175
      %s177 = smul.addr %s176, 4
      %s178 = scalar_lea.vmem %s3, %s177
      %p179 = scmp.lt.s32.totalorder %s18, 1
      %s180 = scalar_select %p179, %s18, 1
      %s181 = smul.addr %s180, 108
      %s182 = smul.addr %s181, 4
      %s183 = scalar_lea.vmem %s0, %s182
      %s184 = smul.u32 32, %s19
      %p185 = scmp.lt.s32.totalorder %s18, 1
      %s186 = scalar_select %p185, %s18, 1
      %p187 = scmp.lt.s32.totalorder %s184, 31
      %s188 = scalar_select %p187, %s184, 31
      %s189 = smul.addr %s186, 32
      %s190 = sadd.s32 %s188, %s189
      %s191 = smul.addr %s190, 4
      %s192 = scalar_lea.vmem %s3, %s191
      %s193 = smul.u32 32, %s19
      %s195 = smul.u32 %s19, 16
      %s196 = smul.u32 %s19, 256
      %s197 = sshra.s32 %s196, 3
      %s198 = sand.u32 %s196, 7
      %s199 = smul.addr %s197, 4
      %s200 = scalar_lea.vmem %s183, %s199
      %v201 = vld [vmem:[%s200] sm:$0xf]
      %v202 = vld [vmem:[%s200 + $0x4] sm:$0xf]
      %v203 = vld [vmem:[%s200 + $0x8] sm:$0xf]
      %v204 = vld [vmem:[%s200 + $0xc] sm:$0xf]
      %v205 = vld [vmem:[%s200 + $0x10] sm:$0xf]
      %v206 = vld [vmem:[%s200 + $0x14] sm:$0xf]
      %v207 = vld [vmem:[%s200 + $0x18] sm:$0xf]
      %v208 = vld [vmem:[%s200 + $0x1c] sm:$0xf]
      %v209 = vld [vmem:[%s200 + $0x20] sm:$0xf]
      %v210 = vld [vmem:[%s200 + $0x24] sm:$0xf]
      %v211 = vld [vmem:[%s200 + $0x28] sm:$0xf]
      %v212 = vld [vmem:[%s200 + $0x2c] sm:$0xf]
      %v213 = vld [vmem:[%s200 + $0x30] sm:$0xf]
      %v214 = vld [vmem:[%s200 + $0x34] sm:$0xf]
      %v215 = vld [vmem:[%s200 + $0x38] sm:$0xf]
      %v216 = vld [vmem:[%s200 + $0x3c] sm:$0xf]
      %v217 = vld [vmem:[%s200 + $0x40] sm:$0xf]
      %v218 = vld [vmem:[%s200 + $0x44] sm:$0xf]
      %v219 = vld [vmem:[%s200 + $0x48] sm:$0xf]
      %v220 = vld [vmem:[%s200 + $0x4c] sm:$0xf]
      %v221 = vld [vmem:[%s200 + $0x50] sm:$0xf]
      %v222 = vld [vmem:[%s200 + $0x54] sm:$0xf]
      %v223 = vld [vmem:[%s200 + $0x58] sm:$0xf]
      %v224 = vld [vmem:[%s200 + $0x5c] sm:$0xf]
      %v225 = vld [vmem:[%s200 + $0x60] sm:$0xf]
      %v226 = vld [vmem:[%s200 + $0x64] sm:$0xf]
      %v227 = vld [vmem:[%s200 + $0x68] sm:$0xf]
      %v228 = vld [vmem:[%s200 + $0x6c] sm:$0xf]
      %v229 = vld [vmem:[%s200 + $0x70] sm:$0xf]
      %v230 = vld [vmem:[%s200 + $0x74] sm:$0xf]
      %v231 = vld [vmem:[%s200 + $0x78] sm:$0xf]
      %v232 = vld [vmem:[%s200 + $0x7c] sm:$0xf]
      %v233 = vld [vmem:[%s1] sm:$0xf]
      %v234 = vld [vmem:[%s1 + $0x4] sm:$0xf]
      %v235 = vld [vmem:[%s1 + $0x8] sm:$0xf]
      %v236 = vld [vmem:[%s1 + $0xc] sm:$0xf]
      %v237 = vld [vmem:[%s1 + $0x10] sm:$0xf]
      %v238 = vld [vmem:[%s1 + $0x14] sm:$0xf]
      %v239 = vld [vmem:[%s1 + $0x18] sm:$0xf]
      %v240 = vld [vmem:[%s1 + $0x1c] sm:$0xf]
      %v241 = vld [vmem:[%s1 + $0x20] sm:$0xf]
      %v242 = vld [vmem:[%s1 + $0x24] sm:$0xf]
      %v243 = vld [vmem:[%s1 + $0x28] sm:$0xf]
      %v244 = vld [vmem:[%s1 + $0x2c] sm:$0xf]
      %v245 = vld [vmem:[%s1 + $0x30] sm:$0xf]
      %v246 = vld [vmem:[%s1 + $0x34] sm:$0xf]
      %v247 = vld [vmem:[%s1 + $0x38] sm:$0xf]
      %v248 = vld [vmem:[%s1 + $0x3c] sm:$0xf]
      %s249 = sadd.s32 %s195, 18
      %s250 = smul.u32 %s249, 16
      %s251 = sshra.s32 %s250, 3
      %s252 = sand.u32 %s250, 7
      %s253 = smul.addr %s251, 4
      %s254 = scalar_lea.vmem %s183, %s253
      %v255 = vld [vmem:[%s254] sm:$0xf]
      %v256 = vld [vmem:[%s254 + $0x4] sm:$0xf]
      %v257 = vld [vmem:[%s254 + $0x8] sm:$0xf]
      %v258 = vld [vmem:[%s254 + $0xc] sm:$0xf]
      %v259 = vld [vmem:[%s254 + $0x10] sm:$0xf]
      %v260 = vld [vmem:[%s254 + $0x14] sm:$0xf]
      %v261 = vld [vmem:[%s254 + $0x18] sm:$0xf]
      %v262 = vld [vmem:[%s254 + $0x1c] sm:$0xf]
      %v263 = vld [vmem:[%s254 + $0x20] sm:$0xf]
      %v264 = vld [vmem:[%s254 + $0x24] sm:$0xf]
      %v265 = vld [vmem:[%s254 + $0x28] sm:$0xf]
      %v266 = vld [vmem:[%s254 + $0x2c] sm:$0xf]
      %v267 = vld [vmem:[%s254 + $0x30] sm:$0xf]
      %v268 = vld [vmem:[%s254 + $0x34] sm:$0xf]
      %v269 = vld [vmem:[%s254 + $0x38] sm:$0xf]
      %v270 = vld [vmem:[%s254 + $0x3c] sm:$0xf]
      %v271 = vld [vmem:[%s254 + $0x40] sm:$0xf]
      %v272 = vld [vmem:[%s254 + $0x44] sm:$0xf]
      %v273 = vld [vmem:[%s254 + $0x48] sm:$0xf]
      %v274 = vld [vmem:[%s254 + $0x4c] sm:$0xf]
      %v275 = vld [vmem:[%s254 + $0x50] sm:$0xf]
      %v276 = vld [vmem:[%s254 + $0x54] sm:$0xf]
      %v277 = vld [vmem:[%s254 + $0x58] sm:$0xf]
      %v278 = vld [vmem:[%s254 + $0x5c] sm:$0xf]
      %v279 = vld [vmem:[%s254 + $0x60] sm:$0xf]
      %v280 = vld [vmem:[%s254 + $0x64] sm:$0xf]
      %v281 = vld [vmem:[%s254 + $0x68] sm:$0xf]
      %v282 = vld [vmem:[%s254 + $0x6c] sm:$0xf]
      %v283 = vld [vmem:[%s254 + $0x70] sm:$0xf]
      %v284 = vld [vmem:[%s254 + $0x74] sm:$0xf]
      %v285 = vld [vmem:[%s254 + $0x78] sm:$0xf]
      %v286 = vld [vmem:[%s254 + $0x7c] sm:$0xf]
      %s287 = scalar_lea.vmem %s1, 64
      %v288 = vld [vmem:[%s287] sm:$0xf]
      %v289 = vld [vmem:[%s287 + $0x4] sm:$0xf]
      %v290 = vld [vmem:[%s287 + $0x8] sm:$0xf]
      %v291 = vld [vmem:[%s287 + $0xc] sm:$0xf]
      %v292 = vld [vmem:[%s287 + $0x10] sm:$0xf]
      %v293 = vld [vmem:[%s287 + $0x14] sm:$0xf]
      %v294 = vld [vmem:[%s287 + $0x18] sm:$0xf]
      %v295 = vld [vmem:[%s287 + $0x1c] sm:$0xf]
      %v296 = vld [vmem:[%s287 + $0x20] sm:$0xf]
      %v297 = vld [vmem:[%s287 + $0x24] sm:$0xf]
      %v298 = vld [vmem:[%s287 + $0x28] sm:$0xf]
      %v299 = vld [vmem:[%s287 + $0x2c] sm:$0xf]
      %v300 = vld [vmem:[%s287 + $0x30] sm:$0xf]
      %v301 = vld [vmem:[%s287 + $0x34] sm:$0xf]
      %v302 = vld [vmem:[%s287 + $0x38] sm:$0xf]
      %v303 = vld [vmem:[%s287 + $0x3c] sm:$0xf]
      %v336 = vunpack.c.l.b16 %v255
      %v337 = vunpack.c.l.b16 %v256
      %v338 = vunpack.c.l.b16 %v257
      %v339 = vunpack.c.l.b16 %v258
      %v340 = vunpack.c.l.b16 %v259
      %v341 = vunpack.c.l.b16 %v260
      %v342 = vunpack.c.l.b16 %v261
      %v343 = vunpack.c.l.b16 %v262
      %v344 = vunpack.c.l.b16 %v263
      %v345 = vunpack.c.l.b16 %v264
      %v346 = vunpack.c.l.b16 %v265
      %v347 = vunpack.c.l.b16 %v266
      %v348 = vunpack.c.l.b16 %v267
      %v349 = vunpack.c.l.b16 %v268
      %v350 = vunpack.c.l.b16 %v269
      %v351 = vunpack.c.l.b16 %v270
      %v352 = vunpack.c.l.b16 %v271
      %v353 = vunpack.c.l.b16 %v272
      %v354 = vunpack.c.l.b16 %v273
      %v355 = vunpack.c.l.b16 %v274
      %v356 = vunpack.c.l.b16 %v275
      %v357 = vunpack.c.l.b16 %v276
      %v358 = vunpack.c.l.b16 %v277
      %v359 = vunpack.c.l.b16 %v278
      %v360 = vunpack.c.l.b16 %v279
      %v361 = vunpack.c.l.b16 %v280
      %v362 = vunpack.c.l.b16 %v281
      %v363 = vunpack.c.l.b16 %v282
      %v364 = vunpack.c.l.b16 %v283
      %v365 = vunpack.c.l.b16 %v284
      %v366 = vunpack.c.l.b16 %v285
      %v367 = vunpack.c.l.b16 %v286
      %v368 = vpack.c.b16 %v337, %v336
      %v369 = vpack.c.b16 %v339, %v338
      %v370 = vpack.c.b16 %v341, %v340
      %v371 = vpack.c.b16 %v343, %v342
      %v372 = vpack.c.b16 %v345, %v344
      %v373 = vpack.c.b16 %v347, %v346
      %v374 = vpack.c.b16 %v349, %v348
      %v375 = vpack.c.b16 %v351, %v350
      %v376 = vpack.c.b16 %v353, %v352
      %v377 = vpack.c.b16 %v355, %v354
      %v378 = vpack.c.b16 %v357, %v356
      %v379 = vpack.c.b16 %v359, %v358
      %v380 = vpack.c.b16 %v361, %v360
      %v381 = vpack.c.b16 %v363, %v362
      %v382 = vpack.c.b16 %v365, %v364
      %v383 = vpack.c.b16 %v367, %v366
      %v416 = vunpack.c.l.b16 %v288
      %v417 = vunpack.c.l.b16 %v289
      %v418 = vunpack.c.l.b16 %v290
      %v419 = vunpack.c.l.b16 %v291
      %v420 = vunpack.c.l.b16 %v292
      %v421 = vunpack.c.l.b16 %v293
      %v422 = vunpack.c.l.b16 %v294
      %v423 = vunpack.c.l.b16 %v295
      %v424 = vunpack.c.l.b16 %v296
      %v425 = vunpack.c.l.b16 %v297
      %v426 = vunpack.c.l.b16 %v298
      %v427 = vunpack.c.l.b16 %v299
      %v428 = vunpack.c.l.b16 %v300
      %v429 = vunpack.c.l.b16 %v301
      %v430 = vunpack.c.l.b16 %v302
      %v431 = vunpack.c.l.b16 %v303
      %v432 = vpack.c.b16 %v417, %v416
      %v433 = vpack.c.b16 %v419, %v418
      %v434 = vpack.c.b16 %v421, %v420
      %v435 = vpack.c.b16 %v423, %v422
      %v436 = vpack.c.b16 %v425, %v424
      %v437 = vpack.c.b16 %v427, %v426
      %v438 = vpack.c.b16 %v429, %v428
      %v439 = vpack.c.b16 %v431, %v430
      %448 = vmatprep.subr.bf16.mxu0 0
      %449 = vmatpush1.bf16.msra.mxu0 %v439
      %450 = vmatprep.subr.bf16.mxu0 0
      %451 = vmatpush1.bf16.msra.mxu0 %v438
      %452 = vmatprep.subr.bf16.mxu0 0
      %453 = vmatpush1.bf16.msra.mxu0 %v437
      %454 = vmatprep.subr.bf16.mxu0 0
      %455 = vmatpush1.bf16.msra.mxu0 %v436
      %456 = vmatprep.subr.bf16.mxu0 0
      %457 = vmatpush1.bf16.msra.mxu0 %v435
      %458 = vmatprep.subr.bf16.mxu0 0
      %459 = vmatpush1.bf16.msra.mxu0 %v434
      %460 = vmatprep.subr.bf16.mxu0 0
      %461 = vmatpush1.bf16.msra.mxu0 %v433
      %462 = vmatprep.subr.bf16.mxu0 0
      %463 = vmatpush1.bf16.msra.mxu0 %v432
      %464 = vmatprep.subr.bf16.mxu0 0
      %465 = vmatpush2.bf16.msra.mxu0 0
      %466 = vmatprep.subr.bf16.mxu0 0
      %467 = vmatpush2.bf16.msra.mxu0 0
      %468 = vmatprep.subr.bf16.mxu0 0
      %469 = vmatpush2.bf16.msra.mxu0 0
      %470 = vmatprep.subr.bf16.mxu0 0
      %471 = vmatpush2.bf16.msra.mxu0 0
      %472 = vmatprep.subr.bf16.mxu0 0
      %473 = vmatpush2.bf16.msra.mxu0 0
      %474 = vmatprep.subr.bf16.mxu0 0
      %475 = vmatpush2.bf16.msra.mxu0 0
      %476 = vmatprep.subr.bf16.mxu0 0
      %477 = vmatpush2.bf16.msra.mxu0 0
      %478 = vmatprep.subr.bf16.mxu0 0
      %479 = vmatpush2.bf16.msra.mxu0 0
      %480 = vmatprep.mubr.bf16.mxu0 0
      %481 = vmatmul.mubr.bf16.gmra.mxu0 %v368
      %v482 = vpop.f32.mrf.mxu0
      %v483 = vadd.f32 0.0, %v482
      %v484 = vpop.f32.mrf.mxu0
      %v485 = vpop.f32.mrf.mxu0
      %v486 = vadd.f32 0.0, %v485
      %v487 = vpop.f32.mrf.mxu0
      %488 = vmatprep.mubr.bf16.mxu0 0
      %489 = vmatmul.mubr.bf16.gmra.mxu0 %v369
      %v490 = vpop.f32.mrf.mxu0
      %v491 = vadd.f32 0.0, %v490
      %v492 = vpop.f32.mrf.mxu0
      %v493 = vpop.f32.mrf.mxu0
      %v494 = vadd.f32 0.0, %v493
      %v495 = vpop.f32.mrf.mxu0
      %496 = vmatprep.mubr.bf16.mxu0 0
      %497 = vmatmul.mubr.bf16.gmra.mxu0 %v370
      %v498 = vpop.f32.mrf.mxu0
      %v499 = vadd.f32 0.0, %v498
      %v500 = vpop.f32.mrf.mxu0
      %v501 = vpop.f32.mrf.mxu0
      %v502 = vadd.f32 0.0, %v501
      %v503 = vpop.f32.mrf.mxu0
      %504 = vmatprep.mubr.bf16.mxu0 0
      %505 = vmatmul.mubr.bf16.gmra.mxu0 %v371
      %v506 = vpop.f32.mrf.mxu0
      %v507 = vadd.f32 0.0, %v506
      %v508 = vpop.f32.mrf.mxu0
      %v509 = vpop.f32.mrf.mxu0
      %v510 = vadd.f32 0.0, %v509
      %v511 = vpop.f32.mrf.mxu0
      %512 = vmatprep.mubr.bf16.mxu0 0
      %513 = vmatmul.mubr.bf16.gmra.mxu0 %v372
      %v514 = vpop.f32.mrf.mxu0
      %v515 = vadd.f32 0.0, %v514
      %v516 = vpop.f32.mrf.mxu0
      %v517 = vpop.f32.mrf.mxu0
      %v518 = vadd.f32 0.0, %v517
      %v519 = vpop.f32.mrf.mxu0
      %520 = vmatprep.mubr.bf16.mxu0 0
      %521 = vmatmul.mubr.bf16.gmra.mxu0 %v373
      %v522 = vpop.f32.mrf.mxu0
      %v523 = vadd.f32 0.0, %v522
      %v524 = vpop.f32.mrf.mxu0
      %v525 = vpop.f32.mrf.mxu0
      %v526 = vadd.f32 0.0, %v525
      %v527 = vpop.f32.mrf.mxu0
      %528 = vmatprep.mubr.bf16.mxu0 0
      %529 = vmatmul.mubr.bf16.gmra.mxu0 %v374
      %v530 = vpop.f32.mrf.mxu0
      %v531 = vadd.f32 0.0, %v530
      %v532 = vpop.f32.mrf.mxu0
      %v533 = vpop.f32.mrf.mxu0
      %v534 = vadd.f32 0.0, %v533
      %v535 = vpop.f32.mrf.mxu0
      %536 = vmatprep.mubr.bf16.mxu0 0
      %537 = vmatmul.mubr.bf16.gmra.mxu0 %v375
      %v538 = vpop.f32.mrf.mxu0
      %v539 = vadd.f32 0.0, %v538
      %v540 = vpop.f32.mrf.mxu0
      %v541 = vpop.f32.mrf.mxu0
      %v542 = vadd.f32 0.0, %v541
      %v543 = vpop.f32.mrf.mxu0
      %544 = vmatprep.mubr.bf16.mxu0 0
      %545 = vmatmul.mubr.bf16.gmra.mxu0 %v376
      %v546 = vpop.f32.mrf.mxu0
      %v547 = vadd.f32 0.0, %v546
      %v548 = vpop.f32.mrf.mxu0
      %v549 = vpop.f32.mrf.mxu0
      %v550 = vadd.f32 0.0, %v549
      %v551 = vpop.f32.mrf.mxu0
      %552 = vmatprep.mubr.bf16.mxu0 0
      %553 = vmatmul.mubr.bf16.gmra.mxu0 %v377
      %v554 = vpop.f32.mrf.mxu0
      %v555 = vadd.f32 0.0, %v554
      %v556 = vpop.f32.mrf.mxu0
      %v557 = vpop.f32.mrf.mxu0
      %v558 = vadd.f32 0.0, %v557
      %v559 = vpop.f32.mrf.mxu0
      %560 = vmatprep.mubr.bf16.mxu0 0
      %561 = vmatmul.mubr.bf16.gmra.mxu0 %v378
      %v562 = vpop.f32.mrf.mxu0
      %v563 = vadd.f32 0.0, %v562
      %v564 = vpop.f32.mrf.mxu0
      %v565 = vpop.f32.mrf.mxu0
      %v566 = vadd.f32 0.0, %v565
      %v567 = vpop.f32.mrf.mxu0
      %568 = vmatprep.mubr.bf16.mxu0 0
      %569 = vmatmul.mubr.bf16.gmra.mxu0 %v379
      %v570 = vpop.f32.mrf.mxu0
      %v571 = vadd.f32 0.0, %v570
      %v572 = vpop.f32.mrf.mxu0
      %v573 = vpop.f32.mrf.mxu0
      %v574 = vadd.f32 0.0, %v573
      %v575 = vpop.f32.mrf.mxu0
      %576 = vmatprep.mubr.bf16.mxu0 0
      %577 = vmatmul.mubr.bf16.gmra.mxu0 %v380
      %v578 = vpop.f32.mrf.mxu0
      %v579 = vadd.f32 0.0, %v578
      %v580 = vpop.f32.mrf.mxu0
      %v581 = vpop.f32.mrf.mxu0
      %v582 = vadd.f32 0.0, %v581
      %v583 = vpop.f32.mrf.mxu0
      %584 = vmatprep.mubr.bf16.mxu0 0
      %585 = vmatmul.mubr.bf16.gmra.mxu0 %v381
      %v586 = vpop.f32.mrf.mxu0
      %v587 = vadd.f32 0.0, %v586
      %v588 = vpop.f32.mrf.mxu0
      %v589 = vpop.f32.mrf.mxu0
      %v590 = vadd.f32 0.0, %v589
      %v591 = vpop.f32.mrf.mxu0
      %592 = vmatprep.mubr.bf16.mxu0 0
      %593 = vmatmul.mubr.bf16.gmra.mxu0 %v382
      %v594 = vpop.f32.mrf.mxu0
      %v595 = vadd.f32 0.0, %v594
      %v596 = vpop.f32.mrf.mxu0
      %v597 = vpop.f32.mrf.mxu0
      %v598 = vadd.f32 0.0, %v597
      %v599 = vpop.f32.mrf.mxu0
      %600 = vmatprep.mubr.bf16.mxu0 0
      %601 = vmatmul.mubr.bf16.gmra.mxu0 %v383
      %v602 = vpop.f32.mrf.mxu0
      %v603 = vadd.f32 0.0, %v602
      %v604 = vpop.f32.mrf.mxu0
      %v605 = vpop.f32.mrf.mxu0
      %v606 = vadd.f32 0.0, %v605
      %v607 = vpop.f32.mrf.mxu0
      %608 = vdwg.mxu0
      %v641 = vunpack.c.l.b16 %v201
      %v642 = vunpack.c.l.b16 %v202
      %v643 = vunpack.c.l.b16 %v203
      %v644 = vunpack.c.l.b16 %v204
      %v645 = vunpack.c.l.b16 %v205
      %v646 = vunpack.c.l.b16 %v206
      %v647 = vunpack.c.l.b16 %v207
      %v648 = vunpack.c.l.b16 %v208
      %v649 = vunpack.c.l.b16 %v209
      %v650 = vunpack.c.l.b16 %v210
      %v651 = vunpack.c.l.b16 %v211
      %v652 = vunpack.c.l.b16 %v212
      %v653 = vunpack.c.l.b16 %v213
      %v654 = vunpack.c.l.b16 %v214
      %v655 = vunpack.c.l.b16 %v215
      %v656 = vunpack.c.l.b16 %v216
      %v657 = vunpack.c.l.b16 %v217
      %v658 = vunpack.c.l.b16 %v218
      %v659 = vunpack.c.l.b16 %v219
      %v660 = vunpack.c.l.b16 %v220
      %v661 = vunpack.c.l.b16 %v221
      %v662 = vunpack.c.l.b16 %v222
      %v663 = vunpack.c.l.b16 %v223
      %v664 = vunpack.c.l.b16 %v224
      %v665 = vunpack.c.l.b16 %v225
      %v666 = vunpack.c.l.b16 %v226
      %v667 = vunpack.c.l.b16 %v227
      %v668 = vunpack.c.l.b16 %v228
      %v669 = vunpack.c.l.b16 %v229
      %v670 = vunpack.c.l.b16 %v230
      %v671 = vunpack.c.l.b16 %v231
      %v672 = vunpack.c.l.b16 %v232
      %v673 = vpack.c.b16 %v642, %v641
      %v674 = vpack.c.b16 %v644, %v643
      %v675 = vpack.c.b16 %v646, %v645
      %v676 = vpack.c.b16 %v648, %v647
      %v677 = vpack.c.b16 %v650, %v649
      %v678 = vpack.c.b16 %v652, %v651
      %v679 = vpack.c.b16 %v654, %v653
      %v680 = vpack.c.b16 %v656, %v655
      %v681 = vpack.c.b16 %v658, %v657
      %v682 = vpack.c.b16 %v660, %v659
      %v683 = vpack.c.b16 %v662, %v661
      %v684 = vpack.c.b16 %v664, %v663
      %v685 = vpack.c.b16 %v666, %v665
      %v686 = vpack.c.b16 %v668, %v667
      %v687 = vpack.c.b16 %v670, %v669
      %v688 = vpack.c.b16 %v672, %v671
      %v721 = vunpack.c.l.b16 %v233
      %v722 = vunpack.c.l.b16 %v234
      %v723 = vunpack.c.l.b16 %v235
      %v724 = vunpack.c.l.b16 %v236
      %v725 = vunpack.c.l.b16 %v237
      %v726 = vunpack.c.l.b16 %v238
      %v727 = vunpack.c.l.b16 %v239
      %v728 = vunpack.c.l.b16 %v240
      %v729 = vunpack.c.l.b16 %v241
      %v730 = vunpack.c.l.b16 %v242
      %v731 = vunpack.c.l.b16 %v243
      %v732 = vunpack.c.l.b16 %v244
      %v733 = vunpack.c.l.b16 %v245
      %v734 = vunpack.c.l.b16 %v246
      %v735 = vunpack.c.l.b16 %v247
      %v736 = vunpack.c.l.b16 %v248
      %v737 = vpack.c.b16 %v722, %v721
      %v738 = vpack.c.b16 %v724, %v723
      %v739 = vpack.c.b16 %v726, %v725
      %v740 = vpack.c.b16 %v728, %v727
      %v741 = vpack.c.b16 %v730, %v729
      %v742 = vpack.c.b16 %v732, %v731
      %v743 = vpack.c.b16 %v734, %v733
      %v744 = vpack.c.b16 %v736, %v735
      %753 = vmatprep.subr.bf16.mxu0 0
      %754 = vmatpush1.bf16.msra.mxu0 %v744
      %755 = vmatprep.subr.bf16.mxu0 0
      %756 = vmatpush1.bf16.msra.mxu0 %v743
      %757 = vmatprep.subr.bf16.mxu0 0
      %758 = vmatpush1.bf16.msra.mxu0 %v742
      %759 = vmatprep.subr.bf16.mxu0 0
      %760 = vmatpush1.bf16.msra.mxu0 %v741
      %761 = vmatprep.subr.bf16.mxu0 0
      %762 = vmatpush1.bf16.msra.mxu0 %v740
      %763 = vmatprep.subr.bf16.mxu0 0
      %764 = vmatpush1.bf16.msra.mxu0 %v739
      %765 = vmatprep.subr.bf16.mxu0 0
      %766 = vmatpush1.bf16.msra.mxu0 %v738
      %767 = vmatprep.subr.bf16.mxu0 0
      %768 = vmatpush1.bf16.msra.mxu0 %v737
      %769 = vmatprep.subr.bf16.mxu0 0
      %770 = vmatpush2.bf16.msra.mxu0 0
      %771 = vmatprep.subr.bf16.mxu0 0
      %772 = vmatpush2.bf16.msra.mxu0 0
      %773 = vmatprep.subr.bf16.mxu0 0
      %774 = vmatpush2.bf16.msra.mxu0 0
      %775 = vmatprep.subr.bf16.mxu0 0
      %776 = vmatpush2.bf16.msra.mxu0 0
      %777 = vmatprep.subr.bf16.mxu0 0
      %778 = vmatpush2.bf16.msra.mxu0 0
      %779 = vmatprep.subr.bf16.mxu0 0
      %780 = vmatpush2.bf16.msra.mxu0 0
      %781 = vmatprep.subr.bf16.mxu0 0
      %782 = vmatpush2.bf16.msra.mxu0 0
      %783 = vmatprep.subr.bf16.mxu0 0
      %784 = vmatpush2.bf16.msra.mxu0 0
      %785 = vmatprep.mubr.bf16.mxu0 0
      %786 = vmatmul.mubr.bf16.gmra.mxu0 %v673
      %v787 = vpop.f32.mrf.mxu0
      %v788 = vadd.f32 %v483, %v787
      %v789 = vpop.f32.mrf.mxu0
      %v790 = vpop.f32.mrf.mxu0
      %v791 = vadd.f32 %v486, %v790
      %v792 = vpop.f32.mrf.mxu0
      %793 = vmatprep.mubr.bf16.mxu0 0
      %794 = vmatmul.mubr.bf16.gmra.mxu0 %v674
      %v795 = vpop.f32.mrf.mxu0
      %v796 = vadd.f32 %v491, %v795
      %v797 = vpop.f32.mrf.mxu0
      %v798 = vpop.f32.mrf.mxu0
      %v799 = vadd.f32 %v494, %v798
      %v800 = vpop.f32.mrf.mxu0
      %801 = vmatprep.mubr.bf16.mxu0 0
      %802 = vmatmul.mubr.bf16.gmra.mxu0 %v675
      %v803 = vpop.f32.mrf.mxu0
      %v804 = vadd.f32 %v499, %v803
      %v805 = vpop.f32.mrf.mxu0
      %v806 = vpop.f32.mrf.mxu0
      %v807 = vadd.f32 %v502, %v806
      %v808 = vpop.f32.mrf.mxu0
      %809 = vmatprep.mubr.bf16.mxu0 0
      %810 = vmatmul.mubr.bf16.gmra.mxu0 %v676
      %v811 = vpop.f32.mrf.mxu0
      %v812 = vadd.f32 %v507, %v811
      %v813 = vpop.f32.mrf.mxu0
      %v814 = vpop.f32.mrf.mxu0
      %v815 = vadd.f32 %v510, %v814
      %v816 = vpop.f32.mrf.mxu0
      %817 = vmatprep.mubr.bf16.mxu0 0
      %818 = vmatmul.mubr.bf16.gmra.mxu0 %v677
      %v819 = vpop.f32.mrf.mxu0
      %v820 = vadd.f32 %v515, %v819
      %v821 = vpop.f32.mrf.mxu0
      %v822 = vpop.f32.mrf.mxu0
      %v823 = vadd.f32 %v518, %v822
      %v824 = vpop.f32.mrf.mxu0
      %825 = vmatprep.mubr.bf16.mxu0 0
      %826 = vmatmul.mubr.bf16.gmra.mxu0 %v678
      %v827 = vpop.f32.mrf.mxu0
      %v828 = vadd.f32 %v523, %v827
      %v829 = vpop.f32.mrf.mxu0
      %v830 = vpop.f32.mrf.mxu0
      %v831 = vadd.f32 %v526, %v830
      %v832 = vpop.f32.mrf.mxu0
      %833 = vmatprep.mubr.bf16.mxu0 0
      %834 = vmatmul.mubr.bf16.gmra.mxu0 %v679
      %v835 = vpop.f32.mrf.mxu0
      %v836 = vadd.f32 %v531, %v835
      %v837 = vpop.f32.mrf.mxu0
      %v838 = vpop.f32.mrf.mxu0
      %v839 = vadd.f32 %v534, %v838
      %v840 = vpop.f32.mrf.mxu0
      %841 = vmatprep.mubr.bf16.mxu0 0
      %842 = vmatmul.mubr.bf16.gmra.mxu0 %v680
      %v843 = vpop.f32.mrf.mxu0
      %v844 = vadd.f32 %v539, %v843
      %v845 = vpop.f32.mrf.mxu0
      %v846 = vpop.f32.mrf.mxu0
      %v847 = vadd.f32 %v542, %v846
      %v848 = vpop.f32.mrf.mxu0
      %849 = vmatprep.mubr.bf16.mxu0 0
      %850 = vmatmul.mubr.bf16.gmra.mxu0 %v681
      %v851 = vpop.f32.mrf.mxu0
      %v852 = vadd.f32 %v547, %v851
      %v853 = vpop.f32.mrf.mxu0
      %v854 = vpop.f32.mrf.mxu0
      %v855 = vadd.f32 %v550, %v854
      %v856 = vpop.f32.mrf.mxu0
      %857 = vmatprep.mubr.bf16.mxu0 0
      %858 = vmatmul.mubr.bf16.gmra.mxu0 %v682
      %v859 = vpop.f32.mrf.mxu0
      %v860 = vadd.f32 %v555, %v859
      %v861 = vpop.f32.mrf.mxu0
      %v862 = vpop.f32.mrf.mxu0
      %v863 = vadd.f32 %v558, %v862
      %v864 = vpop.f32.mrf.mxu0
      %865 = vmatprep.mubr.bf16.mxu0 0
      %866 = vmatmul.mubr.bf16.gmra.mxu0 %v683
      %v867 = vpop.f32.mrf.mxu0
      %v868 = vadd.f32 %v563, %v867
      %v869 = vpop.f32.mrf.mxu0
      %v870 = vpop.f32.mrf.mxu0
      %v871 = vadd.f32 %v566, %v870
      %v872 = vpop.f32.mrf.mxu0
      %873 = vmatprep.mubr.bf16.mxu0 0
      %874 = vmatmul.mubr.bf16.gmra.mxu0 %v684
      %v875 = vpop.f32.mrf.mxu0
      %v876 = vadd.f32 %v571, %v875
      %v877 = vpop.f32.mrf.mxu0
      %v878 = vpop.f32.mrf.mxu0
      %v879 = vadd.f32 %v574, %v878
      %v880 = vpop.f32.mrf.mxu0
      %881 = vmatprep.mubr.bf16.mxu0 0
      %882 = vmatmul.mubr.bf16.gmra.mxu0 %v685
      %v883 = vpop.f32.mrf.mxu0
      %v884 = vadd.f32 %v579, %v883
      %v885 = vpop.f32.mrf.mxu0
      %v886 = vpop.f32.mrf.mxu0
      %v887 = vadd.f32 %v582, %v886
      %v888 = vpop.f32.mrf.mxu0
      %889 = vmatprep.mubr.bf16.mxu0 0
      %890 = vmatmul.mubr.bf16.gmra.mxu0 %v686
      %v891 = vpop.f32.mrf.mxu0
      %v892 = vadd.f32 %v587, %v891
      %v893 = vpop.f32.mrf.mxu0
      %v894 = vpop.f32.mrf.mxu0
      %v895 = vadd.f32 %v590, %v894
      %v896 = vpop.f32.mrf.mxu0
      %897 = vmatprep.mubr.bf16.mxu0 0
      %898 = vmatmul.mubr.bf16.gmra.mxu0 %v687
      %v899 = vpop.f32.mrf.mxu0
      %v900 = vadd.f32 %v595, %v899
      %v901 = vpop.f32.mrf.mxu0
      %v902 = vpop.f32.mrf.mxu0
      %v903 = vadd.f32 %v598, %v902
      %v904 = vpop.f32.mrf.mxu0
      %905 = vmatprep.mubr.bf16.mxu0 0
      %906 = vmatmul.mubr.bf16.gmra.mxu0 %v688
      %v907 = vpop.f32.mrf.mxu0
      %v908 = vadd.f32 %v603, %v907
      %v909 = vpop.f32.mrf.mxu0
      %v910 = vpop.f32.mrf.mxu0
      %v911 = vadd.f32 %v606, %v910
      %v912 = vpop.f32.mrf.mxu0
      %913 = vdwg.mxu0
      %s914 = sadd.s32 %s195, 36
      %s915 = smul.u32 %s914, 16
      %s916 = sshra.s32 %s915, 3
      %s917 = sand.u32 %s915, 7
      %s918 = smul.addr %s916, 4
      %s919 = scalar_lea.vmem %s183, %s918
      %v920 = vld [vmem:[%s919] sm:$0xf]
      %v921 = vld [vmem:[%s919 + $0x4] sm:$0xf]
      %v922 = vld [vmem:[%s919 + $0x8] sm:$0xf]
      %v923 = vld [vmem:[%s919 + $0xc] sm:$0xf]
      %v924 = vld [vmem:[%s919 + $0x10] sm:$0xf]
      %v925 = vld [vmem:[%s919 + $0x14] sm:$0xf]
      %v926 = vld [vmem:[%s919 + $0x18] sm:$0xf]
      %v927 = vld [vmem:[%s919 + $0x1c] sm:$0xf]
      %v928 = vld [vmem:[%s919 + $0x20] sm:$0xf]
      %v929 = vld [vmem:[%s919 + $0x24] sm:$0xf]
      %v930 = vld [vmem:[%s919 + $0x28] sm:$0xf]
      %v931 = vld [vmem:[%s919 + $0x2c] sm:$0xf]
      %v932 = vld [vmem:[%s919 + $0x30] sm:$0xf]
      %v933 = vld [vmem:[%s919 + $0x34] sm:$0xf]
      %v934 = vld [vmem:[%s919 + $0x38] sm:$0xf]
      %v935 = vld [vmem:[%s919 + $0x3c] sm:$0xf]
      %v936 = vld [vmem:[%s919 + $0x40] sm:$0xf]
      %v937 = vld [vmem:[%s919 + $0x44] sm:$0xf]
      %v938 = vld [vmem:[%s919 + $0x48] sm:$0xf]
      %v939 = vld [vmem:[%s919 + $0x4c] sm:$0xf]
      %v940 = vld [vmem:[%s919 + $0x50] sm:$0xf]
      %v941 = vld [vmem:[%s919 + $0x54] sm:$0xf]
      %v942 = vld [vmem:[%s919 + $0x58] sm:$0xf]
      %v943 = vld [vmem:[%s919 + $0x5c] sm:$0xf]
      %v944 = vld [vmem:[%s919 + $0x60] sm:$0xf]
      %v945 = vld [vmem:[%s919 + $0x64] sm:$0xf]
      %v946 = vld [vmem:[%s919 + $0x68] sm:$0xf]
      %v947 = vld [vmem:[%s919 + $0x6c] sm:$0xf]
      %v948 = vld [vmem:[%s919 + $0x70] sm:$0xf]
      %v949 = vld [vmem:[%s919 + $0x74] sm:$0xf]
      %v950 = vld [vmem:[%s919 + $0x78] sm:$0xf]
      %v951 = vld [vmem:[%s919 + $0x7c] sm:$0xf]
      %s952 = scalar_lea.vmem %s1, 128
      %v953 = vld [vmem:[%s952] sm:$0xf]
      %v954 = vld [vmem:[%s952 + $0x4] sm:$0xf]
      %v955 = vld [vmem:[%s952 + $0x8] sm:$0xf]
      %v956 = vld [vmem:[%s952 + $0xc] sm:$0xf]
      %v957 = vld [vmem:[%s952 + $0x10] sm:$0xf]
      %v958 = vld [vmem:[%s952 + $0x14] sm:$0xf]
      %v959 = vld [vmem:[%s952 + $0x18] sm:$0xf]
      %v960 = vld [vmem:[%s952 + $0x1c] sm:$0xf]
      %v961 = vld [vmem:[%s952 + $0x20] sm:$0xf]
      %v962 = vld [vmem:[%s952 + $0x24] sm:$0xf]
      %v963 = vld [vmem:[%s952 + $0x28] sm:$0xf]
      %v964 = vld [vmem:[%s952 + $0x2c] sm:$0xf]
      %v965 = vld [vmem:[%s952 + $0x30] sm:$0xf]
      %v966 = vld [vmem:[%s952 + $0x34] sm:$0xf]
      %v967 = vld [vmem:[%s952 + $0x38] sm:$0xf]
      %v968 = vld [vmem:[%s952 + $0x3c] sm:$0xf]
      %v1001 = vunpack.c.l.b16 %v920
      %v1002 = vunpack.c.l.b16 %v921
      %v1003 = vunpack.c.l.b16 %v922
      %v1004 = vunpack.c.l.b16 %v923
      %v1005 = vunpack.c.l.b16 %v924
      %v1006 = vunpack.c.l.b16 %v925
      %v1007 = vunpack.c.l.b16 %v926
      %v1008 = vunpack.c.l.b16 %v927
      %v1009 = vunpack.c.l.b16 %v928
      %v1010 = vunpack.c.l.b16 %v929
      %v1011 = vunpack.c.l.b16 %v930
      %v1012 = vunpack.c.l.b16 %v931
      %v1013 = vunpack.c.l.b16 %v932
      %v1014 = vunpack.c.l.b16 %v933
      %v1015 = vunpack.c.l.b16 %v934
      %v1016 = vunpack.c.l.b16 %v935
      %v1017 = vunpack.c.l.b16 %v936
      %v1018 = vunpack.c.l.b16 %v937
      %v1019 = vunpack.c.l.b16 %v938
      %v1020 = vunpack.c.l.b16 %v939
      %v1021 = vunpack.c.l.b16 %v940
      %v1022 = vunpack.c.l.b16 %v941
      %v1023 = vunpack.c.l.b16 %v942
      %v1024 = vunpack.c.l.b16 %v943
      %v1025 = vunpack.c.l.b16 %v944
      %v1026 = vunpack.c.l.b16 %v945
      %v1027 = vunpack.c.l.b16 %v946
      %v1028 = vunpack.c.l.b16 %v947
      %v1029 = vunpack.c.l.b16 %v948
      %v1030 = vunpack.c.l.b16 %v949
      %v1031 = vunpack.c.l.b16 %v950
      %v1032 = vunpack.c.l.b16 %v951
      %v1033 = vpack.c.b16 %v1002, %v1001
      %v1034 = vpack.c.b16 %v1004, %v1003
      %v1035 = vpack.c.b16 %v1006, %v1005
      %v1036 = vpack.c.b16 %v1008, %v1007
      %v1037 = vpack.c.b16 %v1010, %v1009
      %v1038 = vpack.c.b16 %v1012, %v1011
      %v1039 = vpack.c.b16 %v1014, %v1013
      %v1040 = vpack.c.b16 %v1016, %v1015
      %v1041 = vpack.c.b16 %v1018, %v1017
      %v1042 = vpack.c.b16 %v1020, %v1019
      %v1043 = vpack.c.b16 %v1022, %v1021
      %v1044 = vpack.c.b16 %v1024, %v1023
      %v1045 = vpack.c.b16 %v1026, %v1025
      %v1046 = vpack.c.b16 %v1028, %v1027
      %v1047 = vpack.c.b16 %v1030, %v1029
      %v1048 = vpack.c.b16 %v1032, %v1031
      %v1081 = vunpack.c.l.b16 %v953
      %v1082 = vunpack.c.l.b16 %v954
      %v1083 = vunpack.c.l.b16 %v955
      %v1084 = vunpack.c.l.b16 %v956
      %v1085 = vunpack.c.l.b16 %v957
      %v1086 = vunpack.c.l.b16 %v958
      %v1087 = vunpack.c.l.b16 %v959
      %v1088 = vunpack.c.l.b16 %v960
      %v1089 = vunpack.c.l.b16 %v961
      %v1090 = vunpack.c.l.b16 %v962
      %v1091 = vunpack.c.l.b16 %v963
      %v1092 = vunpack.c.l.b16 %v964
      %v1093 = vunpack.c.l.b16 %v965
      %v1094 = vunpack.c.l.b16 %v966
      %v1095 = vunpack.c.l.b16 %v967
      %v1096 = vunpack.c.l.b16 %v968
      %v1097 = vpack.c.b16 %v1082, %v1081
      %v1098 = vpack.c.b16 %v1084, %v1083
      %v1099 = vpack.c.b16 %v1086, %v1085
      %v1100 = vpack.c.b16 %v1088, %v1087
      %v1101 = vpack.c.b16 %v1090, %v1089
      %v1102 = vpack.c.b16 %v1092, %v1091
      %v1103 = vpack.c.b16 %v1094, %v1093
      %v1104 = vpack.c.b16 %v1096, %v1095
      %1113 = vmatprep.subr.bf16.mxu0 0
      %1114 = vmatpush1.bf16.msra.mxu0 %v1104
      %1115 = vmatprep.subr.bf16.mxu0 0
      %1116 = vmatpush1.bf16.msra.mxu0 %v1103
      %1117 = vmatprep.subr.bf16.mxu0 0
      %1118 = vmatpush1.bf16.msra.mxu0 %v1102
      %1119 = vmatprep.subr.bf16.mxu0 0
      %1120 = vmatpush1.bf16.msra.mxu0 %v1101
      %1121 = vmatprep.subr.bf16.mxu0 0
      %1122 = vmatpush1.bf16.msra.mxu0 %v1100
      %1123 = vmatprep.subr.bf16.mxu0 0
      %1124 = vmatpush1.bf16.msra.mxu0 %v1099
      %1125 = vmatprep.subr.bf16.mxu0 0
      %1126 = vmatpush1.bf16.msra.mxu0 %v1098
      %1127 = vmatprep.subr.bf16.mxu0 0
      %1128 = vmatpush1.bf16.msra.mxu0 %v1097
      %1129 = vmatprep.subr.bf16.mxu0 0
      %1130 = vmatpush2.bf16.msra.mxu0 0
      %1131 = vmatprep.subr.bf16.mxu0 0
      %1132 = vmatpush2.bf16.msra.mxu0 0
      %1133 = vmatprep.subr.bf16.mxu0 0
      %1134 = vmatpush2.bf16.msra.mxu0 0
      %1135 = vmatprep.subr.bf16.mxu0 0
      %1136 = vmatpush2.bf16.msra.mxu0 0
      %1137 = vmatprep.subr.bf16.mxu0 0
      %1138 = vmatpush2.bf16.msra.mxu0 0
      %1139 = vmatprep.subr.bf16.mxu0 0
      %1140 = vmatpush2.bf16.msra.mxu0 0
      %1141 = vmatprep.subr.bf16.mxu0 0
      %1142 = vmatpush2.bf16.msra.mxu0 0
      %1143 = vmatprep.subr.bf16.mxu0 0
      %1144 = vmatpush2.bf16.msra.mxu0 0
      %1145 = vmatprep.mubr.bf16.mxu0 0
      %1146 = vmatmul.mubr.bf16.gmra.mxu0 %v1033
      %v1147 = vpop.f32.mrf.mxu0
      %v1148 = vadd.f32 0.0, %v1147
      %v1149 = vpop.f32.mrf.mxu0
      %v1150 = vpop.f32.mrf.mxu0
      %v1151 = vadd.f32 0.0, %v1150
      %v1152 = vpop.f32.mrf.mxu0
      %1153 = vmatprep.mubr.bf16.mxu0 0
      %1154 = vmatmul.mubr.bf16.gmra.mxu0 %v1034
      %v1155 = vpop.f32.mrf.mxu0
      %v1156 = vadd.f32 0.0, %v1155
      %v1157 = vpop.f32.mrf.mxu0
      %v1158 = vpop.f32.mrf.mxu0
      %v1159 = vadd.f32 0.0, %v1158
      %v1160 = vpop.f32.mrf.mxu0
      %1161 = vmatprep.mubr.bf16.mxu0 0
      %1162 = vmatmul.mubr.bf16.gmra.mxu0 %v1035
      %v1163 = vpop.f32.mrf.mxu0
      %v1164 = vadd.f32 0.0, %v1163
      %v1165 = vpop.f32.mrf.mxu0
      %v1166 = vpop.f32.mrf.mxu0
      %v1167 = vadd.f32 0.0, %v1166
      %v1168 = vpop.f32.mrf.mxu0
      %1169 = vmatprep.mubr.bf16.mxu0 0
      %1170 = vmatmul.mubr.bf16.gmra.mxu0 %v1036
      %v1171 = vpop.f32.mrf.mxu0
      %v1172 = vadd.f32 0.0, %v1171
      %v1173 = vpop.f32.mrf.mxu0
      %v1174 = vpop.f32.mrf.mxu0
      %v1175 = vadd.f32 0.0, %v1174
      %v1176 = vpop.f32.mrf.mxu0
      %1177 = vmatprep.mubr.bf16.mxu0 0
      %1178 = vmatmul.mubr.bf16.gmra.mxu0 %v1037
      %v1179 = vpop.f32.mrf.mxu0
      %v1180 = vadd.f32 0.0, %v1179
      %v1181 = vpop.f32.mrf.mxu0
      %v1182 = vpop.f32.mrf.mxu0
      %v1183 = vadd.f32 0.0, %v1182
      %v1184 = vpop.f32.mrf.mxu0
      %1185 = vmatprep.mubr.bf16.mxu0 0
      %1186 = vmatmul.mubr.bf16.gmra.mxu0 %v1038
      %v1187 = vpop.f32.mrf.mxu0
      %v1188 = vadd.f32 0.0, %v1187
      %v1189 = vpop.f32.mrf.mxu0
      %v1190 = vpop.f32.mrf.mxu0
      %v1191 = vadd.f32 0.0, %v1190
      %v1192 = vpop.f32.mrf.mxu0
      %1193 = vmatprep.mubr.bf16.mxu0 0
      %1194 = vmatmul.mubr.bf16.gmra.mxu0 %v1039
      %v1195 = vpop.f32.mrf.mxu0
      %v1196 = vadd.f32 0.0, %v1195
      %v1197 = vpop.f32.mrf.mxu0
      %v1198 = vpop.f32.mrf.mxu0
      %v1199 = vadd.f32 0.0, %v1198
      %v1200 = vpop.f32.mrf.mxu0
      %1201 = vmatprep.mubr.bf16.mxu0 0
      %1202 = vmatmul.mubr.bf16.gmra.mxu0 %v1040
      %v1203 = vpop.f32.mrf.mxu0
      %v1204 = vadd.f32 0.0, %v1203
      %v1205 = vpop.f32.mrf.mxu0
      %v1206 = vpop.f32.mrf.mxu0
      %v1207 = vadd.f32 0.0, %v1206
      %v1208 = vpop.f32.mrf.mxu0
      %1209 = vmatprep.mubr.bf16.mxu0 0
      %1210 = vmatmul.mubr.bf16.gmra.mxu0 %v1041
      %v1211 = vpop.f32.mrf.mxu0
      %v1212 = vadd.f32 0.0, %v1211
      %v1213 = vpop.f32.mrf.mxu0
      %v1214 = vpop.f32.mrf.mxu0
      %v1215 = vadd.f32 0.0, %v1214
      %v1216 = vpop.f32.mrf.mxu0
      %1217 = vmatprep.mubr.bf16.mxu0 0
      %1218 = vmatmul.mubr.bf16.gmra.mxu0 %v1042
      %v1219 = vpop.f32.mrf.mxu0
      %v1220 = vadd.f32 0.0, %v1219
      %v1221 = vpop.f32.mrf.mxu0
      %v1222 = vpop.f32.mrf.mxu0
      %v1223 = vadd.f32 0.0, %v1222
      %v1224 = vpop.f32.mrf.mxu0
      %1225 = vmatprep.mubr.bf16.mxu0 0
      %1226 = vmatmul.mubr.bf16.gmra.mxu0 %v1043
      %v1227 = vpop.f32.mrf.mxu0
      %v1228 = vadd.f32 0.0, %v1227
      %v1229 = vpop.f32.mrf.mxu0
      %v1230 = vpop.f32.mrf.mxu0
      %v1231 = vadd.f32 0.0, %v1230
      %v1232 = vpop.f32.mrf.mxu0
      %1233 = vmatprep.mubr.bf16.mxu0 0
      %1234 = vmatmul.mubr.bf16.gmra.mxu0 %v1044
      %v1235 = vpop.f32.mrf.mxu0
      %v1236 = vadd.f32 0.0, %v1235
      %v1237 = vpop.f32.mrf.mxu0
      %v1238 = vpop.f32.mrf.mxu0
      %v1239 = vadd.f32 0.0, %v1238
      %v1240 = vpop.f32.mrf.mxu0
      %1241 = vmatprep.mubr.bf16.mxu0 0
      %1242 = vmatmul.mubr.bf16.gmra.mxu0 %v1045
      %v1243 = vpop.f32.mrf.mxu0
      %v1244 = vadd.f32 0.0, %v1243
      %v1245 = vpop.f32.mrf.mxu0
      %v1246 = vpop.f32.mrf.mxu0
      %v1247 = vadd.f32 0.0, %v1246
      %v1248 = vpop.f32.mrf.mxu0
      %1249 = vmatprep.mubr.bf16.mxu0 0
      %1250 = vmatmul.mubr.bf16.gmra.mxu0 %v1046
      %v1251 = vpop.f32.mrf.mxu0
      %v1252 = vadd.f32 0.0, %v1251
      %v1253 = vpop.f32.mrf.mxu0
      %v1254 = vpop.f32.mrf.mxu0
      %v1255 = vadd.f32 0.0, %v1254
      %v1256 = vpop.f32.mrf.mxu0
      %1257 = vmatprep.mubr.bf16.mxu0 0
      %1258 = vmatmul.mubr.bf16.gmra.mxu0 %v1047
      %v1259 = vpop.f32.mrf.mxu0
      %v1260 = vadd.f32 0.0, %v1259
      %v1261 = vpop.f32.mrf.mxu0
      %v1262 = vpop.f32.mrf.mxu0
      %v1263 = vadd.f32 0.0, %v1262
      %v1264 = vpop.f32.mrf.mxu0
      %1265 = vmatprep.mubr.bf16.mxu0 0
      %1266 = vmatmul.mubr.bf16.gmra.mxu0 %v1048
      %v1267 = vpop.f32.mrf.mxu0
      %v1268 = vadd.f32 0.0, %v1267
      %v1269 = vpop.f32.mrf.mxu0
      %v1270 = vpop.f32.mrf.mxu0
      %v1271 = vadd.f32 0.0, %v1270
      %v1272 = vpop.f32.mrf.mxu0
      %1273 = vdwg.mxu0
      %v1274 = vadd.f32 %v788, %v1148
      %v1275 = vadd.f32 %v791, %v1151
      %v1276 = vadd.f32 %v796, %v1156
      %v1277 = vadd.f32 %v799, %v1159
      %v1278 = vadd.f32 %v804, %v1164
      %v1279 = vadd.f32 %v807, %v1167
      %v1280 = vadd.f32 %v812, %v1172
      %v1281 = vadd.f32 %v815, %v1175
      %v1282 = vadd.f32 %v820, %v1180
      %v1283 = vadd.f32 %v823, %v1183
      %v1284 = vadd.f32 %v828, %v1188
      %v1285 = vadd.f32 %v831, %v1191
      %v1286 = vadd.f32 %v836, %v1196
      %v1287 = vadd.f32 %v839, %v1199
      %v1288 = vadd.f32 %v844, %v1204
      %v1289 = vadd.f32 %v847, %v1207
      %v1290 = vadd.f32 %v852, %v1212
      %v1291 = vadd.f32 %v855, %v1215
      %v1292 = vadd.f32 %v860, %v1220
      %v1293 = vadd.f32 %v863, %v1223
      %v1294 = vadd.f32 %v868, %v1228
      %v1295 = vadd.f32 %v871, %v1231
      %v1296 = vadd.f32 %v876, %v1236
      %v1297 = vadd.f32 %v879, %v1239
      %v1298 = vadd.f32 %v884, %v1244
      %v1299 = vadd.f32 %v887, %v1247
      %v1300 = vadd.f32 %v892, %v1252
      %v1301 = vadd.f32 %v895, %v1255
      %v1302 = vadd.f32 %v900, %v1260
      %v1303 = vadd.f32 %v903, %v1263
      %v1304 = vadd.f32 %v908, %v1268
      %v1305 = vadd.f32 %v911, %v1271
      %s1306 = sadd.s32 %s195, 1
      %s1307 = smul.u32 %s1306, 16
      %s1308 = sshra.s32 %s1307, 3
      %s1309 = sand.u32 %s1307, 7
      %s1310 = smul.addr %s1308, 4
      %s1311 = scalar_lea.vmem %s183, %s1310
      %v1312 = vld [vmem:[%s1311] sm:$0xf]
      %v1313 = vld [vmem:[%s1311 + $0x4] sm:$0xf]
      %v1314 = vld [vmem:[%s1311 + $0x8] sm:$0xf]
      %v1315 = vld [vmem:[%s1311 + $0xc] sm:$0xf]
      %v1316 = vld [vmem:[%s1311 + $0x10] sm:$0xf]
      %v1317 = vld [vmem:[%s1311 + $0x14] sm:$0xf]
      %v1318 = vld [vmem:[%s1311 + $0x18] sm:$0xf]
      %v1319 = vld [vmem:[%s1311 + $0x1c] sm:$0xf]
      %v1320 = vld [vmem:[%s1311 + $0x20] sm:$0xf]
      %v1321 = vld [vmem:[%s1311 + $0x24] sm:$0xf]
      %v1322 = vld [vmem:[%s1311 + $0x28] sm:$0xf]
      %v1323 = vld [vmem:[%s1311 + $0x2c] sm:$0xf]
      %v1324 = vld [vmem:[%s1311 + $0x30] sm:$0xf]
      %v1325 = vld [vmem:[%s1311 + $0x34] sm:$0xf]
      %v1326 = vld [vmem:[%s1311 + $0x38] sm:$0xf]
      %v1327 = vld [vmem:[%s1311 + $0x3c] sm:$0xf]
      %v1328 = vld [vmem:[%s1311 + $0x40] sm:$0xf]
      %v1329 = vld [vmem:[%s1311 + $0x44] sm:$0xf]
      %v1330 = vld [vmem:[%s1311 + $0x48] sm:$0xf]
      %v1331 = vld [vmem:[%s1311 + $0x4c] sm:$0xf]
      %v1332 = vld [vmem:[%s1311 + $0x50] sm:$0xf]
      %v1333 = vld [vmem:[%s1311 + $0x54] sm:$0xf]
      %v1334 = vld [vmem:[%s1311 + $0x58] sm:$0xf]
      %v1335 = vld [vmem:[%s1311 + $0x5c] sm:$0xf]
      %v1336 = vld [vmem:[%s1311 + $0x60] sm:$0xf]
      %v1337 = vld [vmem:[%s1311 + $0x64] sm:$0xf]
      %v1338 = vld [vmem:[%s1311 + $0x68] sm:$0xf]
      %v1339 = vld [vmem:[%s1311 + $0x6c] sm:$0xf]
      %v1340 = vld [vmem:[%s1311 + $0x70] sm:$0xf]
      %v1341 = vld [vmem:[%s1311 + $0x74] sm:$0xf]
      %v1342 = vld [vmem:[%s1311 + $0x78] sm:$0xf]
      %v1343 = vld [vmem:[%s1311 + $0x7c] sm:$0xf]
      %s1344 = scalar_lea.vmem %s1, 192
      %v1345 = vld [vmem:[%s1344] sm:$0xf]
      %v1346 = vld [vmem:[%s1344 + $0x4] sm:$0xf]
      %v1347 = vld [vmem:[%s1344 + $0x8] sm:$0xf]
      %v1348 = vld [vmem:[%s1344 + $0xc] sm:$0xf]
      %v1349 = vld [vmem:[%s1344 + $0x10] sm:$0xf]
      %v1350 = vld [vmem:[%s1344 + $0x14] sm:$0xf]
      %v1351 = vld [vmem:[%s1344 + $0x18] sm:$0xf]
      %v1352 = vld [vmem:[%s1344 + $0x1c] sm:$0xf]
      %v1353 = vld [vmem:[%s1344 + $0x20] sm:$0xf]
      %v1354 = vld [vmem:[%s1344 + $0x24] sm:$0xf]
      %v1355 = vld [vmem:[%s1344 + $0x28] sm:$0xf]
      %v1356 = vld [vmem:[%s1344 + $0x2c] sm:$0xf]
      %v1357 = vld [vmem:[%s1344 + $0x30] sm:$0xf]
      %v1358 = vld [vmem:[%s1344 + $0x34] sm:$0xf]
      %v1359 = vld [vmem:[%s1344 + $0x38] sm:$0xf]
      %v1360 = vld [vmem:[%s1344 + $0x3c] sm:$0xf]
      %v1393 = vunpack.c.l.b16 %v1312
      %v1394 = vunpack.c.l.b16 %v1313
      %v1395 = vunpack.c.l.b16 %v1314
      %v1396 = vunpack.c.l.b16 %v1315
      %v1397 = vunpack.c.l.b16 %v1316
      %v1398 = vunpack.c.l.b16 %v1317
      %v1399 = vunpack.c.l.b16 %v1318
      %v1400 = vunpack.c.l.b16 %v1319
      %v1401 = vunpack.c.l.b16 %v1320
      %v1402 = vunpack.c.l.b16 %v1321
      %v1403 = vunpack.c.l.b16 %v1322
      %v1404 = vunpack.c.l.b16 %v1323
      %v1405 = vunpack.c.l.b16 %v1324
      %v1406 = vunpack.c.l.b16 %v1325
      %v1407 = vunpack.c.l.b16 %v1326
      %v1408 = vunpack.c.l.b16 %v1327
      %v1409 = vunpack.c.l.b16 %v1328
      %v1410 = vunpack.c.l.b16 %v1329
      %v1411 = vunpack.c.l.b16 %v1330
      %v1412 = vunpack.c.l.b16 %v1331
      %v1413 = vunpack.c.l.b16 %v1332
      %v1414 = vunpack.c.l.b16 %v1333
      %v1415 = vunpack.c.l.b16 %v1334
      %v1416 = vunpack.c.l.b16 %v1335
      %v1417 = vunpack.c.l.b16 %v1336
      %v1418 = vunpack.c.l.b16 %v1337
      %v1419 = vunpack.c.l.b16 %v1338
      %v1420 = vunpack.c.l.b16 %v1339
      %v1421 = vunpack.c.l.b16 %v1340
      %v1422 = vunpack.c.l.b16 %v1341
      %v1423 = vunpack.c.l.b16 %v1342
      %v1424 = vunpack.c.l.b16 %v1343
      %v1425 = vpack.c.b16 %v1394, %v1393
      %v1426 = vpack.c.b16 %v1396, %v1395
      %v1427 = vpack.c.b16 %v1398, %v1397
      %v1428 = vpack.c.b16 %v1400, %v1399
      %v1429 = vpack.c.b16 %v1402, %v1401
      %v1430 = vpack.c.b16 %v1404, %v1403
      %v1431 = vpack.c.b16 %v1406, %v1405
      %v1432 = vpack.c.b16 %v1408, %v1407
      %v1433 = vpack.c.b16 %v1410, %v1409
      %v1434 = vpack.c.b16 %v1412, %v1411
      %v1435 = vpack.c.b16 %v1414, %v1413
      %v1436 = vpack.c.b16 %v1416, %v1415
      %v1437 = vpack.c.b16 %v1418, %v1417
      %v1438 = vpack.c.b16 %v1420, %v1419
      %v1439 = vpack.c.b16 %v1422, %v1421
      %v1440 = vpack.c.b16 %v1424, %v1423
      %v1473 = vunpack.c.l.b16 %v1345
      %v1474 = vunpack.c.l.b16 %v1346
      %v1475 = vunpack.c.l.b16 %v1347
      %v1476 = vunpack.c.l.b16 %v1348
      %v1477 = vunpack.c.l.b16 %v1349
      %v1478 = vunpack.c.l.b16 %v1350
      %v1479 = vunpack.c.l.b16 %v1351
      %v1480 = vunpack.c.l.b16 %v1352
      %v1481 = vunpack.c.l.b16 %v1353
      %v1482 = vunpack.c.l.b16 %v1354
      %v1483 = vunpack.c.l.b16 %v1355
      %v1484 = vunpack.c.l.b16 %v1356
      %v1485 = vunpack.c.l.b16 %v1357
      %v1486 = vunpack.c.l.b16 %v1358
      %v1487 = vunpack.c.l.b16 %v1359
      %v1488 = vunpack.c.l.b16 %v1360
      %v1489 = vpack.c.b16 %v1474, %v1473
      %v1490 = vpack.c.b16 %v1476, %v1475
      %v1491 = vpack.c.b16 %v1478, %v1477
      %v1492 = vpack.c.b16 %v1480, %v1479
      %v1493 = vpack.c.b16 %v1482, %v1481
      %v1494 = vpack.c.b16 %v1484, %v1483
      %v1495 = vpack.c.b16 %v1486, %v1485
      %v1496 = vpack.c.b16 %v1488, %v1487
      %1505 = vmatprep.subr.bf16.mxu0 0
      %1506 = vmatpush1.bf16.msra.mxu0 %v1496
      %1507 = vmatprep.subr.bf16.mxu0 0
      %1508 = vmatpush1.bf16.msra.mxu0 %v1495
      %1509 = vmatprep.subr.bf16.mxu0 0
      %1510 = vmatpush1.bf16.msra.mxu0 %v1494
      %1511 = vmatprep.subr.bf16.mxu0 0
      %1512 = vmatpush1.bf16.msra.mxu0 %v1493
      %1513 = vmatprep.subr.bf16.mxu0 0
      %1514 = vmatpush1.bf16.msra.mxu0 %v1492
      %1515 = vmatprep.subr.bf16.mxu0 0
      %1516 = vmatpush1.bf16.msra.mxu0 %v1491
      %1517 = vmatprep.subr.bf16.mxu0 0
      %1518 = vmatpush1.bf16.msra.mxu0 %v1490
      %1519 = vmatprep.subr.bf16.mxu0 0
      %1520 = vmatpush1.bf16.msra.mxu0 %v1489
      %1521 = vmatprep.subr.bf16.mxu0 0
      %1522 = vmatpush2.bf16.msra.mxu0 0
      %1523 = vmatprep.subr.bf16.mxu0 0
      %1524 = vmatpush2.bf16.msra.mxu0 0
      %1525 = vmatprep.subr.bf16.mxu0 0
      %1526 = vmatpush2.bf16.msra.mxu0 0
      %1527 = vmatprep.subr.bf16.mxu0 0
      %1528 = vmatpush2.bf16.msra.mxu0 0
      %1529 = vmatprep.subr.bf16.mxu0 0
      %1530 = vmatpush2.bf16.msra.mxu0 0
      %1531 = vmatprep.subr.bf16.mxu0 0
      %1532 = vmatpush2.bf16.msra.mxu0 0
      %1533 = vmatprep.subr.bf16.mxu0 0
      %1534 = vmatpush2.bf16.msra.mxu0 0
      %1535 = vmatprep.subr.bf16.mxu0 0
      %1536 = vmatpush2.bf16.msra.mxu0 0
      %1537 = vmatprep.mubr.bf16.mxu0 0
      %1538 = vmatmul.mubr.bf16.gmra.mxu0 %v1425
      %v1539 = vpop.f32.mrf.mxu0
      %v1540 = vadd.f32 0.0, %v1539
      %v1541 = vpop.f32.mrf.mxu0
      %v1542 = vpop.f32.mrf.mxu0
      %v1543 = vadd.f32 0.0, %v1542
      %v1544 = vpop.f32.mrf.mxu0
      %1545 = vmatprep.mubr.bf16.mxu0 0
      %1546 = vmatmul.mubr.bf16.gmra.mxu0 %v1426
      %v1547 = vpop.f32.mrf.mxu0
      %v1548 = vadd.f32 0.0, %v1547
      %v1549 = vpop.f32.mrf.mxu0
      %v1550 = vpop.f32.mrf.mxu0
      %v1551 = vadd.f32 0.0, %v1550
      %v1552 = vpop.f32.mrf.mxu0
      %1553 = vmatprep.mubr.bf16.mxu0 0
      %1554 = vmatmul.mubr.bf16.gmra.mxu0 %v1427
      %v1555 = vpop.f32.mrf.mxu0
      %v1556 = vadd.f32 0.0, %v1555
      %v1557 = vpop.f32.mrf.mxu0
      %v1558 = vpop.f32.mrf.mxu0
      %v1559 = vadd.f32 0.0, %v1558
      %v1560 = vpop.f32.mrf.mxu0
      %1561 = vmatprep.mubr.bf16.mxu0 0
      %1562 = vmatmul.mubr.bf16.gmra.mxu0 %v1428
      %v1563 = vpop.f32.mrf.mxu0
      %v1564 = vadd.f32 0.0, %v1563
      %v1565 = vpop.f32.mrf.mxu0
      %v1566 = vpop.f32.mrf.mxu0
      %v1567 = vadd.f32 0.0, %v1566
      %v1568 = vpop.f32.mrf.mxu0
      %1569 = vmatprep.mubr.bf16.mxu0 0
      %1570 = vmatmul.mubr.bf16.gmra.mxu0 %v1429
      %v1571 = vpop.f32.mrf.mxu0
      %v1572 = vadd.f32 0.0, %v1571
      %v1573 = vpop.f32.mrf.mxu0
      %v1574 = vpop.f32.mrf.mxu0
      %v1575 = vadd.f32 0.0, %v1574
      %v1576 = vpop.f32.mrf.mxu0
      %1577 = vmatprep.mubr.bf16.mxu0 0
      %1578 = vmatmul.mubr.bf16.gmra.mxu0 %v1430
      %v1579 = vpop.f32.mrf.mxu0
      %v1580 = vadd.f32 0.0, %v1579
      %v1581 = vpop.f32.mrf.mxu0
      %v1582 = vpop.f32.mrf.mxu0
      %v1583 = vadd.f32 0.0, %v1582
      %v1584 = vpop.f32.mrf.mxu0
      %1585 = vmatprep.mubr.bf16.mxu0 0
      %1586 = vmatmul.mubr.bf16.gmra.mxu0 %v1431
      %v1587 = vpop.f32.mrf.mxu0
      %v1588 = vadd.f32 0.0, %v1587
      %v1589 = vpop.f32.mrf.mxu0
      %v1590 = vpop.f32.mrf.mxu0
      %v1591 = vadd.f32 0.0, %v1590
      %v1592 = vpop.f32.mrf.mxu0
      %1593 = vmatprep.mubr.bf16.mxu0 0
      %1594 = vmatmul.mubr.bf16.gmra.mxu0 %v1432
      %v1595 = vpop.f32.mrf.mxu0
      %v1596 = vadd.f32 0.0, %v1595
      %v1597 = vpop.f32.mrf.mxu0
      %v1598 = vpop.f32.mrf.mxu0
      %v1599 = vadd.f32 0.0, %v1598
      %v1600 = vpop.f32.mrf.mxu0
      %1601 = vmatprep.mubr.bf16.mxu0 0
      %1602 = vmatmul.mubr.bf16.gmra.mxu0 %v1433
      %v1603 = vpop.f32.mrf.mxu0
      %v1604 = vadd.f32 0.0, %v1603
      %v1605 = vpop.f32.mrf.mxu0
      %v1606 = vpop.f32.mrf.mxu0
      %v1607 = vadd.f32 0.0, %v1606
      %v1608 = vpop.f32.mrf.mxu0
      %1609 = vmatprep.mubr.bf16.mxu0 0
      %1610 = vmatmul.mubr.bf16.gmra.mxu0 %v1434
      %v1611 = vpop.f32.mrf.mxu0
      %v1612 = vadd.f32 0.0, %v1611
      %v1613 = vpop.f32.mrf.mxu0
      %v1614 = vpop.f32.mrf.mxu0
      %v1615 = vadd.f32 0.0, %v1614
      %v1616 = vpop.f32.mrf.mxu0
      %1617 = vmatprep.mubr.bf16.mxu0 0
      %1618 = vmatmul.mubr.bf16.gmra.mxu0 %v1435
      %v1619 = vpop.f32.mrf.mxu0
      %v1620 = vadd.f32 0.0, %v1619
      %v1621 = vpop.f32.mrf.mxu0
      %v1622 = vpop.f32.mrf.mxu0
      %v1623 = vadd.f32 0.0, %v1622
      %v1624 = vpop.f32.mrf.mxu0
      %1625 = vmatprep.mubr.bf16.mxu0 0
      %1626 = vmatmul.mubr.bf16.gmra.mxu0 %v1436
      %v1627 = vpop.f32.mrf.mxu0
      %v1628 = vadd.f32 0.0, %v1627
      %v1629 = vpop.f32.mrf.mxu0
      %v1630 = vpop.f32.mrf.mxu0
      %v1631 = vadd.f32 0.0, %v1630
      %v1632 = vpop.f32.mrf.mxu0
      %1633 = vmatprep.mubr.bf16.mxu0 0
      %1634 = vmatmul.mubr.bf16.gmra.mxu0 %v1437
      %v1635 = vpop.f32.mrf.mxu0
      %v1636 = vadd.f32 0.0, %v1635
      %v1637 = vpop.f32.mrf.mxu0
      %v1638 = vpop.f32.mrf.mxu0
      %v1639 = vadd.f32 0.0, %v1638
      %v1640 = vpop.f32.mrf.mxu0
      %1641 = vmatprep.mubr.bf16.mxu0 0
      %1642 = vmatmul.mubr.bf16.gmra.mxu0 %v1438
      %v1643 = vpop.f32.mrf.mxu0
      %v1644 = vadd.f32 0.0, %v1643
      %v1645 = vpop.f32.mrf.mxu0
      %v1646 = vpop.f32.mrf.mxu0
      %v1647 = vadd.f32 0.0, %v1646
      %v1648 = vpop.f32.mrf.mxu0
      %1649 = vmatprep.mubr.bf16.mxu0 0
      %1650 = vmatmul.mubr.bf16.gmra.mxu0 %v1439
      %v1651 = vpop.f32.mrf.mxu0
      %v1652 = vadd.f32 0.0, %v1651
      %v1653 = vpop.f32.mrf.mxu0
      %v1654 = vpop.f32.mrf.mxu0
      %v1655 = vadd.f32 0.0, %v1654
      %v1656 = vpop.f32.mrf.mxu0
      %1657 = vmatprep.mubr.bf16.mxu0 0
      %1658 = vmatmul.mubr.bf16.gmra.mxu0 %v1440
      %v1659 = vpop.f32.mrf.mxu0
      %v1660 = vadd.f32 0.0, %v1659
      %v1661 = vpop.f32.mrf.mxu0
      %v1662 = vpop.f32.mrf.mxu0
      %v1663 = vadd.f32 0.0, %v1662
      %v1664 = vpop.f32.mrf.mxu0
      %1665 = vdwg.mxu0
      %v1666 = vadd.f32 %v1274, %v1540
      %v1667 = vadd.f32 %v1275, %v1543
      %v1668 = vadd.f32 %v1276, %v1548
      %v1669 = vadd.f32 %v1277, %v1551
      %v1670 = vadd.f32 %v1278, %v1556
      %v1671 = vadd.f32 %v1279, %v1559
      %v1672 = vadd.f32 %v1280, %v1564
      %v1673 = vadd.f32 %v1281, %v1567
      %v1674 = vadd.f32 %v1282, %v1572
      %v1675 = vadd.f32 %v1283, %v1575
      %v1676 = vadd.f32 %v1284, %v1580
      %v1677 = vadd.f32 %v1285, %v1583
      %v1678 = vadd.f32 %v1286, %v1588
      %v1679 = vadd.f32 %v1287, %v1591
      %v1680 = vadd.f32 %v1288, %v1596
      %v1681 = vadd.f32 %v1289, %v1599
      %v1682 = vadd.f32 %v1290, %v1604
      %v1683 = vadd.f32 %v1291, %v1607
      %v1684 = vadd.f32 %v1292, %v1612
      %v1685 = vadd.f32 %v1293, %v1615
      %v1686 = vadd.f32 %v1294, %v1620
      %v1687 = vadd.f32 %v1295, %v1623
      %v1688 = vadd.f32 %v1296, %v1628
      %v1689 = vadd.f32 %v1297, %v1631
      %v1690 = vadd.f32 %v1298, %v1636
      %v1691 = vadd.f32 %v1299, %v1639
      %v1692 = vadd.f32 %v1300, %v1644
      %v1693 = vadd.f32 %v1301, %v1647
      %v1694 = vadd.f32 %v1302, %v1652
      %v1695 = vadd.f32 %v1303, %v1655
      %v1696 = vadd.f32 %v1304, %v1660
      %v1697 = vadd.f32 %v1305, %v1663
      %s1698 = sadd.s32 %s195, 19
      %s1699 = smul.u32 %s1698, 16
      %s1700 = sshra.s32 %s1699, 3
      %s1701 = sand.u32 %s1699, 7
      %s1702 = smul.addr %s1700, 4
      %s1703 = scalar_lea.vmem %s183, %s1702
      %v1704 = vld [vmem:[%s1703] sm:$0xf]
      %v1705 = vld [vmem:[%s1703 + $0x4] sm:$0xf]
      %v1706 = vld [vmem:[%s1703 + $0x8] sm:$0xf]
      %v1707 = vld [vmem:[%s1703 + $0xc] sm:$0xf]
      %v1708 = vld [vmem:[%s1703 + $0x10] sm:$0xf]
      %v1709 = vld [vmem:[%s1703 + $0x14] sm:$0xf]
      %v1710 = vld [vmem:[%s1703 + $0x18] sm:$0xf]
      %v1711 = vld [vmem:[%s1703 + $0x1c] sm:$0xf]
      %v1712 = vld [vmem:[%s1703 + $0x20] sm:$0xf]
      %v1713 = vld [vmem:[%s1703 + $0x24] sm:$0xf]
      %v1714 = vld [vmem:[%s1703 + $0x28] sm:$0xf]
      %v1715 = vld [vmem:[%s1703 + $0x2c] sm:$0xf]
      %v1716 = vld [vmem:[%s1703 + $0x30] sm:$0xf]
      %v1717 = vld [vmem:[%s1703 + $0x34] sm:$0xf]
      %v1718 = vld [vmem:[%s1703 + $0x38] sm:$0xf]
      %v1719 = vld [vmem:[%s1703 + $0x3c] sm:$0xf]
      %v1720 = vld [vmem:[%s1703 + $0x40] sm:$0xf]
      %v1721 = vld [vmem:[%s1703 + $0x44] sm:$0xf]
      %v1722 = vld [vmem:[%s1703 + $0x48] sm:$0xf]
      %v1723 = vld [vmem:[%s1703 + $0x4c] sm:$0xf]
      %v1724 = vld [vmem:[%s1703 + $0x50] sm:$0xf]
      %v1725 = vld [vmem:[%s1703 + $0x54] sm:$0xf]
      %v1726 = vld [vmem:[%s1703 + $0x58] sm:$0xf]
      %v1727 = vld [vmem:[%s1703 + $0x5c] sm:$0xf]
      %v1728 = vld [vmem:[%s1703 + $0x60] sm:$0xf]
      %v1729 = vld [vmem:[%s1703 + $0x64] sm:$0xf]
      %v1730 = vld [vmem:[%s1703 + $0x68] sm:$0xf]
      %v1731 = vld [vmem:[%s1703 + $0x6c] sm:$0xf]
      %v1732 = vld [vmem:[%s1703 + $0x70] sm:$0xf]
      %v1733 = vld [vmem:[%s1703 + $0x74] sm:$0xf]
      %v1734 = vld [vmem:[%s1703 + $0x78] sm:$0xf]
      %v1735 = vld [vmem:[%s1703 + $0x7c] sm:$0xf]
      %s1736 = scalar_lea.vmem %s1, 256
      %v1737 = vld [vmem:[%s1736] sm:$0xf]
      %v1738 = vld [vmem:[%s1736 + $0x4] sm:$0xf]
      %v1739 = vld [vmem:[%s1736 + $0x8] sm:$0xf]
      %v1740 = vld [vmem:[%s1736 + $0xc] sm:$0xf]
      %v1741 = vld [vmem:[%s1736 + $0x10] sm:$0xf]
      %v1742 = vld [vmem:[%s1736 + $0x14] sm:$0xf]
      %v1743 = vld [vmem:[%s1736 + $0x18] sm:$0xf]
      %v1744 = vld [vmem:[%s1736 + $0x1c] sm:$0xf]
      %v1745 = vld [vmem:[%s1736 + $0x20] sm:$0xf]
      %v1746 = vld [vmem:[%s1736 + $0x24] sm:$0xf]
      %v1747 = vld [vmem:[%s1736 + $0x28] sm:$0xf]
      %v1748 = vld [vmem:[%s1736 + $0x2c] sm:$0xf]
      %v1749 = vld [vmem:[%s1736 + $0x30] sm:$0xf]
      %v1750 = vld [vmem:[%s1736 + $0x34] sm:$0xf]
      %v1751 = vld [vmem:[%s1736 + $0x38] sm:$0xf]
      %v1752 = vld [vmem:[%s1736 + $0x3c] sm:$0xf]
      %v1785 = vunpack.c.l.b16 %v1704
      %v1786 = vunpack.c.l.b16 %v1705
      %v1787 = vunpack.c.l.b16 %v1706
      %v1788 = vunpack.c.l.b16 %v1707
      %v1789 = vunpack.c.l.b16 %v1708
      %v1790 = vunpack.c.l.b16 %v1709
      %v1791 = vunpack.c.l.b16 %v1710
      %v1792 = vunpack.c.l.b16 %v1711
      %v1793 = vunpack.c.l.b16 %v1712
      %v1794 = vunpack.c.l.b16 %v1713
      %v1795 = vunpack.c.l.b16 %v1714
      %v1796 = vunpack.c.l.b16 %v1715
      %v1797 = vunpack.c.l.b16 %v1716
      %v1798 = vunpack.c.l.b16 %v1717
      %v1799 = vunpack.c.l.b16 %v1718
      %v1800 = vunpack.c.l.b16 %v1719
      %v1801 = vunpack.c.l.b16 %v1720
      %v1802 = vunpack.c.l.b16 %v1721
      %v1803 = vunpack.c.l.b16 %v1722
      %v1804 = vunpack.c.l.b16 %v1723
      %v1805 = vunpack.c.l.b16 %v1724
      %v1806 = vunpack.c.l.b16 %v1725
      %v1807 = vunpack.c.l.b16 %v1726
      %v1808 = vunpack.c.l.b16 %v1727
      %v1809 = vunpack.c.l.b16 %v1728
      %v1810 = vunpack.c.l.b16 %v1729
      %v1811 = vunpack.c.l.b16 %v1730
      %v1812 = vunpack.c.l.b16 %v1731
      %v1813 = vunpack.c.l.b16 %v1732
      %v1814 = vunpack.c.l.b16 %v1733
      %v1815 = vunpack.c.l.b16 %v1734
      %v1816 = vunpack.c.l.b16 %v1735
      %v1817 = vpack.c.b16 %v1786, %v1785
      %v1818 = vpack.c.b16 %v1788, %v1787
      %v1819 = vpack.c.b16 %v1790, %v1789
      %v1820 = vpack.c.b16 %v1792, %v1791
      %v1821 = vpack.c.b16 %v1794, %v1793
      %v1822 = vpack.c.b16 %v1796, %v1795
      %v1823 = vpack.c.b16 %v1798, %v1797
      %v1824 = vpack.c.b16 %v1800, %v1799
      %v1825 = vpack.c.b16 %v1802, %v1801
      %v1826 = vpack.c.b16 %v1804, %v1803
      %v1827 = vpack.c.b16 %v1806, %v1805
      %v1828 = vpack.c.b16 %v1808, %v1807
      %v1829 = vpack.c.b16 %v1810, %v1809
      %v1830 = vpack.c.b16 %v1812, %v1811
      %v1831 = vpack.c.b16 %v1814, %v1813
      %v1832 = vpack.c.b16 %v1816, %v1815
      %v1865 = vunpack.c.l.b16 %v1737
      %v1866 = vunpack.c.l.b16 %v1738
      %v1867 = vunpack.c.l.b16 %v1739
      %v1868 = vunpack.c.l.b16 %v1740
      %v1869 = vunpack.c.l.b16 %v1741
      %v1870 = vunpack.c.l.b16 %v1742
      %v1871 = vunpack.c.l.b16 %v1743
      %v1872 = vunpack.c.l.b16 %v1744
      %v1873 = vunpack.c.l.b16 %v1745
      %v1874 = vunpack.c.l.b16 %v1746
      %v1875 = vunpack.c.l.b16 %v1747
      %v1876 = vunpack.c.l.b16 %v1748
      %v1877 = vunpack.c.l.b16 %v1749
      %v1878 = vunpack.c.l.b16 %v1750
      %v1879 = vunpack.c.l.b16 %v1751
      %v1880 = vunpack.c.l.b16 %v1752
      %v1881 = vpack.c.b16 %v1866, %v1865
      %v1882 = vpack.c.b16 %v1868, %v1867
      %v1883 = vpack.c.b16 %v1870, %v1869
      %v1884 = vpack.c.b16 %v1872, %v1871
      %v1885 = vpack.c.b16 %v1874, %v1873
      %v1886 = vpack.c.b16 %v1876, %v1875
      %v1887 = vpack.c.b16 %v1878, %v1877
      %v1888 = vpack.c.b16 %v1880, %v1879
      %1897 = vmatprep.subr.bf16.mxu0 0
      %1898 = vmatpush1.bf16.msra.mxu0 %v1888
      %1899 = vmatprep.subr.bf16.mxu0 0
      %1900 = vmatpush1.bf16.msra.mxu0 %v1887
      %1901 = vmatprep.subr.bf16.mxu0 0
      %1902 = vmatpush1.bf16.msra.mxu0 %v1886
      %1903 = vmatprep.subr.bf16.mxu0 0
      %1904 = vmatpush1.bf16.msra.mxu0 %v1885
      %1905 = vmatprep.subr.bf16.mxu0 0
      %1906 = vmatpush1.bf16.msra.mxu0 %v1884
      %1907 = vmatprep.subr.bf16.mxu0 0
      %1908 = vmatpush1.bf16.msra.mxu0 %v1883
      %1909 = vmatprep.subr.bf16.mxu0 0
      %1910 = vmatpush1.bf16.msra.mxu0 %v1882
      %1911 = vmatprep.subr.bf16.mxu0 0
      %1912 = vmatpush1.bf16.msra.mxu0 %v1881
      %1913 = vmatprep.subr.bf16.mxu0 0
      %1914 = vmatpush2.bf16.msra.mxu0 0
      %1915 = vmatprep.subr.bf16.mxu0 0
      %1916 = vmatpush2.bf16.msra.mxu0 0
      %1917 = vmatprep.subr.bf16.mxu0 0
      %1918 = vmatpush2.bf16.msra.mxu0 0
      %1919 = vmatprep.subr.bf16.mxu0 0
      %1920 = vmatpush2.bf16.msra.mxu0 0
      %1921 = vmatprep.subr.bf16.mxu0 0
      %1922 = vmatpush2.bf16.msra.mxu0 0
      %1923 = vmatprep.subr.bf16.mxu0 0
      %1924 = vmatpush2.bf16.msra.mxu0 0
      %1925 = vmatprep.subr.bf16.mxu0 0
      %1926 = vmatpush2.bf16.msra.mxu0 0
      %1927 = vmatprep.subr.bf16.mxu0 0
      %1928 = vmatpush2.bf16.msra.mxu0 0
      %1929 = vmatprep.mubr.bf16.mxu0 0
      %1930 = vmatmul.mubr.bf16.gmra.mxu0 %v1817
      %v1931 = vpop.f32.mrf.mxu0
      %v1932 = vadd.f32 0.0, %v1931
      %v1933 = vpop.f32.mrf.mxu0
      %v1934 = vpop.f32.mrf.mxu0
      %v1935 = vadd.f32 0.0, %v1934
      %v1936 = vpop.f32.mrf.mxu0
      %1937 = vmatprep.mubr.bf16.mxu0 0
      %1938 = vmatmul.mubr.bf16.gmra.mxu0 %v1818
      %v1939 = vpop.f32.mrf.mxu0
      %v1940 = vadd.f32 0.0, %v1939
      %v1941 = vpop.f32.mrf.mxu0
      %v1942 = vpop.f32.mrf.mxu0
      %v1943 = vadd.f32 0.0, %v1942
      %v1944 = vpop.f32.mrf.mxu0
      %1945 = vmatprep.mubr.bf16.mxu0 0
      %1946 = vmatmul.mubr.bf16.gmra.mxu0 %v1819
      %v1947 = vpop.f32.mrf.mxu0
      %v1948 = vadd.f32 0.0, %v1947
      %v1949 = vpop.f32.mrf.mxu0
      %v1950 = vpop.f32.mrf.mxu0
      %v1951 = vadd.f32 0.0, %v1950
      %v1952 = vpop.f32.mrf.mxu0
      %1953 = vmatprep.mubr.bf16.mxu0 0
      %1954 = vmatmul.mubr.bf16.gmra.mxu0 %v1820
      %v1955 = vpop.f32.mrf.mxu0
      %v1956 = vadd.f32 0.0, %v1955
      %v1957 = vpop.f32.mrf.mxu0
      %v1958 = vpop.f32.mrf.mxu0
      %v1959 = vadd.f32 0.0, %v1958
      %v1960 = vpop.f32.mrf.mxu0
      %1961 = vmatprep.mubr.bf16.mxu0 0
      %1962 = vmatmul.mubr.bf16.gmra.mxu0 %v1821
      %v1963 = vpop.f32.mrf.mxu0
      %v1964 = vadd.f32 0.0, %v1963
      %v1965 = vpop.f32.mrf.mxu0
      %v1966 = vpop.f32.mrf.mxu0
      %v1967 = vadd.f32 0.0, %v1966
      %v1968 = vpop.f32.mrf.mxu0
      %1969 = vmatprep.mubr.bf16.mxu0 0
      %1970 = vmatmul.mubr.bf16.gmra.mxu0 %v1822
      %v1971 = vpop.f32.mrf.mxu0
      %v1972 = vadd.f32 0.0, %v1971
      %v1973 = vpop.f32.mrf.mxu0
      %v1974 = vpop.f32.mrf.mxu0
      %v1975 = vadd.f32 0.0, %v1974
      %v1976 = vpop.f32.mrf.mxu0
      %1977 = vmatprep.mubr.bf16.mxu0 0
      %1978 = vmatmul.mubr.bf16.gmra.mxu0 %v1823
      %v1979 = vpop.f32.mrf.mxu0
      %v1980 = vadd.f32 0.0, %v1979
      %v1981 = vpop.f32.mrf.mxu0
      %v1982 = vpop.f32.mrf.mxu0
      %v1983 = vadd.f32 0.0, %v1982
      %v1984 = vpop.f32.mrf.mxu0
      %1985 = vmatprep.mubr.bf16.mxu0 0
      %1986 = vmatmul.mubr.bf16.gmra.mxu0 %v1824
      %v1987 = vpop.f32.mrf.mxu0
      %v1988 = vadd.f32 0.0, %v1987
      %v1989 = vpop.f32.mrf.mxu0
      %v1990 = vpop.f32.mrf.mxu0
      %v1991 = vadd.f32 0.0, %v1990
      %v1992 = vpop.f32.mrf.mxu0
      %1993 = vmatprep.mubr.bf16.mxu0 0
      %1994 = vmatmul.mubr.bf16.gmra.mxu0 %v1825
      %v1995 = vpop.f32.mrf.mxu0
      %v1996 = vadd.f32 0.0, %v1995
      %v1997 = vpop.f32.mrf.mxu0
      %v1998 = vpop.f32.mrf.mxu0
      %v1999 = vadd.f32 0.0, %v1998
      %v2000 = vpop.f32.mrf.mxu0
      %2001 = vmatprep.mubr.bf16.mxu0 0
      %2002 = vmatmul.mubr.bf16.gmra.mxu0 %v1826
      %v2003 = vpop.f32.mrf.mxu0
      %v2004 = vadd.f32 0.0, %v2003
      %v2005 = vpop.f32.mrf.mxu0
      %v2006 = vpop.f32.mrf.mxu0
      %v2007 = vadd.f32 0.0, %v2006
      %v2008 = vpop.f32.mrf.mxu0
      %2009 = vmatprep.mubr.bf16.mxu0 0
      %2010 = vmatmul.mubr.bf16.gmra.mxu0 %v1827
      %v2011 = vpop.f32.mrf.mxu0
      %v2012 = vadd.f32 0.0, %v2011
      %v2013 = vpop.f32.mrf.mxu0
      %v2014 = vpop.f32.mrf.mxu0
      %v2015 = vadd.f32 0.0, %v2014
      %v2016 = vpop.f32.mrf.mxu0
      %2017 = vmatprep.mubr.bf16.mxu0 0
      %2018 = vmatmul.mubr.bf16.gmra.mxu0 %v1828
      %v2019 = vpop.f32.mrf.mxu0
      %v2020 = vadd.f32 0.0, %v2019
      %v2021 = vpop.f32.mrf.mxu0
      %v2022 = vpop.f32.mrf.mxu0
      %v2023 = vadd.f32 0.0, %v2022
      %v2024 = vpop.f32.mrf.mxu0
      %2025 = vmatprep.mubr.bf16.mxu0 0
      %2026 = vmatmul.mubr.bf16.gmra.mxu0 %v1829
      %v2027 = vpop.f32.mrf.mxu0
      %v2028 = vadd.f32 0.0, %v2027
      %v2029 = vpop.f32.mrf.mxu0
      %v2030 = vpop.f32.mrf.mxu0
      %v2031 = vadd.f32 0.0, %v2030
      %v2032 = vpop.f32.mrf.mxu0
      %2033 = vmatprep.mubr.bf16.mxu0 0
      %2034 = vmatmul.mubr.bf16.gmra.mxu0 %v1830
      %v2035 = vpop.f32.mrf.mxu0
      %v2036 = vadd.f32 0.0, %v2035
      %v2037 = vpop.f32.mrf.mxu0
      %v2038 = vpop.f32.mrf.mxu0
      %v2039 = vadd.f32 0.0, %v2038
      %v2040 = vpop.f32.mrf.mxu0
      %2041 = vmatprep.mubr.bf16.mxu0 0
      %2042 = vmatmul.mubr.bf16.gmra.mxu0 %v1831
      %v2043 = vpop.f32.mrf.mxu0
      %v2044 = vadd.f32 0.0, %v2043
      %v2045 = vpop.f32.mrf.mxu0
      %v2046 = vpop.f32.mrf.mxu0
      %v2047 = vadd.f32 0.0, %v2046
      %v2048 = vpop.f32.mrf.mxu0
      %2049 = vmatprep.mubr.bf16.mxu0 0
      %2050 = vmatmul.mubr.bf16.gmra.mxu0 %v1832
      %v2051 = vpop.f32.mrf.mxu0
      %v2052 = vadd.f32 0.0, %v2051
      %v2053 = vpop.f32.mrf.mxu0
      %v2054 = vpop.f32.mrf.mxu0
      %v2055 = vadd.f32 0.0, %v2054
      %v2056 = vpop.f32.mrf.mxu0
      %2057 = vdwg.mxu0
      %v2058 = vadd.f32 %v1666, %v1932
      %v2059 = vadd.f32 %v1667, %v1935
      %v2060 = vadd.f32 %v1668, %v1940
      %v2061 = vadd.f32 %v1669, %v1943
      %v2062 = vadd.f32 %v1670, %v1948
      %v2063 = vadd.f32 %v1671, %v1951
      %v2064 = vadd.f32 %v1672, %v1956
      %v2065 = vadd.f32 %v1673, %v1959
      %v2066 = vadd.f32 %v1674, %v1964
      %v2067 = vadd.f32 %v1675, %v1967
      %v2068 = vadd.f32 %v1676, %v1972
      %v2069 = vadd.f32 %v1677, %v1975
      %v2070 = vadd.f32 %v1678, %v1980
      %v2071 = vadd.f32 %v1679, %v1983
      %v2072 = vadd.f32 %v1680, %v1988
      %v2073 = vadd.f32 %v1681, %v1991
      %v2074 = vadd.f32 %v1682, %v1996
      %v2075 = vadd.f32 %v1683, %v1999
      %v2076 = vadd.f32 %v1684, %v2004
      %v2077 = vadd.f32 %v1685, %v2007
      %v2078 = vadd.f32 %v1686, %v2012
      %v2079 = vadd.f32 %v1687, %v2015
      %v2080 = vadd.f32 %v1688, %v2020
      %v2081 = vadd.f32 %v1689, %v2023
      %v2082 = vadd.f32 %v1690, %v2028
      %v2083 = vadd.f32 %v1691, %v2031
      %v2084 = vadd.f32 %v1692, %v2036
      %v2085 = vadd.f32 %v1693, %v2039
      %v2086 = vadd.f32 %v1694, %v2044
      %v2087 = vadd.f32 %v1695, %v2047
      %v2088 = vadd.f32 %v1696, %v2052
      %v2089 = vadd.f32 %v1697, %v2055
      %s2090 = sadd.s32 %s195, 37
      %s2091 = smul.u32 %s2090, 16
      %s2092 = sshra.s32 %s2091, 3
      %s2093 = sand.u32 %s2091, 7
      %s2094 = smul.addr %s2092, 4
      %s2095 = scalar_lea.vmem %s183, %s2094
      %v2096 = vld [vmem:[%s2095] sm:$0xf]
      %v2097 = vld [vmem:[%s2095 + $0x4] sm:$0xf]
      %v2098 = vld [vmem:[%s2095 + $0x8] sm:$0xf]
      %v2099 = vld [vmem:[%s2095 + $0xc] sm:$0xf]
      %v2100 = vld [vmem:[%s2095 + $0x10] sm:$0xf]
      %v2101 = vld [vmem:[%s2095 + $0x14] sm:$0xf]
      %v2102 = vld [vmem:[%s2095 + $0x18] sm:$0xf]
      %v2103 = vld [vmem:[%s2095 + $0x1c] sm:$0xf]
      %v2104 = vld [vmem:[%s2095 + $0x20] sm:$0xf]
      %v2105 = vld [vmem:[%s2095 + $0x24] sm:$0xf]
      %v2106 = vld [vmem:[%s2095 + $0x28] sm:$0xf]
      %v2107 = vld [vmem:[%s2095 + $0x2c] sm:$0xf]
      %v2108 = vld [vmem:[%s2095 + $0x30] sm:$0xf]
      %v2109 = vld [vmem:[%s2095 + $0x34] sm:$0xf]
      %v2110 = vld [vmem:[%s2095 + $0x38] sm:$0xf]
      %v2111 = vld [vmem:[%s2095 + $0x3c] sm:$0xf]
      %v2112 = vld [vmem:[%s2095 + $0x40] sm:$0xf]
      %v2113 = vld [vmem:[%s2095 + $0x44] sm:$0xf]
      %v2114 = vld [vmem:[%s2095 + $0x48] sm:$0xf]
      %v2115 = vld [vmem:[%s2095 + $0x4c] sm:$0xf]
      %v2116 = vld [vmem:[%s2095 + $0x50] sm:$0xf]
      %v2117 = vld [vmem:[%s2095 + $0x54] sm:$0xf]
      %v2118 = vld [vmem:[%s2095 + $0x58] sm:$0xf]
      %v2119 = vld [vmem:[%s2095 + $0x5c] sm:$0xf]
      %v2120 = vld [vmem:[%s2095 + $0x60] sm:$0xf]
      %v2121 = vld [vmem:[%s2095 + $0x64] sm:$0xf]
      %v2122 = vld [vmem:[%s2095 + $0x68] sm:$0xf]
      %v2123 = vld [vmem:[%s2095 + $0x6c] sm:$0xf]
      %v2124 = vld [vmem:[%s2095 + $0x70] sm:$0xf]
      %v2125 = vld [vmem:[%s2095 + $0x74] sm:$0xf]
      %v2126 = vld [vmem:[%s2095 + $0x78] sm:$0xf]
      %v2127 = vld [vmem:[%s2095 + $0x7c] sm:$0xf]
      %s2128 = scalar_lea.vmem %s1, 320
      %v2129 = vld [vmem:[%s2128] sm:$0xf]
      %v2130 = vld [vmem:[%s2128 + $0x4] sm:$0xf]
      %v2131 = vld [vmem:[%s2128 + $0x8] sm:$0xf]
      %v2132 = vld [vmem:[%s2128 + $0xc] sm:$0xf]
      %v2133 = vld [vmem:[%s2128 + $0x10] sm:$0xf]
      %v2134 = vld [vmem:[%s2128 + $0x14] sm:$0xf]
      %v2135 = vld [vmem:[%s2128 + $0x18] sm:$0xf]
      %v2136 = vld [vmem:[%s2128 + $0x1c] sm:$0xf]
      %v2137 = vld [vmem:[%s2128 + $0x20] sm:$0xf]
      %v2138 = vld [vmem:[%s2128 + $0x24] sm:$0xf]
      %v2139 = vld [vmem:[%s2128 + $0x28] sm:$0xf]
      %v2140 = vld [vmem:[%s2128 + $0x2c] sm:$0xf]
      %v2141 = vld [vmem:[%s2128 + $0x30] sm:$0xf]
      %v2142 = vld [vmem:[%s2128 + $0x34] sm:$0xf]
      %v2143 = vld [vmem:[%s2128 + $0x38] sm:$0xf]
      %v2144 = vld [vmem:[%s2128 + $0x3c] sm:$0xf]
      %v2177 = vunpack.c.l.b16 %v2096
      %v2178 = vunpack.c.l.b16 %v2097
      %v2179 = vunpack.c.l.b16 %v2098
      %v2180 = vunpack.c.l.b16 %v2099
      %v2181 = vunpack.c.l.b16 %v2100
      %v2182 = vunpack.c.l.b16 %v2101
      %v2183 = vunpack.c.l.b16 %v2102
      %v2184 = vunpack.c.l.b16 %v2103
      %v2185 = vunpack.c.l.b16 %v2104
      %v2186 = vunpack.c.l.b16 %v2105
      %v2187 = vunpack.c.l.b16 %v2106
      %v2188 = vunpack.c.l.b16 %v2107
      %v2189 = vunpack.c.l.b16 %v2108
      %v2190 = vunpack.c.l.b16 %v2109
      %v2191 = vunpack.c.l.b16 %v2110
      %v2192 = vunpack.c.l.b16 %v2111
      %v2193 = vunpack.c.l.b16 %v2112
      %v2194 = vunpack.c.l.b16 %v2113
      %v2195 = vunpack.c.l.b16 %v2114
      %v2196 = vunpack.c.l.b16 %v2115
      %v2197 = vunpack.c.l.b16 %v2116
      %v2198 = vunpack.c.l.b16 %v2117
      %v2199 = vunpack.c.l.b16 %v2118
      %v2200 = vunpack.c.l.b16 %v2119
      %v2201 = vunpack.c.l.b16 %v2120
      %v2202 = vunpack.c.l.b16 %v2121
      %v2203 = vunpack.c.l.b16 %v2122
      %v2204 = vunpack.c.l.b16 %v2123
      %v2205 = vunpack.c.l.b16 %v2124
      %v2206 = vunpack.c.l.b16 %v2125
      %v2207 = vunpack.c.l.b16 %v2126
      %v2208 = vunpack.c.l.b16 %v2127
      %v2209 = vpack.c.b16 %v2178, %v2177
      %v2210 = vpack.c.b16 %v2180, %v2179
      %v2211 = vpack.c.b16 %v2182, %v2181
      %v2212 = vpack.c.b16 %v2184, %v2183
      %v2213 = vpack.c.b16 %v2186, %v2185
      %v2214 = vpack.c.b16 %v2188, %v2187
      %v2215 = vpack.c.b16 %v2190, %v2189
      %v2216 = vpack.c.b16 %v2192, %v2191
      %v2217 = vpack.c.b16 %v2194, %v2193
      %v2218 = vpack.c.b16 %v2196, %v2195
      %v2219 = vpack.c.b16 %v2198, %v2197
      %v2220 = vpack.c.b16 %v2200, %v2199
      %v2221 = vpack.c.b16 %v2202, %v2201
      %v2222 = vpack.c.b16 %v2204, %v2203
      %v2223 = vpack.c.b16 %v2206, %v2205
      %v2224 = vpack.c.b16 %v2208, %v2207
      %v2257 = vunpack.c.l.b16 %v2129
      %v2258 = vunpack.c.l.b16 %v2130
      %v2259 = vunpack.c.l.b16 %v2131
      %v2260 = vunpack.c.l.b16 %v2132
      %v2261 = vunpack.c.l.b16 %v2133
      %v2262 = vunpack.c.l.b16 %v2134
      %v2263 = vunpack.c.l.b16 %v2135
      %v2264 = vunpack.c.l.b16 %v2136
      %v2265 = vunpack.c.l.b16 %v2137
      %v2266 = vunpack.c.l.b16 %v2138
      %v2267 = vunpack.c.l.b16 %v2139
      %v2268 = vunpack.c.l.b16 %v2140
      %v2269 = vunpack.c.l.b16 %v2141
      %v2270 = vunpack.c.l.b16 %v2142
      %v2271 = vunpack.c.l.b16 %v2143
      %v2272 = vunpack.c.l.b16 %v2144
      %v2273 = vpack.c.b16 %v2258, %v2257
      %v2274 = vpack.c.b16 %v2260, %v2259
      %v2275 = vpack.c.b16 %v2262, %v2261
      %v2276 = vpack.c.b16 %v2264, %v2263
      %v2277 = vpack.c.b16 %v2266, %v2265
      %v2278 = vpack.c.b16 %v2268, %v2267
      %v2279 = vpack.c.b16 %v2270, %v2269
      %v2280 = vpack.c.b16 %v2272, %v2271
      %2289 = vmatprep.subr.bf16.mxu0 0
      %2290 = vmatpush1.bf16.msra.mxu0 %v2280
      %2291 = vmatprep.subr.bf16.mxu0 0
      %2292 = vmatpush1.bf16.msra.mxu0 %v2279
      %2293 = vmatprep.subr.bf16.mxu0 0
      %2294 = vmatpush1.bf16.msra.mxu0 %v2278
      %2295 = vmatprep.subr.bf16.mxu0 0
      %2296 = vmatpush1.bf16.msra.mxu0 %v2277
      %2297 = vmatprep.subr.bf16.mxu0 0
      %2298 = vmatpush1.bf16.msra.mxu0 %v2276
      %2299 = vmatprep.subr.bf16.mxu0 0
      %2300 = vmatpush1.bf16.msra.mxu0 %v2275
      %2301 = vmatprep.subr.bf16.mxu0 0
      %2302 = vmatpush1.bf16.msra.mxu0 %v2274
      %2303 = vmatprep.subr.bf16.mxu0 0
      %2304 = vmatpush1.bf16.msra.mxu0 %v2273
      %2305 = vmatprep.subr.bf16.mxu0 0
      %2306 = vmatpush2.bf16.msra.mxu0 0
      %2307 = vmatprep.subr.bf16.mxu0 0
      %2308 = vmatpush2.bf16.msra.mxu0 0
      %2309 = vmatprep.subr.bf16.mxu0 0
      %2310 = vmatpush2.bf16.msra.mxu0 0
      %2311 = vmatprep.subr.bf16.mxu0 0
      %2312 = vmatpush2.bf16.msra.mxu0 0
      %2313 = vmatprep.subr.bf16.mxu0 0
      %2314 = vmatpush2.bf16.msra.mxu0 0
      %2315 = vmatprep.subr.bf16.mxu0 0
      %2316 = vmatpush2.bf16.msra.mxu0 0
      %2317 = vmatprep.subr.bf16.mxu0 0
      %2318 = vmatpush2.bf16.msra.mxu0 0
      %2319 = vmatprep.subr.bf16.mxu0 0
      %2320 = vmatpush2.bf16.msra.mxu0 0
      %2321 = vmatprep.mubr.bf16.mxu0 0
      %2322 = vmatmul.mubr.bf16.gmra.mxu0 %v2209
      %v2323 = vpop.f32.mrf.mxu0
      %v2324 = vadd.f32 0.0, %v2323
      %v2325 = vpop.f32.mrf.mxu0
      %v2326 = vpop.f32.mrf.mxu0
      %v2327 = vadd.f32 0.0, %v2326
      %v2328 = vpop.f32.mrf.mxu0
      %2329 = vmatprep.mubr.bf16.mxu0 0
      %2330 = vmatmul.mubr.bf16.gmra.mxu0 %v2210
      %v2331 = vpop.f32.mrf.mxu0
      %v2332 = vadd.f32 0.0, %v2331
      %v2333 = vpop.f32.mrf.mxu0
      %v2334 = vpop.f32.mrf.mxu0
      %v2335 = vadd.f32 0.0, %v2334
      %v2336 = vpop.f32.mrf.mxu0
      %2337 = vmatprep.mubr.bf16.mxu0 0
      %2338 = vmatmul.mubr.bf16.gmra.mxu0 %v2211
      %v2339 = vpop.f32.mrf.mxu0
      %v2340 = vadd.f32 0.0, %v2339
      %v2341 = vpop.f32.mrf.mxu0
      %v2342 = vpop.f32.mrf.mxu0
      %v2343 = vadd.f32 0.0, %v2342
      %v2344 = vpop.f32.mrf.mxu0
      %2345 = vmatprep.mubr.bf16.mxu0 0
      %2346 = vmatmul.mubr.bf16.gmra.mxu0 %v2212
      %v2347 = vpop.f32.mrf.mxu0
      %v2348 = vadd.f32 0.0, %v2347
      %v2349 = vpop.f32.mrf.mxu0
      %v2350 = vpop.f32.mrf.mxu0
      %v2351 = vadd.f32 0.0, %v2350
      %v2352 = vpop.f32.mrf.mxu0
      %2353 = vmatprep.mubr.bf16.mxu0 0
      %2354 = vmatmul.mubr.bf16.gmra.mxu0 %v2213
      %v2355 = vpop.f32.mrf.mxu0
      %v2356 = vadd.f32 0.0, %v2355
      %v2357 = vpop.f32.mrf.mxu0
      %v2358 = vpop.f32.mrf.mxu0
      %v2359 = vadd.f32 0.0, %v2358
      %v2360 = vpop.f32.mrf.mxu0
      %2361 = vmatprep.mubr.bf16.mxu0 0
      %2362 = vmatmul.mubr.bf16.gmra.mxu0 %v2214
      %v2363 = vpop.f32.mrf.mxu0
      %v2364 = vadd.f32 0.0, %v2363
      %v2365 = vpop.f32.mrf.mxu0
      %v2366 = vpop.f32.mrf.mxu0
      %v2367 = vadd.f32 0.0, %v2366
      %v2368 = vpop.f32.mrf.mxu0
      %2369 = vmatprep.mubr.bf16.mxu0 0
      %2370 = vmatmul.mubr.bf16.gmra.mxu0 %v2215
      %v2371 = vpop.f32.mrf.mxu0
      %v2372 = vadd.f32 0.0, %v2371
      %v2373 = vpop.f32.mrf.mxu0
      %v2374 = vpop.f32.mrf.mxu0
      %v2375 = vadd.f32 0.0, %v2374
      %v2376 = vpop.f32.mrf.mxu0
      %2377 = vmatprep.mubr.bf16.mxu0 0
      %2378 = vmatmul.mubr.bf16.gmra.mxu0 %v2216
      %v2379 = vpop.f32.mrf.mxu0
      %v2380 = vadd.f32 0.0, %v2379
      %v2381 = vpop.f32.mrf.mxu0
      %v2382 = vpop.f32.mrf.mxu0
      %v2383 = vadd.f32 0.0, %v2382
      %v2384 = vpop.f32.mrf.mxu0
      %2385 = vmatprep.mubr.bf16.mxu0 0
      %2386 = vmatmul.mubr.bf16.gmra.mxu0 %v2217
      %v2387 = vpop.f32.mrf.mxu0
      %v2388 = vadd.f32 0.0, %v2387
      %v2389 = vpop.f32.mrf.mxu0
      %v2390 = vpop.f32.mrf.mxu0
      %v2391 = vadd.f32 0.0, %v2390
      %v2392 = vpop.f32.mrf.mxu0
      %2393 = vmatprep.mubr.bf16.mxu0 0
      %2394 = vmatmul.mubr.bf16.gmra.mxu0 %v2218
      %v2395 = vpop.f32.mrf.mxu0
      %v2396 = vadd.f32 0.0, %v2395
      %v2397 = vpop.f32.mrf.mxu0
      %v2398 = vpop.f32.mrf.mxu0
      %v2399 = vadd.f32 0.0, %v2398
      %v2400 = vpop.f32.mrf.mxu0
      %2401 = vmatprep.mubr.bf16.mxu0 0
      %2402 = vmatmul.mubr.bf16.gmra.mxu0 %v2219
      %v2403 = vpop.f32.mrf.mxu0
      %v2404 = vadd.f32 0.0, %v2403
      %v2405 = vpop.f32.mrf.mxu0
      %v2406 = vpop.f32.mrf.mxu0
      %v2407 = vadd.f32 0.0, %v2406
      %v2408 = vpop.f32.mrf.mxu0
      %2409 = vmatprep.mubr.bf16.mxu0 0
      %2410 = vmatmul.mubr.bf16.gmra.mxu0 %v2220
      %v2411 = vpop.f32.mrf.mxu0
      %v2412 = vadd.f32 0.0, %v2411
      %v2413 = vpop.f32.mrf.mxu0
      %v2414 = vpop.f32.mrf.mxu0
      %v2415 = vadd.f32 0.0, %v2414
      %v2416 = vpop.f32.mrf.mxu0
      %2417 = vmatprep.mubr.bf16.mxu0 0
      %2418 = vmatmul.mubr.bf16.gmra.mxu0 %v2221
      %v2419 = vpop.f32.mrf.mxu0
      %v2420 = vadd.f32 0.0, %v2419
      %v2421 = vpop.f32.mrf.mxu0
      %v2422 = vpop.f32.mrf.mxu0
      %v2423 = vadd.f32 0.0, %v2422
      %v2424 = vpop.f32.mrf.mxu0
      %2425 = vmatprep.mubr.bf16.mxu0 0
      %2426 = vmatmul.mubr.bf16.gmra.mxu0 %v2222
      %v2427 = vpop.f32.mrf.mxu0
      %v2428 = vadd.f32 0.0, %v2427
      %v2429 = vpop.f32.mrf.mxu0
      %v2430 = vpop.f32.mrf.mxu0
      %v2431 = vadd.f32 0.0, %v2430
      %v2432 = vpop.f32.mrf.mxu0
      %2433 = vmatprep.mubr.bf16.mxu0 0
      %2434 = vmatmul.mubr.bf16.gmra.mxu0 %v2223
      %v2435 = vpop.f32.mrf.mxu0
      %v2436 = vadd.f32 0.0, %v2435
      %v2437 = vpop.f32.mrf.mxu0
      %v2438 = vpop.f32.mrf.mxu0
      %v2439 = vadd.f32 0.0, %v2438
      %v2440 = vpop.f32.mrf.mxu0
      %2441 = vmatprep.mubr.bf16.mxu0 0
      %2442 = vmatmul.mubr.bf16.gmra.mxu0 %v2224
      %v2443 = vpop.f32.mrf.mxu0
      %v2444 = vadd.f32 0.0, %v2443
      %v2445 = vpop.f32.mrf.mxu0
      %v2446 = vpop.f32.mrf.mxu0
      %v2447 = vadd.f32 0.0, %v2446
      %v2448 = vpop.f32.mrf.mxu0
      %2449 = vdwg.mxu0
      %v2450 = vadd.f32 %v2058, %v2324
      %v2451 = vadd.f32 %v2059, %v2327
      %v2452 = vadd.f32 %v2060, %v2332
      %v2453 = vadd.f32 %v2061, %v2335
      %v2454 = vadd.f32 %v2062, %v2340
      %v2455 = vadd.f32 %v2063, %v2343
      %v2456 = vadd.f32 %v2064, %v2348
      %v2457 = vadd.f32 %v2065, %v2351
      %v2458 = vadd.f32 %v2066, %v2356
      %v2459 = vadd.f32 %v2067, %v2359
      %v2460 = vadd.f32 %v2068, %v2364
      %v2461 = vadd.f32 %v2069, %v2367
      %v2462 = vadd.f32 %v2070, %v2372
      %v2463 = vadd.f32 %v2071, %v2375
      %v2464 = vadd.f32 %v2072, %v2380
      %v2465 = vadd.f32 %v2073, %v2383
      %v2466 = vadd.f32 %v2074, %v2388
      %v2467 = vadd.f32 %v2075, %v2391
      %v2468 = vadd.f32 %v2076, %v2396
      %v2469 = vadd.f32 %v2077, %v2399
      %v2470 = vadd.f32 %v2078, %v2404
      %v2471 = vadd.f32 %v2079, %v2407
      %v2472 = vadd.f32 %v2080, %v2412
      %v2473 = vadd.f32 %v2081, %v2415
      %v2474 = vadd.f32 %v2082, %v2420
      %v2475 = vadd.f32 %v2083, %v2423
      %v2476 = vadd.f32 %v2084, %v2428
      %v2477 = vadd.f32 %v2085, %v2431
      %v2478 = vadd.f32 %v2086, %v2436
      %v2479 = vadd.f32 %v2087, %v2439
      %v2480 = vadd.f32 %v2088, %v2444
      %v2481 = vadd.f32 %v2089, %v2447
      %s2482 = sadd.s32 %s195, 2
      %s2483 = smul.u32 %s2482, 16
      %s2484 = sshra.s32 %s2483, 3
      %s2485 = sand.u32 %s2483, 7
      %s2486 = smul.addr %s2484, 4
      %s2487 = scalar_lea.vmem %s183, %s2486
      %v2488 = vld [vmem:[%s2487] sm:$0xf]
      %v2489 = vld [vmem:[%s2487 + $0x4] sm:$0xf]
      %v2490 = vld [vmem:[%s2487 + $0x8] sm:$0xf]
      %v2491 = vld [vmem:[%s2487 + $0xc] sm:$0xf]
      %v2492 = vld [vmem:[%s2487 + $0x10] sm:$0xf]
      %v2493 = vld [vmem:[%s2487 + $0x14] sm:$0xf]
      %v2494 = vld [vmem:[%s2487 + $0x18] sm:$0xf]
      %v2495 = vld [vmem:[%s2487 + $0x1c] sm:$0xf]
      %v2496 = vld [vmem:[%s2487 + $0x20] sm:$0xf]
      %v2497 = vld [vmem:[%s2487 + $0x24] sm:$0xf]
      %v2498 = vld [vmem:[%s2487 + $0x28] sm:$0xf]
      %v2499 = vld [vmem:[%s2487 + $0x2c] sm:$0xf]
      %v2500 = vld [vmem:[%s2487 + $0x30] sm:$0xf]
      %v2501 = vld [vmem:[%s2487 + $0x34] sm:$0xf]
      %v2502 = vld [vmem:[%s2487 + $0x38] sm:$0xf]
      %v2503 = vld [vmem:[%s2487 + $0x3c] sm:$0xf]
      %v2504 = vld [vmem:[%s2487 + $0x40] sm:$0xf]
      %v2505 = vld [vmem:[%s2487 + $0x44] sm:$0xf]
      %v2506 = vld [vmem:[%s2487 + $0x48] sm:$0xf]
      %v2507 = vld [vmem:[%s2487 + $0x4c] sm:$0xf]
      %v2508 = vld [vmem:[%s2487 + $0x50] sm:$0xf]
      %v2509 = vld [vmem:[%s2487 + $0x54] sm:$0xf]
      %v2510 = vld [vmem:[%s2487 + $0x58] sm:$0xf]
      %v2511 = vld [vmem:[%s2487 + $0x5c] sm:$0xf]
      %v2512 = vld [vmem:[%s2487 + $0x60] sm:$0xf]
      %v2513 = vld [vmem:[%s2487 + $0x64] sm:$0xf]
      %v2514 = vld [vmem:[%s2487 + $0x68] sm:$0xf]
      %v2515 = vld [vmem:[%s2487 + $0x6c] sm:$0xf]
      %v2516 = vld [vmem:[%s2487 + $0x70] sm:$0xf]
      %v2517 = vld [vmem:[%s2487 + $0x74] sm:$0xf]
      %v2518 = vld [vmem:[%s2487 + $0x78] sm:$0xf]
      %v2519 = vld [vmem:[%s2487 + $0x7c] sm:$0xf]
      %s2520 = scalar_lea.vmem %s1, 384
      %v2521 = vld [vmem:[%s2520] sm:$0xf]
      %v2522 = vld [vmem:[%s2520 + $0x4] sm:$0xf]
      %v2523 = vld [vmem:[%s2520 + $0x8] sm:$0xf]
      %v2524 = vld [vmem:[%s2520 + $0xc] sm:$0xf]
      %v2525 = vld [vmem:[%s2520 + $0x10] sm:$0xf]
      %v2526 = vld [vmem:[%s2520 + $0x14] sm:$0xf]
      %v2527 = vld [vmem:[%s2520 + $0x18] sm:$0xf]
      %v2528 = vld [vmem:[%s2520 + $0x1c] sm:$0xf]
      %v2529 = vld [vmem:[%s2520 + $0x20] sm:$0xf]
      %v2530 = vld [vmem:[%s2520 + $0x24] sm:$0xf]
      %v2531 = vld [vmem:[%s2520 + $0x28] sm:$0xf]
      %v2532 = vld [vmem:[%s2520 + $0x2c] sm:$0xf]
      %v2533 = vld [vmem:[%s2520 + $0x30] sm:$0xf]
      %v2534 = vld [vmem:[%s2520 + $0x34] sm:$0xf]
      %v2535 = vld [vmem:[%s2520 + $0x38] sm:$0xf]
      %v2536 = vld [vmem:[%s2520 + $0x3c] sm:$0xf]
      %v2569 = vunpack.c.l.b16 %v2488
      %v2570 = vunpack.c.l.b16 %v2489
      %v2571 = vunpack.c.l.b16 %v2490
      %v2572 = vunpack.c.l.b16 %v2491
      %v2573 = vunpack.c.l.b16 %v2492
      %v2574 = vunpack.c.l.b16 %v2493
      %v2575 = vunpack.c.l.b16 %v2494
      %v2576 = vunpack.c.l.b16 %v2495
      %v2577 = vunpack.c.l.b16 %v2496
      %v2578 = vunpack.c.l.b16 %v2497
      %v2579 = vunpack.c.l.b16 %v2498
      %v2580 = vunpack.c.l.b16 %v2499
      %v2581 = vunpack.c.l.b16 %v2500
      %v2582 = vunpack.c.l.b16 %v2501
      %v2583 = vunpack.c.l.b16 %v2502
      %v2584 = vunpack.c.l.b16 %v2503
      %v2585 = vunpack.c.l.b16 %v2504
      %v2586 = vunpack.c.l.b16 %v2505
      %v2587 = vunpack.c.l.b16 %v2506
      %v2588 = vunpack.c.l.b16 %v2507
      %v2589 = vunpack.c.l.b16 %v2508
      %v2590 = vunpack.c.l.b16 %v2509
      %v2591 = vunpack.c.l.b16 %v2510
      %v2592 = vunpack.c.l.b16 %v2511
      %v2593 = vunpack.c.l.b16 %v2512
      %v2594 = vunpack.c.l.b16 %v2513
      %v2595 = vunpack.c.l.b16 %v2514
      %v2596 = vunpack.c.l.b16 %v2515
      %v2597 = vunpack.c.l.b16 %v2516
      %v2598 = vunpack.c.l.b16 %v2517
      %v2599 = vunpack.c.l.b16 %v2518
      %v2600 = vunpack.c.l.b16 %v2519
      %v2601 = vpack.c.b16 %v2570, %v2569
      %v2602 = vpack.c.b16 %v2572, %v2571
      %v2603 = vpack.c.b16 %v2574, %v2573
      %v2604 = vpack.c.b16 %v2576, %v2575
      %v2605 = vpack.c.b16 %v2578, %v2577
      %v2606 = vpack.c.b16 %v2580, %v2579
      %v2607 = vpack.c.b16 %v2582, %v2581
      %v2608 = vpack.c.b16 %v2584, %v2583
      %v2609 = vpack.c.b16 %v2586, %v2585
      %v2610 = vpack.c.b16 %v2588, %v2587
      %v2611 = vpack.c.b16 %v2590, %v2589
      %v2612 = vpack.c.b16 %v2592, %v2591
      %v2613 = vpack.c.b16 %v2594, %v2593
      %v2614 = vpack.c.b16 %v2596, %v2595
      %v2615 = vpack.c.b16 %v2598, %v2597
      %v2616 = vpack.c.b16 %v2600, %v2599
      %v2649 = vunpack.c.l.b16 %v2521
      %v2650 = vunpack.c.l.b16 %v2522
      %v2651 = vunpack.c.l.b16 %v2523
      %v2652 = vunpack.c.l.b16 %v2524
      %v2653 = vunpack.c.l.b16 %v2525
      %v2654 = vunpack.c.l.b16 %v2526
      %v2655 = vunpack.c.l.b16 %v2527
      %v2656 = vunpack.c.l.b16 %v2528
      %v2657 = vunpack.c.l.b16 %v2529
      %v2658 = vunpack.c.l.b16 %v2530
      %v2659 = vunpack.c.l.b16 %v2531
      %v2660 = vunpack.c.l.b16 %v2532
      %v2661 = vunpack.c.l.b16 %v2533
      %v2662 = vunpack.c.l.b16 %v2534
      %v2663 = vunpack.c.l.b16 %v2535
      %v2664 = vunpack.c.l.b16 %v2536
      %v2665 = vpack.c.b16 %v2650, %v2649
      %v2666 = vpack.c.b16 %v2652, %v2651
      %v2667 = vpack.c.b16 %v2654, %v2653
      %v2668 = vpack.c.b16 %v2656, %v2655
      %v2669 = vpack.c.b16 %v2658, %v2657
      %v2670 = vpack.c.b16 %v2660, %v2659
      %v2671 = vpack.c.b16 %v2662, %v2661
      %v2672 = vpack.c.b16 %v2664, %v2663
      %2681 = vmatprep.subr.bf16.mxu0 0
      %2682 = vmatpush1.bf16.msra.mxu0 %v2672
      %2683 = vmatprep.subr.bf16.mxu0 0
      %2684 = vmatpush1.bf16.msra.mxu0 %v2671
      %2685 = vmatprep.subr.bf16.mxu0 0
      %2686 = vmatpush1.bf16.msra.mxu0 %v2670
      %2687 = vmatprep.subr.bf16.mxu0 0
      %2688 = vmatpush1.bf16.msra.mxu0 %v2669
      %2689 = vmatprep.subr.bf16.mxu0 0
      %2690 = vmatpush1.bf16.msra.mxu0 %v2668
      %2691 = vmatprep.subr.bf16.mxu0 0
      %2692 = vmatpush1.bf16.msra.mxu0 %v2667
      %2693 = vmatprep.subr.bf16.mxu0 0
      %2694 = vmatpush1.bf16.msra.mxu0 %v2666
      %2695 = vmatprep.subr.bf16.mxu0 0
      %2696 = vmatpush1.bf16.msra.mxu0 %v2665
      %2697 = vmatprep.subr.bf16.mxu0 0
      %2698 = vmatpush2.bf16.msra.mxu0 0
      %2699 = vmatprep.subr.bf16.mxu0 0
      %2700 = vmatpush2.bf16.msra.mxu0 0
      %2701 = vmatprep.subr.bf16.mxu0 0
      %2702 = vmatpush2.bf16.msra.mxu0 0
      %2703 = vmatprep.subr.bf16.mxu0 0
      %2704 = vmatpush2.bf16.msra.mxu0 0
      %2705 = vmatprep.subr.bf16.mxu0 0
      %2706 = vmatpush2.bf16.msra.mxu0 0
      %2707 = vmatprep.subr.bf16.mxu0 0
      %2708 = vmatpush2.bf16.msra.mxu0 0
      %2709 = vmatprep.subr.bf16.mxu0 0
      %2710 = vmatpush2.bf16.msra.mxu0 0
      %2711 = vmatprep.subr.bf16.mxu0 0
      %2712 = vmatpush2.bf16.msra.mxu0 0
      %2713 = vmatprep.mubr.bf16.mxu0 0
      %2714 = vmatmul.mubr.bf16.gmra.mxu0 %v2601
      %v2715 = vpop.f32.mrf.mxu0
      %v2716 = vadd.f32 0.0, %v2715
      %v2717 = vpop.f32.mrf.mxu0
      %v2718 = vpop.f32.mrf.mxu0
      %v2719 = vadd.f32 0.0, %v2718
      %v2720 = vpop.f32.mrf.mxu0
      %2721 = vmatprep.mubr.bf16.mxu0 0
      %2722 = vmatmul.mubr.bf16.gmra.mxu0 %v2602
      %v2723 = vpop.f32.mrf.mxu0
      %v2724 = vadd.f32 0.0, %v2723
      %v2725 = vpop.f32.mrf.mxu0
      %v2726 = vpop.f32.mrf.mxu0
      %v2727 = vadd.f32 0.0, %v2726
      %v2728 = vpop.f32.mrf.mxu0
      %2729 = vmatprep.mubr.bf16.mxu0 0
      %2730 = vmatmul.mubr.bf16.gmra.mxu0 %v2603
      %v2731 = vpop.f32.mrf.mxu0
      %v2732 = vadd.f32 0.0, %v2731
      %v2733 = vpop.f32.mrf.mxu0
      %v2734 = vpop.f32.mrf.mxu0
      %v2735 = vadd.f32 0.0, %v2734
      %v2736 = vpop.f32.mrf.mxu0
      %2737 = vmatprep.mubr.bf16.mxu0 0
      %2738 = vmatmul.mubr.bf16.gmra.mxu0 %v2604
      %v2739 = vpop.f32.mrf.mxu0
      %v2740 = vadd.f32 0.0, %v2739
      %v2741 = vpop.f32.mrf.mxu0
      %v2742 = vpop.f32.mrf.mxu0
      %v2743 = vadd.f32 0.0, %v2742
      %v2744 = vpop.f32.mrf.mxu0
      %2745 = vmatprep.mubr.bf16.mxu0 0
      %2746 = vmatmul.mubr.bf16.gmra.mxu0 %v2605
      %v2747 = vpop.f32.mrf.mxu0
      %v2748 = vadd.f32 0.0, %v2747
      %v2749 = vpop.f32.mrf.mxu0
      %v2750 = vpop.f32.mrf.mxu0
      %v2751 = vadd.f32 0.0, %v2750
      %v2752 = vpop.f32.mrf.mxu0
      %2753 = vmatprep.mubr.bf16.mxu0 0
      %2754 = vmatmul.mubr.bf16.gmra.mxu0 %v2606
      %v2755 = vpop.f32.mrf.mxu0
      %v2756 = vadd.f32 0.0, %v2755
      %v2757 = vpop.f32.mrf.mxu0
      %v2758 = vpop.f32.mrf.mxu0
      %v2759 = vadd.f32 0.0, %v2758
      %v2760 = vpop.f32.mrf.mxu0
      %2761 = vmatprep.mubr.bf16.mxu0 0
      %2762 = vmatmul.mubr.bf16.gmra.mxu0 %v2607
      %v2763 = vpop.f32.mrf.mxu0
      %v2764 = vadd.f32 0.0, %v2763
      %v2765 = vpop.f32.mrf.mxu0
      %v2766 = vpop.f32.mrf.mxu0
      %v2767 = vadd.f32 0.0, %v2766
      %v2768 = vpop.f32.mrf.mxu0
      %2769 = vmatprep.mubr.bf16.mxu0 0
      %2770 = vmatmul.mubr.bf16.gmra.mxu0 %v2608
      %v2771 = vpop.f32.mrf.mxu0
      %v2772 = vadd.f32 0.0, %v2771
      %v2773 = vpop.f32.mrf.mxu0
      %v2774 = vpop.f32.mrf.mxu0
      %v2775 = vadd.f32 0.0, %v2774
      %v2776 = vpop.f32.mrf.mxu0
      %2777 = vmatprep.mubr.bf16.mxu0 0
      %2778 = vmatmul.mubr.bf16.gmra.mxu0 %v2609
      %v2779 = vpop.f32.mrf.mxu0
      %v2780 = vadd.f32 0.0, %v2779
      %v2781 = vpop.f32.mrf.mxu0
      %v2782 = vpop.f32.mrf.mxu0
      %v2783 = vadd.f32 0.0, %v2782
      %v2784 = vpop.f32.mrf.mxu0
      %2785 = vmatprep.mubr.bf16.mxu0 0
      %2786 = vmatmul.mubr.bf16.gmra.mxu0 %v2610
      %v2787 = vpop.f32.mrf.mxu0
      %v2788 = vadd.f32 0.0, %v2787
      %v2789 = vpop.f32.mrf.mxu0
      %v2790 = vpop.f32.mrf.mxu0
      %v2791 = vadd.f32 0.0, %v2790
      %v2792 = vpop.f32.mrf.mxu0
      %2793 = vmatprep.mubr.bf16.mxu0 0
      %2794 = vmatmul.mubr.bf16.gmra.mxu0 %v2611
      %v2795 = vpop.f32.mrf.mxu0
      %v2796 = vadd.f32 0.0, %v2795
      %v2797 = vpop.f32.mrf.mxu0
      %v2798 = vpop.f32.mrf.mxu0
      %v2799 = vadd.f32 0.0, %v2798
      %v2800 = vpop.f32.mrf.mxu0
      %2801 = vmatprep.mubr.bf16.mxu0 0
      %2802 = vmatmul.mubr.bf16.gmra.mxu0 %v2612
      %v2803 = vpop.f32.mrf.mxu0
      %v2804 = vadd.f32 0.0, %v2803
      %v2805 = vpop.f32.mrf.mxu0
      %v2806 = vpop.f32.mrf.mxu0
      %v2807 = vadd.f32 0.0, %v2806
      %v2808 = vpop.f32.mrf.mxu0
      %2809 = vmatprep.mubr.bf16.mxu0 0
      %2810 = vmatmul.mubr.bf16.gmra.mxu0 %v2613
      %v2811 = vpop.f32.mrf.mxu0
      %v2812 = vadd.f32 0.0, %v2811
      %v2813 = vpop.f32.mrf.mxu0
      %v2814 = vpop.f32.mrf.mxu0
      %v2815 = vadd.f32 0.0, %v2814
      %v2816 = vpop.f32.mrf.mxu0
      %2817 = vmatprep.mubr.bf16.mxu0 0
      %2818 = vmatmul.mubr.bf16.gmra.mxu0 %v2614
      %v2819 = vpop.f32.mrf.mxu0
      %v2820 = vadd.f32 0.0, %v2819
      %v2821 = vpop.f32.mrf.mxu0
      %v2822 = vpop.f32.mrf.mxu0
      %v2823 = vadd.f32 0.0, %v2822
      %v2824 = vpop.f32.mrf.mxu0
      %2825 = vmatprep.mubr.bf16.mxu0 0
      %2826 = vmatmul.mubr.bf16.gmra.mxu0 %v2615
      %v2827 = vpop.f32.mrf.mxu0
      %v2828 = vadd.f32 0.0, %v2827
      %v2829 = vpop.f32.mrf.mxu0
      %v2830 = vpop.f32.mrf.mxu0
      %v2831 = vadd.f32 0.0, %v2830
      %v2832 = vpop.f32.mrf.mxu0
      %2833 = vmatprep.mubr.bf16.mxu0 0
      %2834 = vmatmul.mubr.bf16.gmra.mxu0 %v2616
      %v2835 = vpop.f32.mrf.mxu0
      %v2836 = vadd.f32 0.0, %v2835
      %v2837 = vpop.f32.mrf.mxu0
      %v2838 = vpop.f32.mrf.mxu0
      %v2839 = vadd.f32 0.0, %v2838
      %v2840 = vpop.f32.mrf.mxu0
      %2841 = vdwg.mxu0
      %v2842 = vadd.f32 %v2450, %v2716
      %v2843 = vadd.f32 %v2451, %v2719
      %v2844 = vadd.f32 %v2452, %v2724
      %v2845 = vadd.f32 %v2453, %v2727
      %v2846 = vadd.f32 %v2454, %v2732
      %v2847 = vadd.f32 %v2455, %v2735
      %v2848 = vadd.f32 %v2456, %v2740
      %v2849 = vadd.f32 %v2457, %v2743
      %v2850 = vadd.f32 %v2458, %v2748
      %v2851 = vadd.f32 %v2459, %v2751
      %v2852 = vadd.f32 %v2460, %v2756
      %v2853 = vadd.f32 %v2461, %v2759
      %v2854 = vadd.f32 %v2462, %v2764
      %v2855 = vadd.f32 %v2463, %v2767
      %v2856 = vadd.f32 %v2464, %v2772
      %v2857 = vadd.f32 %v2465, %v2775
      %v2858 = vadd.f32 %v2466, %v2780
      %v2859 = vadd.f32 %v2467, %v2783
      %v2860 = vadd.f32 %v2468, %v2788
      %v2861 = vadd.f32 %v2469, %v2791
      %v2862 = vadd.f32 %v2470, %v2796
      %v2863 = vadd.f32 %v2471, %v2799
      %v2864 = vadd.f32 %v2472, %v2804
      %v2865 = vadd.f32 %v2473, %v2807
      %v2866 = vadd.f32 %v2474, %v2812
      %v2867 = vadd.f32 %v2475, %v2815
      %v2868 = vadd.f32 %v2476, %v2820
      %v2869 = vadd.f32 %v2477, %v2823
      %v2870 = vadd.f32 %v2478, %v2828
      %v2871 = vadd.f32 %v2479, %v2831
      %v2872 = vadd.f32 %v2480, %v2836
      %v2873 = vadd.f32 %v2481, %v2839
      %s2874 = sadd.s32 %s195, 20
      %s2875 = smul.u32 %s2874, 16
      %s2876 = sshra.s32 %s2875, 3
      %s2877 = sand.u32 %s2875, 7
      %s2878 = smul.addr %s2876, 4
      %s2879 = scalar_lea.vmem %s183, %s2878
      %v2880 = vld [vmem:[%s2879] sm:$0xf]
      %v2881 = vld [vmem:[%s2879 + $0x4] sm:$0xf]
      %v2882 = vld [vmem:[%s2879 + $0x8] sm:$0xf]
      %v2883 = vld [vmem:[%s2879 + $0xc] sm:$0xf]
      %v2884 = vld [vmem:[%s2879 + $0x10] sm:$0xf]
      %v2885 = vld [vmem:[%s2879 + $0x14] sm:$0xf]
      %v2886 = vld [vmem:[%s2879 + $0x18] sm:$0xf]
      %v2887 = vld [vmem:[%s2879 + $0x1c] sm:$0xf]
      %v2888 = vld [vmem:[%s2879 + $0x20] sm:$0xf]
      %v2889 = vld [vmem:[%s2879 + $0x24] sm:$0xf]
      %v2890 = vld [vmem:[%s2879 + $0x28] sm:$0xf]
      %v2891 = vld [vmem:[%s2879 + $0x2c] sm:$0xf]
      %v2892 = vld [vmem:[%s2879 + $0x30] sm:$0xf]
      %v2893 = vld [vmem:[%s2879 + $0x34] sm:$0xf]
      %v2894 = vld [vmem:[%s2879 + $0x38] sm:$0xf]
      %v2895 = vld [vmem:[%s2879 + $0x3c] sm:$0xf]
      %v2896 = vld [vmem:[%s2879 + $0x40] sm:$0xf]
      %v2897 = vld [vmem:[%s2879 + $0x44] sm:$0xf]
      %v2898 = vld [vmem:[%s2879 + $0x48] sm:$0xf]
      %v2899 = vld [vmem:[%s2879 + $0x4c] sm:$0xf]
      %v2900 = vld [vmem:[%s2879 + $0x50] sm:$0xf]
      %v2901 = vld [vmem:[%s2879 + $0x54] sm:$0xf]
      %v2902 = vld [vmem:[%s2879 + $0x58] sm:$0xf]
      %v2903 = vld [vmem:[%s2879 + $0x5c] sm:$0xf]
      %v2904 = vld [vmem:[%s2879 + $0x60] sm:$0xf]
      %v2905 = vld [vmem:[%s2879 + $0x64] sm:$0xf]
      %v2906 = vld [vmem:[%s2879 + $0x68] sm:$0xf]
      %v2907 = vld [vmem:[%s2879 + $0x6c] sm:$0xf]
      %v2908 = vld [vmem:[%s2879 + $0x70] sm:$0xf]
      %v2909 = vld [vmem:[%s2879 + $0x74] sm:$0xf]
      %v2910 = vld [vmem:[%s2879 + $0x78] sm:$0xf]
      %v2911 = vld [vmem:[%s2879 + $0x7c] sm:$0xf]
      %s2912 = scalar_lea.vmem %s1, 448
      %v2913 = vld [vmem:[%s2912] sm:$0xf]
      %v2914 = vld [vmem:[%s2912 + $0x4] sm:$0xf]
      %v2915 = vld [vmem:[%s2912 + $0x8] sm:$0xf]
      %v2916 = vld [vmem:[%s2912 + $0xc] sm:$0xf]
      %v2917 = vld [vmem:[%s2912 + $0x10] sm:$0xf]
      %v2918 = vld [vmem:[%s2912 + $0x14] sm:$0xf]
      %v2919 = vld [vmem:[%s2912 + $0x18] sm:$0xf]
      %v2920 = vld [vmem:[%s2912 + $0x1c] sm:$0xf]
      %v2921 = vld [vmem:[%s2912 + $0x20] sm:$0xf]
      %v2922 = vld [vmem:[%s2912 + $0x24] sm:$0xf]
      %v2923 = vld [vmem:[%s2912 + $0x28] sm:$0xf]
      %v2924 = vld [vmem:[%s2912 + $0x2c] sm:$0xf]
      %v2925 = vld [vmem:[%s2912 + $0x30] sm:$0xf]
      %v2926 = vld [vmem:[%s2912 + $0x34] sm:$0xf]
      %v2927 = vld [vmem:[%s2912 + $0x38] sm:$0xf]
      %v2928 = vld [vmem:[%s2912 + $0x3c] sm:$0xf]
      %v2961 = vunpack.c.l.b16 %v2880
      %v2962 = vunpack.c.l.b16 %v2881
      %v2963 = vunpack.c.l.b16 %v2882
      %v2964 = vunpack.c.l.b16 %v2883
      %v2965 = vunpack.c.l.b16 %v2884
      %v2966 = vunpack.c.l.b16 %v2885
      %v2967 = vunpack.c.l.b16 %v2886
      %v2968 = vunpack.c.l.b16 %v2887
      %v2969 = vunpack.c.l.b16 %v2888
      %v2970 = vunpack.c.l.b16 %v2889
      %v2971 = vunpack.c.l.b16 %v2890
      %v2972 = vunpack.c.l.b16 %v2891
      %v2973 = vunpack.c.l.b16 %v2892
      %v2974 = vunpack.c.l.b16 %v2893
      %v2975 = vunpack.c.l.b16 %v2894
      %v2976 = vunpack.c.l.b16 %v2895
      %v2977 = vunpack.c.l.b16 %v2896
      %v2978 = vunpack.c.l.b16 %v2897
      %v2979 = vunpack.c.l.b16 %v2898
      %v2980 = vunpack.c.l.b16 %v2899
      %v2981 = vunpack.c.l.b16 %v2900
      %v2982 = vunpack.c.l.b16 %v2901
      %v2983 = vunpack.c.l.b16 %v2902
      %v2984 = vunpack.c.l.b16 %v2903
      %v2985 = vunpack.c.l.b16 %v2904
      %v2986 = vunpack.c.l.b16 %v2905
      %v2987 = vunpack.c.l.b16 %v2906
      %v2988 = vunpack.c.l.b16 %v2907
      %v2989 = vunpack.c.l.b16 %v2908
      %v2990 = vunpack.c.l.b16 %v2909
      %v2991 = vunpack.c.l.b16 %v2910
      %v2992 = vunpack.c.l.b16 %v2911
      %v2993 = vpack.c.b16 %v2962, %v2961
      %v2994 = vpack.c.b16 %v2964, %v2963
      %v2995 = vpack.c.b16 %v2966, %v2965
      %v2996 = vpack.c.b16 %v2968, %v2967
      %v2997 = vpack.c.b16 %v2970, %v2969
      %v2998 = vpack.c.b16 %v2972, %v2971
      %v2999 = vpack.c.b16 %v2974, %v2973
      %v3000 = vpack.c.b16 %v2976, %v2975
      %v3001 = vpack.c.b16 %v2978, %v2977
      %v3002 = vpack.c.b16 %v2980, %v2979
      %v3003 = vpack.c.b16 %v2982, %v2981
      %v3004 = vpack.c.b16 %v2984, %v2983
      %v3005 = vpack.c.b16 %v2986, %v2985
      %v3006 = vpack.c.b16 %v2988, %v2987
      %v3007 = vpack.c.b16 %v2990, %v2989
      %v3008 = vpack.c.b16 %v2992, %v2991
      %v3041 = vunpack.c.l.b16 %v2913
      %v3042 = vunpack.c.l.b16 %v2914
      %v3043 = vunpack.c.l.b16 %v2915
      %v3044 = vunpack.c.l.b16 %v2916
      %v3045 = vunpack.c.l.b16 %v2917
      %v3046 = vunpack.c.l.b16 %v2918
      %v3047 = vunpack.c.l.b16 %v2919
      %v3048 = vunpack.c.l.b16 %v2920
      %v3049 = vunpack.c.l.b16 %v2921
      %v3050 = vunpack.c.l.b16 %v2922
      %v3051 = vunpack.c.l.b16 %v2923
      %v3052 = vunpack.c.l.b16 %v2924
      %v3053 = vunpack.c.l.b16 %v2925
      %v3054 = vunpack.c.l.b16 %v2926
      %v3055 = vunpack.c.l.b16 %v2927
      %v3056 = vunpack.c.l.b16 %v2928
      %v3057 = vpack.c.b16 %v3042, %v3041
      %v3058 = vpack.c.b16 %v3044, %v3043
      %v3059 = vpack.c.b16 %v3046, %v3045
      %v3060 = vpack.c.b16 %v3048, %v3047
      %v3061 = vpack.c.b16 %v3050, %v3049
      %v3062 = vpack.c.b16 %v3052, %v3051
      %v3063 = vpack.c.b16 %v3054, %v3053
      %v3064 = vpack.c.b16 %v3056, %v3055
      %3073 = vmatprep.subr.bf16.mxu0 0
      %3074 = vmatpush1.bf16.msra.mxu0 %v3064
      %3075 = vmatprep.subr.bf16.mxu0 0
      %3076 = vmatpush1.bf16.msra.mxu0 %v3063
      %3077 = vmatprep.subr.bf16.mxu0 0
      %3078 = vmatpush1.bf16.msra.mxu0 %v3062
      %3079 = vmatprep.subr.bf16.mxu0 0
      %3080 = vmatpush1.bf16.msra.mxu0 %v3061
      %3081 = vmatprep.subr.bf16.mxu0 0
      %3082 = vmatpush1.bf16.msra.mxu0 %v3060
      %3083 = vmatprep.subr.bf16.mxu0 0
      %3084 = vmatpush1.bf16.msra.mxu0 %v3059
      %3085 = vmatprep.subr.bf16.mxu0 0
      %3086 = vmatpush1.bf16.msra.mxu0 %v3058
      %3087 = vmatprep.subr.bf16.mxu0 0
      %3088 = vmatpush1.bf16.msra.mxu0 %v3057
      %3089 = vmatprep.subr.bf16.mxu0 0
      %3090 = vmatpush2.bf16.msra.mxu0 0
      %3091 = vmatprep.subr.bf16.mxu0 0
      %3092 = vmatpush2.bf16.msra.mxu0 0
      %3093 = vmatprep.subr.bf16.mxu0 0
      %3094 = vmatpush2.bf16.msra.mxu0 0
      %3095 = vmatprep.subr.bf16.mxu0 0
      %3096 = vmatpush2.bf16.msra.mxu0 0
      %3097 = vmatprep.subr.bf16.mxu0 0
      %3098 = vmatpush2.bf16.msra.mxu0 0
      %3099 = vmatprep.subr.bf16.mxu0 0
      %3100 = vmatpush2.bf16.msra.mxu0 0
      %3101 = vmatprep.subr.bf16.mxu0 0
      %3102 = vmatpush2.bf16.msra.mxu0 0
      %3103 = vmatprep.subr.bf16.mxu0 0
      %3104 = vmatpush2.bf16.msra.mxu0 0
      %3105 = vmatprep.mubr.bf16.mxu0 0
      %3106 = vmatmul.mubr.bf16.gmra.mxu0 %v2993
      %v3107 = vpop.f32.mrf.mxu0
      %v3108 = vadd.f32 0.0, %v3107
      %v3109 = vpop.f32.mrf.mxu0
      %v3110 = vpop.f32.mrf.mxu0
      %v3111 = vadd.f32 0.0, %v3110
      %v3112 = vpop.f32.mrf.mxu0
      %3113 = vmatprep.mubr.bf16.mxu0 0
      %3114 = vmatmul.mubr.bf16.gmra.mxu0 %v2994
      %v3115 = vpop.f32.mrf.mxu0
      %v3116 = vadd.f32 0.0, %v3115
      %v3117 = vpop.f32.mrf.mxu0
      %v3118 = vpop.f32.mrf.mxu0
      %v3119 = vadd.f32 0.0, %v3118
      %v3120 = vpop.f32.mrf.mxu0
      %3121 = vmatprep.mubr.bf16.mxu0 0
      %3122 = vmatmul.mubr.bf16.gmra.mxu0 %v2995
      %v3123 = vpop.f32.mrf.mxu0
      %v3124 = vadd.f32 0.0, %v3123
      %v3125 = vpop.f32.mrf.mxu0
      %v3126 = vpop.f32.mrf.mxu0
      %v3127 = vadd.f32 0.0, %v3126
      %v3128 = vpop.f32.mrf.mxu0
      %3129 = vmatprep.mubr.bf16.mxu0 0
      %3130 = vmatmul.mubr.bf16.gmra.mxu0 %v2996
      %v3131 = vpop.f32.mrf.mxu0
      %v3132 = vadd.f32 0.0, %v3131
      %v3133 = vpop.f32.mrf.mxu0
      %v3134 = vpop.f32.mrf.mxu0
      %v3135 = vadd.f32 0.0, %v3134
      %v3136 = vpop.f32.mrf.mxu0
      %3137 = vmatprep.mubr.bf16.mxu0 0
      %3138 = vmatmul.mubr.bf16.gmra.mxu0 %v2997
      %v3139 = vpop.f32.mrf.mxu0
      %v3140 = vadd.f32 0.0, %v3139
      %v3141 = vpop.f32.mrf.mxu0
      %v3142 = vpop.f32.mrf.mxu0
      %v3143 = vadd.f32 0.0, %v3142
      %v3144 = vpop.f32.mrf.mxu0
      %3145 = vmatprep.mubr.bf16.mxu0 0
      %3146 = vmatmul.mubr.bf16.gmra.mxu0 %v2998
      %v3147 = vpop.f32.mrf.mxu0
      %v3148 = vadd.f32 0.0, %v3147
      %v3149 = vpop.f32.mrf.mxu0
      %v3150 = vpop.f32.mrf.mxu0
      %v3151 = vadd.f32 0.0, %v3150
      %v3152 = vpop.f32.mrf.mxu0
      %3153 = vmatprep.mubr.bf16.mxu0 0
      %3154 = vmatmul.mubr.bf16.gmra.mxu0 %v2999
      %v3155 = vpop.f32.mrf.mxu0
      %v3156 = vadd.f32 0.0, %v3155
      %v3157 = vpop.f32.mrf.mxu0
      %v3158 = vpop.f32.mrf.mxu0
      %v3159 = vadd.f32 0.0, %v3158
      %v3160 = vpop.f32.mrf.mxu0
      %3161 = vmatprep.mubr.bf16.mxu0 0
      %3162 = vmatmul.mubr.bf16.gmra.mxu0 %v3000
      %v3163 = vpop.f32.mrf.mxu0
      %v3164 = vadd.f32 0.0, %v3163
      %v3165 = vpop.f32.mrf.mxu0
      %v3166 = vpop.f32.mrf.mxu0
      %v3167 = vadd.f32 0.0, %v3166
      %v3168 = vpop.f32.mrf.mxu0
      %3169 = vmatprep.mubr.bf16.mxu0 0
      %3170 = vmatmul.mubr.bf16.gmra.mxu0 %v3001
      %v3171 = vpop.f32.mrf.mxu0
      %v3172 = vadd.f32 0.0, %v3171
      %v3173 = vpop.f32.mrf.mxu0
      %v3174 = vpop.f32.mrf.mxu0
      %v3175 = vadd.f32 0.0, %v3174
      %v3176 = vpop.f32.mrf.mxu0
      %3177 = vmatprep.mubr.bf16.mxu0 0
      %3178 = vmatmul.mubr.bf16.gmra.mxu0 %v3002
      %v3179 = vpop.f32.mrf.mxu0
      %v3180 = vadd.f32 0.0, %v3179
      %v3181 = vpop.f32.mrf.mxu0
      %v3182 = vpop.f32.mrf.mxu0
      %v3183 = vadd.f32 0.0, %v3182
      %v3184 = vpop.f32.mrf.mxu0
      %3185 = vmatprep.mubr.bf16.mxu0 0
      %3186 = vmatmul.mubr.bf16.gmra.mxu0 %v3003
      %v3187 = vpop.f32.mrf.mxu0
      %v3188 = vadd.f32 0.0, %v3187
      %v3189 = vpop.f32.mrf.mxu0
      %v3190 = vpop.f32.mrf.mxu0
      %v3191 = vadd.f32 0.0, %v3190
      %v3192 = vpop.f32.mrf.mxu0
      %3193 = vmatprep.mubr.bf16.mxu0 0
      %3194 = vmatmul.mubr.bf16.gmra.mxu0 %v3004
      %v3195 = vpop.f32.mrf.mxu0
      %v3196 = vadd.f32 0.0, %v3195
      %v3197 = vpop.f32.mrf.mxu0
      %v3198 = vpop.f32.mrf.mxu0
      %v3199 = vadd.f32 0.0, %v3198
      %v3200 = vpop.f32.mrf.mxu0
      %3201 = vmatprep.mubr.bf16.mxu0 0
      %3202 = vmatmul.mubr.bf16.gmra.mxu0 %v3005
      %v3203 = vpop.f32.mrf.mxu0
      %v3204 = vadd.f32 0.0, %v3203
      %v3205 = vpop.f32.mrf.mxu0
      %v3206 = vpop.f32.mrf.mxu0
      %v3207 = vadd.f32 0.0, %v3206
      %v3208 = vpop.f32.mrf.mxu0
      %3209 = vmatprep.mubr.bf16.mxu0 0
      %3210 = vmatmul.mubr.bf16.gmra.mxu0 %v3006
      %v3211 = vpop.f32.mrf.mxu0
      %v3212 = vadd.f32 0.0, %v3211
      %v3213 = vpop.f32.mrf.mxu0
      %v3214 = vpop.f32.mrf.mxu0
      %v3215 = vadd.f32 0.0, %v3214
      %v3216 = vpop.f32.mrf.mxu0
      %3217 = vmatprep.mubr.bf16.mxu0 0
      %3218 = vmatmul.mubr.bf16.gmra.mxu0 %v3007
      %v3219 = vpop.f32.mrf.mxu0
      %v3220 = vadd.f32 0.0, %v3219
      %v3221 = vpop.f32.mrf.mxu0
      %v3222 = vpop.f32.mrf.mxu0
      %v3223 = vadd.f32 0.0, %v3222
      %v3224 = vpop.f32.mrf.mxu0
      %3225 = vmatprep.mubr.bf16.mxu0 0
      %3226 = vmatmul.mubr.bf16.gmra.mxu0 %v3008
      %v3227 = vpop.f32.mrf.mxu0
      %v3228 = vadd.f32 0.0, %v3227
      %v3229 = vpop.f32.mrf.mxu0
      %v3230 = vpop.f32.mrf.mxu0
      %v3231 = vadd.f32 0.0, %v3230
      %v3232 = vpop.f32.mrf.mxu0
      %3233 = vdwg.mxu0
      %v3234 = vadd.f32 %v2842, %v3108
      %v3235 = vadd.f32 %v2843, %v3111
      %v3236 = vadd.f32 %v2844, %v3116
      %v3237 = vadd.f32 %v2845, %v3119
      %v3238 = vadd.f32 %v2846, %v3124
      %v3239 = vadd.f32 %v2847, %v3127
      %v3240 = vadd.f32 %v2848, %v3132
      %v3241 = vadd.f32 %v2849, %v3135
      %v3242 = vadd.f32 %v2850, %v3140
      %v3243 = vadd.f32 %v2851, %v3143
      %v3244 = vadd.f32 %v2852, %v3148
      %v3245 = vadd.f32 %v2853, %v3151
      %v3246 = vadd.f32 %v2854, %v3156
      %v3247 = vadd.f32 %v2855, %v3159
      %v3248 = vadd.f32 %v2856, %v3164
      %v3249 = vadd.f32 %v2857, %v3167
      %v3250 = vadd.f32 %v2858, %v3172
      %v3251 = vadd.f32 %v2859, %v3175
      %v3252 = vadd.f32 %v2860, %v3180
      %v3253 = vadd.f32 %v2861, %v3183
      %v3254 = vadd.f32 %v2862, %v3188
      %v3255 = vadd.f32 %v2863, %v3191
      %v3256 = vadd.f32 %v2864, %v3196
      %v3257 = vadd.f32 %v2865, %v3199
      %v3258 = vadd.f32 %v2866, %v3204
      %v3259 = vadd.f32 %v2867, %v3207
      %v3260 = vadd.f32 %v2868, %v3212
      %v3261 = vadd.f32 %v2869, %v3215
      %v3262 = vadd.f32 %v2870, %v3220
      %v3263 = vadd.f32 %v2871, %v3223
      %v3264 = vadd.f32 %v2872, %v3228
      %v3265 = vadd.f32 %v2873, %v3231
      %s3266 = sadd.s32 %s195, 38
      %s3267 = smul.u32 %s3266, 16
      %s3268 = sshra.s32 %s3267, 3
      %s3269 = sand.u32 %s3267, 7
      %s3270 = smul.addr %s3268, 4
      %s3271 = scalar_lea.vmem %s183, %s3270
      %v3272 = vld [vmem:[%s3271] sm:$0xf]
      %v3273 = vld [vmem:[%s3271 + $0x4] sm:$0xf]
      %v3274 = vld [vmem:[%s3271 + $0x8] sm:$0xf]
      %v3275 = vld [vmem:[%s3271 + $0xc] sm:$0xf]
      %v3276 = vld [vmem:[%s3271 + $0x10] sm:$0xf]
      %v3277 = vld [vmem:[%s3271 + $0x14] sm:$0xf]
      %v3278 = vld [vmem:[%s3271 + $0x18] sm:$0xf]
      %v3279 = vld [vmem:[%s3271 + $0x1c] sm:$0xf]
      %v3280 = vld [vmem:[%s3271 + $0x20] sm:$0xf]
      %v3281 = vld [vmem:[%s3271 + $0x24] sm:$0xf]
      %v3282 = vld [vmem:[%s3271 + $0x28] sm:$0xf]
      %v3283 = vld [vmem:[%s3271 + $0x2c] sm:$0xf]
      %v3284 = vld [vmem:[%s3271 + $0x30] sm:$0xf]
      %v3285 = vld [vmem:[%s3271 + $0x34] sm:$0xf]
      %v3286 = vld [vmem:[%s3271 + $0x38] sm:$0xf]
      %v3287 = vld [vmem:[%s3271 + $0x3c] sm:$0xf]
      %v3288 = vld [vmem:[%s3271 + $0x40] sm:$0xf]
      %v3289 = vld [vmem:[%s3271 + $0x44] sm:$0xf]
      %v3290 = vld [vmem:[%s3271 + $0x48] sm:$0xf]
      %v3291 = vld [vmem:[%s3271 + $0x4c] sm:$0xf]
      %v3292 = vld [vmem:[%s3271 + $0x50] sm:$0xf]
      %v3293 = vld [vmem:[%s3271 + $0x54] sm:$0xf]
      %v3294 = vld [vmem:[%s3271 + $0x58] sm:$0xf]
      %v3295 = vld [vmem:[%s3271 + $0x5c] sm:$0xf]
      %v3296 = vld [vmem:[%s3271 + $0x60] sm:$0xf]
      %v3297 = vld [vmem:[%s3271 + $0x64] sm:$0xf]
      %v3298 = vld [vmem:[%s3271 + $0x68] sm:$0xf]
      %v3299 = vld [vmem:[%s3271 + $0x6c] sm:$0xf]
      %v3300 = vld [vmem:[%s3271 + $0x70] sm:$0xf]
      %v3301 = vld [vmem:[%s3271 + $0x74] sm:$0xf]
      %v3302 = vld [vmem:[%s3271 + $0x78] sm:$0xf]
      %v3303 = vld [vmem:[%s3271 + $0x7c] sm:$0xf]
      %s3304 = scalar_lea.vmem %s1, 512
      %v3305 = vld [vmem:[%s3304] sm:$0xf]
      %v3306 = vld [vmem:[%s3304 + $0x4] sm:$0xf]
      %v3307 = vld [vmem:[%s3304 + $0x8] sm:$0xf]
      %v3308 = vld [vmem:[%s3304 + $0xc] sm:$0xf]
      %v3309 = vld [vmem:[%s3304 + $0x10] sm:$0xf]
      %v3310 = vld [vmem:[%s3304 + $0x14] sm:$0xf]
      %v3311 = vld [vmem:[%s3304 + $0x18] sm:$0xf]
      %v3312 = vld [vmem:[%s3304 + $0x1c] sm:$0xf]
      %v3313 = vld [vmem:[%s3304 + $0x20] sm:$0xf]
      %v3314 = vld [vmem:[%s3304 + $0x24] sm:$0xf]
      %v3315 = vld [vmem:[%s3304 + $0x28] sm:$0xf]
      %v3316 = vld [vmem:[%s3304 + $0x2c] sm:$0xf]
      %v3317 = vld [vmem:[%s3304 + $0x30] sm:$0xf]
      %v3318 = vld [vmem:[%s3304 + $0x34] sm:$0xf]
      %v3319 = vld [vmem:[%s3304 + $0x38] sm:$0xf]
      %v3320 = vld [vmem:[%s3304 + $0x3c] sm:$0xf]
      %v3353 = vunpack.c.l.b16 %v3272
      %v3354 = vunpack.c.l.b16 %v3273
      %v3355 = vunpack.c.l.b16 %v3274
      %v3356 = vunpack.c.l.b16 %v3275
      %v3357 = vunpack.c.l.b16 %v3276
      %v3358 = vunpack.c.l.b16 %v3277
      %v3359 = vunpack.c.l.b16 %v3278
      %v3360 = vunpack.c.l.b16 %v3279
      %v3361 = vunpack.c.l.b16 %v3280
      %v3362 = vunpack.c.l.b16 %v3281
      %v3363 = vunpack.c.l.b16 %v3282
      %v3364 = vunpack.c.l.b16 %v3283
      %v3365 = vunpack.c.l.b16 %v3284
      %v3366 = vunpack.c.l.b16 %v3285
      %v3367 = vunpack.c.l.b16 %v3286
      %v3368 = vunpack.c.l.b16 %v3287
      %v3369 = vunpack.c.l.b16 %v3288
      %v3370 = vunpack.c.l.b16 %v3289
      %v3371 = vunpack.c.l.b16 %v3290
      %v3372 = vunpack.c.l.b16 %v3291
      %v3373 = vunpack.c.l.b16 %v3292
      %v3374 = vunpack.c.l.b16 %v3293
      %v3375 = vunpack.c.l.b16 %v3294
      %v3376 = vunpack.c.l.b16 %v3295
      %v3377 = vunpack.c.l.b16 %v3296
      %v3378 = vunpack.c.l.b16 %v3297
      %v3379 = vunpack.c.l.b16 %v3298
      %v3380 = vunpack.c.l.b16 %v3299
      %v3381 = vunpack.c.l.b16 %v3300
      %v3382 = vunpack.c.l.b16 %v3301
      %v3383 = vunpack.c.l.b16 %v3302
      %v3384 = vunpack.c.l.b16 %v3303
      %v3385 = vpack.c.b16 %v3354, %v3353
      %v3386 = vpack.c.b16 %v3356, %v3355
      %v3387 = vpack.c.b16 %v3358, %v3357
      %v3388 = vpack.c.b16 %v3360, %v3359
      %v3389 = vpack.c.b16 %v3362, %v3361
      %v3390 = vpack.c.b16 %v3364, %v3363
      %v3391 = vpack.c.b16 %v3366, %v3365
      %v3392 = vpack.c.b16 %v3368, %v3367
      %v3393 = vpack.c.b16 %v3370, %v3369
      %v3394 = vpack.c.b16 %v3372, %v3371
      %v3395 = vpack.c.b16 %v3374, %v3373
      %v3396 = vpack.c.b16 %v3376, %v3375
      %v3397 = vpack.c.b16 %v3378, %v3377
      %v3398 = vpack.c.b16 %v3380, %v3379
      %v3399 = vpack.c.b16 %v3382, %v3381
      %v3400 = vpack.c.b16 %v3384, %v3383
      %v3433 = vunpack.c.l.b16 %v3305
      %v3434 = vunpack.c.l.b16 %v3306
      %v3435 = vunpack.c.l.b16 %v3307
      %v3436 = vunpack.c.l.b16 %v3308
      %v3437 = vunpack.c.l.b16 %v3309
      %v3438 = vunpack.c.l.b16 %v3310
      %v3439 = vunpack.c.l.b16 %v3311
      %v3440 = vunpack.c.l.b16 %v3312
      %v3441 = vunpack.c.l.b16 %v3313
      %v3442 = vunpack.c.l.b16 %v3314
      %v3443 = vunpack.c.l.b16 %v3315
      %v3444 = vunpack.c.l.b16 %v3316
      %v3445 = vunpack.c.l.b16 %v3317
      %v3446 = vunpack.c.l.b16 %v3318
      %v3447 = vunpack.c.l.b16 %v3319
      %v3448 = vunpack.c.l.b16 %v3320
      %v3449 = vpack.c.b16 %v3434, %v3433
      %v3450 = vpack.c.b16 %v3436, %v3435
      %v3451 = vpack.c.b16 %v3438, %v3437
      %v3452 = vpack.c.b16 %v3440, %v3439
      %v3453 = vpack.c.b16 %v3442, %v3441
      %v3454 = vpack.c.b16 %v3444, %v3443
      %v3455 = vpack.c.b16 %v3446, %v3445
      %v3456 = vpack.c.b16 %v3448, %v3447
      %3465 = vmatprep.subr.bf16.mxu0 0
      %3466 = vmatpush1.bf16.msra.mxu0 %v3456
      %3467 = vmatprep.subr.bf16.mxu0 0
      %3468 = vmatpush1.bf16.msra.mxu0 %v3455
      %3469 = vmatprep.subr.bf16.mxu0 0
      %3470 = vmatpush1.bf16.msra.mxu0 %v3454
      %3471 = vmatprep.subr.bf16.mxu0 0
      %3472 = vmatpush1.bf16.msra.mxu0 %v3453
      %3473 = vmatprep.subr.bf16.mxu0 0
      %3474 = vmatpush1.bf16.msra.mxu0 %v3452
      %3475 = vmatprep.subr.bf16.mxu0 0
      %3476 = vmatpush1.bf16.msra.mxu0 %v3451
      %3477 = vmatprep.subr.bf16.mxu0 0
      %3478 = vmatpush1.bf16.msra.mxu0 %v3450
      %3479 = vmatprep.subr.bf16.mxu0 0
      %3480 = vmatpush1.bf16.msra.mxu0 %v3449
      %3481 = vmatprep.subr.bf16.mxu0 0
      %3482 = vmatpush2.bf16.msra.mxu0 0
      %3483 = vmatprep.subr.bf16.mxu0 0
      %3484 = vmatpush2.bf16.msra.mxu0 0
      %3485 = vmatprep.subr.bf16.mxu0 0
      %3486 = vmatpush2.bf16.msra.mxu0 0
      %3487 = vmatprep.subr.bf16.mxu0 0
      %3488 = vmatpush2.bf16.msra.mxu0 0
      %3489 = vmatprep.subr.bf16.mxu0 0
      %3490 = vmatpush2.bf16.msra.mxu0 0
      %3491 = vmatprep.subr.bf16.mxu0 0
      %3492 = vmatpush2.bf16.msra.mxu0 0
      %3493 = vmatprep.subr.bf16.mxu0 0
      %3494 = vmatpush2.bf16.msra.mxu0 0
      %3495 = vmatprep.subr.bf16.mxu0 0
      %3496 = vmatpush2.bf16.msra.mxu0 0
      %3497 = vmatprep.mubr.bf16.mxu0 0
      %3498 = vmatmul.mubr.bf16.gmra.mxu0 %v3385
      %v3499 = vpop.f32.mrf.mxu0
      %v3500 = vadd.f32 0.0, %v3499
      %v3501 = vpop.f32.mrf.mxu0
      %v3502 = vpop.f32.mrf.mxu0
      %v3503 = vadd.f32 0.0, %v3502
      %v3504 = vpop.f32.mrf.mxu0
      %3505 = vmatprep.mubr.bf16.mxu0 0
      %3506 = vmatmul.mubr.bf16.gmra.mxu0 %v3386
      %v3507 = vpop.f32.mrf.mxu0
      %v3508 = vadd.f32 0.0, %v3507
      %v3509 = vpop.f32.mrf.mxu0
      %v3510 = vpop.f32.mrf.mxu0
      %v3511 = vadd.f32 0.0, %v3510
      %v3512 = vpop.f32.mrf.mxu0
      %3513 = vmatprep.mubr.bf16.mxu0 0
      %3514 = vmatmul.mubr.bf16.gmra.mxu0 %v3387
      %v3515 = vpop.f32.mrf.mxu0
      %v3516 = vadd.f32 0.0, %v3515
      %v3517 = vpop.f32.mrf.mxu0
      %v3518 = vpop.f32.mrf.mxu0
      %v3519 = vadd.f32 0.0, %v3518
      %v3520 = vpop.f32.mrf.mxu0
      %3521 = vmatprep.mubr.bf16.mxu0 0
      %3522 = vmatmul.mubr.bf16.gmra.mxu0 %v3388
      %v3523 = vpop.f32.mrf.mxu0
      %v3524 = vadd.f32 0.0, %v3523
      %v3525 = vpop.f32.mrf.mxu0
      %v3526 = vpop.f32.mrf.mxu0
      %v3527 = vadd.f32 0.0, %v3526
      %v3528 = vpop.f32.mrf.mxu0
      %3529 = vmatprep.mubr.bf16.mxu0 0
      %3530 = vmatmul.mubr.bf16.gmra.mxu0 %v3389
      %v3531 = vpop.f32.mrf.mxu0
      %v3532 = vadd.f32 0.0, %v3531
      %v3533 = vpop.f32.mrf.mxu0
      %v3534 = vpop.f32.mrf.mxu0
      %v3535 = vadd.f32 0.0, %v3534
      %v3536 = vpop.f32.mrf.mxu0
      %3537 = vmatprep.mubr.bf16.mxu0 0
      %3538 = vmatmul.mubr.bf16.gmra.mxu0 %v3390
      %v3539 = vpop.f32.mrf.mxu0
      %v3540 = vadd.f32 0.0, %v3539
      %v3541 = vpop.f32.mrf.mxu0
      %v3542 = vpop.f32.mrf.mxu0
      %v3543 = vadd.f32 0.0, %v3542
      %v3544 = vpop.f32.mrf.mxu0
      %3545 = vmatprep.mubr.bf16.mxu0 0
      %3546 = vmatmul.mubr.bf16.gmra.mxu0 %v3391
      %v3547 = vpop.f32.mrf.mxu0
      %v3548 = vadd.f32 0.0, %v3547
      %v3549 = vpop.f32.mrf.mxu0
      %v3550 = vpop.f32.mrf.mxu0
      %v3551 = vadd.f32 0.0, %v3550
      %v3552 = vpop.f32.mrf.mxu0
      %3553 = vmatprep.mubr.bf16.mxu0 0
      %3554 = vmatmul.mubr.bf16.gmra.mxu0 %v3392
      %v3555 = vpop.f32.mrf.mxu0
      %v3556 = vadd.f32 0.0, %v3555
      %v3557 = vpop.f32.mrf.mxu0
      %v3558 = vpop.f32.mrf.mxu0
      %v3559 = vadd.f32 0.0, %v3558
      %v3560 = vpop.f32.mrf.mxu0
      %3561 = vmatprep.mubr.bf16.mxu0 0
      %3562 = vmatmul.mubr.bf16.gmra.mxu0 %v3393
      %v3563 = vpop.f32.mrf.mxu0
      %v3564 = vadd.f32 0.0, %v3563
      %v3565 = vpop.f32.mrf.mxu0
      %v3566 = vpop.f32.mrf.mxu0
      %v3567 = vadd.f32 0.0, %v3566
      %v3568 = vpop.f32.mrf.mxu0
      %3569 = vmatprep.mubr.bf16.mxu0 0
      %3570 = vmatmul.mubr.bf16.gmra.mxu0 %v3394
      %v3571 = vpop.f32.mrf.mxu0
      %v3572 = vadd.f32 0.0, %v3571
      %v3573 = vpop.f32.mrf.mxu0
      %v3574 = vpop.f32.mrf.mxu0
      %v3575 = vadd.f32 0.0, %v3574
      %v3576 = vpop.f32.mrf.mxu0
      %3577 = vmatprep.mubr.bf16.mxu0 0
      %3578 = vmatmul.mubr.bf16.gmra.mxu0 %v3395
      %v3579 = vpop.f32.mrf.mxu0
      %v3580 = vadd.f32 0.0, %v3579
      %v3581 = vpop.f32.mrf.mxu0
      %v3582 = vpop.f32.mrf.mxu0
      %v3583 = vadd.f32 0.0, %v3582
      %v3584 = vpop.f32.mrf.mxu0
      %3585 = vmatprep.mubr.bf16.mxu0 0
      %3586 = vmatmul.mubr.bf16.gmra.mxu0 %v3396
      %v3587 = vpop.f32.mrf.mxu0
      %v3588 = vadd.f32 0.0, %v3587
      %v3589 = vpop.f32.mrf.mxu0
      %v3590 = vpop.f32.mrf.mxu0
      %v3591 = vadd.f32 0.0, %v3590
      %v3592 = vpop.f32.mrf.mxu0
      %3593 = vmatprep.mubr.bf16.mxu0 0
      %3594 = vmatmul.mubr.bf16.gmra.mxu0 %v3397
      %v3595 = vpop.f32.mrf.mxu0
      %v3596 = vadd.f32 0.0, %v3595
      %v3597 = vpop.f32.mrf.mxu0
      %v3598 = vpop.f32.mrf.mxu0
      %v3599 = vadd.f32 0.0, %v3598
      %v3600 = vpop.f32.mrf.mxu0
      %3601 = vmatprep.mubr.bf16.mxu0 0
      %3602 = vmatmul.mubr.bf16.gmra.mxu0 %v3398
      %v3603 = vpop.f32.mrf.mxu0
      %v3604 = vadd.f32 0.0, %v3603
      %v3605 = vpop.f32.mrf.mxu0
      %v3606 = vpop.f32.mrf.mxu0
      %v3607 = vadd.f32 0.0, %v3606
      %v3608 = vpop.f32.mrf.mxu0
      %3609 = vmatprep.mubr.bf16.mxu0 0
      %3610 = vmatmul.mubr.bf16.gmra.mxu0 %v3399
      %v3611 = vpop.f32.mrf.mxu0
      %v3612 = vadd.f32 0.0, %v3611
      %v3613 = vpop.f32.mrf.mxu0
      %v3614 = vpop.f32.mrf.mxu0
      %v3615 = vadd.f32 0.0, %v3614
      %v3616 = vpop.f32.mrf.mxu0
      %3617 = vmatprep.mubr.bf16.mxu0 0
      %3618 = vmatmul.mubr.bf16.gmra.mxu0 %v3400
      %v3619 = vpop.f32.mrf.mxu0
      %v3620 = vadd.f32 0.0, %v3619
      %v3621 = vpop.f32.mrf.mxu0
      %v3622 = vpop.f32.mrf.mxu0
      %v3623 = vadd.f32 0.0, %v3622
      %v3624 = vpop.f32.mrf.mxu0
      %3625 = vdwg.mxu0
      %v3626 = vadd.f32 %v3234, %v3500
      %v3627 = vadd.f32 %v3235, %v3503
      %v3628 = vadd.f32 %v3236, %v3508
      %v3629 = vadd.f32 %v3237, %v3511
      %v3630 = vadd.f32 %v3238, %v3516
      %v3631 = vadd.f32 %v3239, %v3519
      %v3632 = vadd.f32 %v3240, %v3524
      %v3633 = vadd.f32 %v3241, %v3527
      %v3634 = vadd.f32 %v3242, %v3532
      %v3635 = vadd.f32 %v3243, %v3535
      %v3636 = vadd.f32 %v3244, %v3540
      %v3637 = vadd.f32 %v3245, %v3543
      %v3638 = vadd.f32 %v3246, %v3548
      %v3639 = vadd.f32 %v3247, %v3551
      %v3640 = vadd.f32 %v3248, %v3556
      %v3641 = vadd.f32 %v3249, %v3559
      %v3642 = vadd.f32 %v3250, %v3564
      %v3643 = vadd.f32 %v3251, %v3567
      %v3644 = vadd.f32 %v3252, %v3572
      %v3645 = vadd.f32 %v3253, %v3575
      %v3646 = vadd.f32 %v3254, %v3580
      %v3647 = vadd.f32 %v3255, %v3583
      %v3648 = vadd.f32 %v3256, %v3588
      %v3649 = vadd.f32 %v3257, %v3591
      %v3650 = vadd.f32 %v3258, %v3596
      %v3651 = vadd.f32 %v3259, %v3599
      %v3652 = vadd.f32 %v3260, %v3604
      %v3653 = vadd.f32 %v3261, %v3607
      %v3654 = vadd.f32 %v3262, %v3612
      %v3655 = vadd.f32 %v3263, %v3615
      %v3656 = vadd.f32 %v3264, %v3620
      %v3657 = vadd.f32 %v3265, %v3623
      %v3658 = vld [vmem:[%s2] sm:$0x1]
      %v3660 = vlaneseq
      %v3661 = vshrl.u32 %v3660, 7
      %v3662 = vsub.s32 0, %v3661
      %v3663 = vrot.slane %v3658, %v3662
      %v3665 = vadd.f32 %v3626, %v3663
      %v3666 = vadd.f32 %v3627, %v3663
      %v3667 = vadd.f32 %v3628, %v3663
      %v3668 = vadd.f32 %v3629, %v3663
      %v3669 = vadd.f32 %v3630, %v3663
      %v3670 = vadd.f32 %v3631, %v3663
      %v3671 = vadd.f32 %v3632, %v3663
      %v3672 = vadd.f32 %v3633, %v3663
      %v3673 = vadd.f32 %v3634, %v3663
      %v3674 = vadd.f32 %v3635, %v3663
      %v3675 = vadd.f32 %v3636, %v3663
      %v3676 = vadd.f32 %v3637, %v3663
      %v3677 = vadd.f32 %v3638, %v3663
      %v3678 = vadd.f32 %v3639, %v3663
      %v3679 = vadd.f32 %v3640, %v3663
      %v3680 = vadd.f32 %v3641, %v3663
      %v3681 = vadd.f32 %v3642, %v3663
      %v3682 = vadd.f32 %v3643, %v3663
      %v3683 = vadd.f32 %v3644, %v3663
      %v3684 = vadd.f32 %v3645, %v3663
      %v3685 = vadd.f32 %v3646, %v3663
      %v3686 = vadd.f32 %v3647, %v3663
      %v3687 = vadd.f32 %v3648, %v3663
      %v3688 = vadd.f32 %v3649, %v3663
      %v3689 = vadd.f32 %v3650, %v3663
      %v3690 = vadd.f32 %v3651, %v3663
      %v3691 = vadd.f32 %v3652, %v3663
      %v3692 = vadd.f32 %v3653, %v3663
      %v3693 = vadd.f32 %v3654, %v3663
      %v3694 = vadd.f32 %v3655, %v3663
      %v3695 = vadd.f32 %v3656, %v3663
      %v3696 = vadd.f32 %v3657, %v3663
      %v3697 = vmax.f32 %v3665, 0.0
      %v3698 = vmax.f32 %v3666, 0.0
      %v3699 = vmax.f32 %v3667, 0.0
      %v3700 = vmax.f32 %v3668, 0.0
      %v3701 = vmax.f32 %v3669, 0.0
      %v3702 = vmax.f32 %v3670, 0.0
      %v3703 = vmax.f32 %v3671, 0.0
      %v3704 = vmax.f32 %v3672, 0.0
      %v3705 = vmax.f32 %v3673, 0.0
      %v3706 = vmax.f32 %v3674, 0.0
      %v3707 = vmax.f32 %v3675, 0.0
      %v3708 = vmax.f32 %v3676, 0.0
      %v3709 = vmax.f32 %v3677, 0.0
      %v3710 = vmax.f32 %v3678, 0.0
      %v3711 = vmax.f32 %v3679, 0.0
      %v3712 = vmax.f32 %v3680, 0.0
      %v3713 = vmax.f32 %v3681, 0.0
      %v3714 = vmax.f32 %v3682, 0.0
      %v3715 = vmax.f32 %v3683, 0.0
      %v3716 = vmax.f32 %v3684, 0.0
      %v3717 = vmax.f32 %v3685, 0.0
      %v3718 = vmax.f32 %v3686, 0.0
      %v3719 = vmax.f32 %v3687, 0.0
      %v3720 = vmax.f32 %v3688, 0.0
      %v3721 = vmax.f32 %v3689, 0.0
      %v3722 = vmax.f32 %v3690, 0.0
      %v3723 = vmax.f32 %v3691, 0.0
      %v3724 = vmax.f32 %v3692, 0.0
      %v3725 = vmax.f32 %v3693, 0.0
      %v3726 = vmax.f32 %v3694, 0.0
      %v3727 = vmax.f32 %v3695, 0.0
      %v3728 = vmax.f32 %v3696, 0.0
      %v3729 = vpack.c.bf16 %v3698, %v3697
      %v3730 = vpack.c.bf16 %v3700, %v3699
      %v3731 = vpack.c.bf16 %v3702, %v3701
      %v3732 = vpack.c.bf16 %v3704, %v3703
      %v3733 = vpack.c.bf16 %v3706, %v3705
      %v3734 = vpack.c.bf16 %v3708, %v3707
      %v3735 = vpack.c.bf16 %v3710, %v3709
      %v3736 = vpack.c.bf16 %v3712, %v3711
      %v3737 = vpack.c.bf16 %v3714, %v3713
      %v3738 = vpack.c.bf16 %v3716, %v3715
      %v3739 = vpack.c.bf16 %v3718, %v3717
      %v3740 = vpack.c.bf16 %v3720, %v3719
      %v3741 = vpack.c.bf16 %v3722, %v3721
      %v3742 = vpack.c.bf16 %v3724, %v3723
      %v3743 = vpack.c.bf16 %v3726, %v3725
      %v3744 = vpack.c.bf16 %v3728, %v3727
      %v3761 = vunpack.c.l.b16 %v3729
      %v3762 = vunpack.c.h.b16 %v3729
      %v3763 = vunpack.c.l.b16 %v3730
      %v3764 = vunpack.c.h.b16 %v3730
      %v3765 = vunpack.c.l.b16 %v3731
      %v3766 = vunpack.c.h.b16 %v3731
      %v3767 = vunpack.c.l.b16 %v3732
      %v3768 = vunpack.c.h.b16 %v3732
      %v3769 = vunpack.c.l.b16 %v3733
      %v3770 = vunpack.c.h.b16 %v3733
      %v3771 = vunpack.c.l.b16 %v3734
      %v3772 = vunpack.c.h.b16 %v3734
      %v3773 = vunpack.c.l.b16 %v3735
      %v3774 = vunpack.c.h.b16 %v3735
      %v3775 = vunpack.c.l.b16 %v3736
      %v3776 = vunpack.c.h.b16 %v3736
      %v3777 = vunpack.c.l.b16 %v3737
      %v3778 = vunpack.c.h.b16 %v3737
      %v3779 = vunpack.c.l.b16 %v3738
      %v3780 = vunpack.c.h.b16 %v3738
      %v3781 = vunpack.c.l.b16 %v3739
      %v3782 = vunpack.c.h.b16 %v3739
      %v3783 = vunpack.c.l.b16 %v3740
      %v3784 = vunpack.c.h.b16 %v3740
      %v3785 = vunpack.c.l.b16 %v3741
      %v3786 = vunpack.c.h.b16 %v3741
      %v3787 = vunpack.c.l.b16 %v3742
      %v3788 = vunpack.c.h.b16 %v3742
      %v3789 = vunpack.c.l.b16 %v3743
      %v3790 = vunpack.c.h.b16 %v3743
      %v3791 = vunpack.c.l.b16 %v3744
      %v3792 = vunpack.c.h.b16 %v3744
      %v3793 = vpack.c.b16 %v3761, %v3761
      %v3794 = vpack.c.b16 %v3762, %v3762
      %v3795 = vpack.c.b16 %v3763, %v3763
      %v3796 = vpack.c.b16 %v3764, %v3764
      %v3797 = vpack.c.b16 %v3765, %v3765
      %v3798 = vpack.c.b16 %v3766, %v3766
      %v3799 = vpack.c.b16 %v3767, %v3767
      %v3800 = vpack.c.b16 %v3768, %v3768
      %v3801 = vpack.c.b16 %v3769, %v3769
      %v3802 = vpack.c.b16 %v3770, %v3770
      %v3803 = vpack.c.b16 %v3771, %v3771
      %v3804 = vpack.c.b16 %v3772, %v3772
      %v3805 = vpack.c.b16 %v3773, %v3773
      %v3806 = vpack.c.b16 %v3774, %v3774
      %v3807 = vpack.c.b16 %v3775, %v3775
      %v3808 = vpack.c.b16 %v3776, %v3776
      %v3809 = vpack.c.b16 %v3777, %v3777
      %v3810 = vpack.c.b16 %v3778, %v3778
      %v3811 = vpack.c.b16 %v3779, %v3779
      %v3812 = vpack.c.b16 %v3780, %v3780
      %v3813 = vpack.c.b16 %v3781, %v3781
      %v3814 = vpack.c.b16 %v3782, %v3782
      %v3815 = vpack.c.b16 %v3783, %v3783
      %v3816 = vpack.c.b16 %v3784, %v3784
      %v3817 = vpack.c.b16 %v3785, %v3785
      %v3818 = vpack.c.b16 %v3786, %v3786
      %v3819 = vpack.c.b16 %v3787, %v3787
      %v3820 = vpack.c.b16 %v3788, %v3788
      %v3821 = vpack.c.b16 %v3789, %v3789
      %v3822 = vpack.c.b16 %v3790, %v3790
      %v3823 = vpack.c.b16 %v3791, %v3791
      %v3824 = vpack.c.b16 %v3792, %v3792
      %3857 = vst [vmem:[%s192] sm:$0xf] %v3793
      %3858 = vst [vmem:[%s192 + $0x4] sm:$0xf] %v3794
      %3859 = vst [vmem:[%s192 + $0x8] sm:$0xf] %v3795
      %3860 = vst [vmem:[%s192 + $0xc] sm:$0xf] %v3796
      %3861 = vst [vmem:[%s192 + $0x10] sm:$0xf] %v3797
      %3862 = vst [vmem:[%s192 + $0x14] sm:$0xf] %v3798
      %3863 = vst [vmem:[%s192 + $0x18] sm:$0xf] %v3799
      %3864 = vst [vmem:[%s192 + $0x1c] sm:$0xf] %v3800
      %3865 = vst [vmem:[%s192 + $0x20] sm:$0xf] %v3801
      %3866 = vst [vmem:[%s192 + $0x24] sm:$0xf] %v3802
      %3867 = vst [vmem:[%s192 + $0x28] sm:$0xf] %v3803
      %3868 = vst [vmem:[%s192 + $0x2c] sm:$0xf] %v3804
      %3869 = vst [vmem:[%s192 + $0x30] sm:$0xf] %v3805
      %3870 = vst [vmem:[%s192 + $0x34] sm:$0xf] %v3806
      %3871 = vst [vmem:[%s192 + $0x38] sm:$0xf] %v3807
      %3872 = vst [vmem:[%s192 + $0x3c] sm:$0xf] %v3808
      %3873 = vst [vmem:[%s192 + $0x40] sm:$0xf] %v3809
      %3874 = vst [vmem:[%s192 + $0x44] sm:$0xf] %v3810
      %3875 = vst [vmem:[%s192 + $0x48] sm:$0xf] %v3811
      %3876 = vst [vmem:[%s192 + $0x4c] sm:$0xf] %v3812
      %3877 = vst [vmem:[%s192 + $0x50] sm:$0xf] %v3813
      %3878 = vst [vmem:[%s192 + $0x54] sm:$0xf] %v3814
      %3879 = vst [vmem:[%s192 + $0x58] sm:$0xf] %v3815
      %3880 = vst [vmem:[%s192 + $0x5c] sm:$0xf] %v3816
      %3881 = vst [vmem:[%s192 + $0x60] sm:$0xf] %v3817
      %3882 = vst [vmem:[%s192 + $0x64] sm:$0xf] %v3818
      %3883 = vst [vmem:[%s192 + $0x68] sm:$0xf] %v3819
      %3884 = vst [vmem:[%s192 + $0x6c] sm:$0xf] %v3820
      %3885 = vst [vmem:[%s192 + $0x70] sm:$0xf] %v3821
      %3886 = vst [vmem:[%s192 + $0x74] sm:$0xf] %v3822
      %3887 = vst [vmem:[%s192 + $0x78] sm:$0xf] %v3823
      %3888 = vst [vmem:[%s192 + $0x7c] sm:$0xf] %v3824
      %s3889 = smul.u32 32, %s19
      %p3890 = scmp.lt.s32.totalorder %s18, 1
      %s3891 = scalar_select %p3890, %s18, 1
      %p3892 = scmp.lt.s32.totalorder %s3889, 31
      %s3893 = scalar_select %p3892, %s3889, 31
      %s3894 = smul.addr %s3891, 32
      %s3895 = sadd.s32 %s3893, %s3894
      %s3896 = smul.addr %s3895, 4
      %s3897 = scalar_lea.vmem %s3, %s3896
      // Predicated region
      $region33: #{bottleneck_forward.4} parent=31 // pred_check
        %p3898 = pneg %p114
      $region34: #{bottleneck_forward.4} parent=31 // pred_check_branch
        %3900 = sbr.rel (%p3898) target = $region36
      $region35: #{bottleneck_forward.4} parent=31 // pred_region
        %s3901 = smul.u32 32, %s19
      $region36: #{bottleneck_forward.4} parent=31 // pred_fallthru
        _
    $region32: #{bottleneck_forward.4} parent=5 // pred_fallthru
      _
    %p3902 = scmp.le.s32.totalorder 2, %s9
    // Predicated region
    $region37: #{bottleneck_forward.4} parent=5 // pred_check
      %p3903 = pneg %p3902
    $region38: #{bottleneck_forward.4} parent=5 // pred_check_branch
      %3905 = sbr.rel (%p3903) target = $region40
    $region39: #{bottleneck_forward.4} parent=5 // pred_region
      %s3906 = ssub.s32 %s9, 2
      // Predicated region
      $region41: #{bottleneck_forward.4} parent=39 // pred_check
        %p3907 = pneg %p120
      $region42: #{bottleneck_forward.4} parent=39 // pred_check_branch
        %3909 = sbr.rel (%p3907) target = $region44
      $region43: #{bottleneck_forward.4} parent=39 // pred_region
        %s3910 = smul.u32 32, %s21
        %p3911 = scmp.lt.s32.totalorder %s20, 1
        %s3912 = scalar_select %p3911, %s20, 1
        %p3913 = scmp.lt.s32.totalorder %s3910, 31
        %s3914 = scalar_select %p3913, %s3910, 31
        %s3915 = smul.addr %s3912, 32
        %s3916 = sadd.s32 %s3914, %s3915
        %s3917 = smul.addr %s3916, 4
        %s3918 = scalar_lea.vmem %s3, %s3917
      $region44: #{bottleneck_forward.4} parent=39 // pred_fallthru
        _
    $region40: #{bottleneck_forward.4} parent=5 // pred_fallthru
      _
  $region6: #{bottleneck_forward.4} parent=0 // loop_footer
    %s13 = sadd.s32 1, %s9
  $region7: #{bottleneck_forward.4} parent=0 // loop_footer_branch
    %8 = sbr.rel target = $region3
  $region8: #{bottleneck_forward.4} parent=0 // loop_exit
    _

</llo_original>
